<compile_context>
chip_gen: v6e
topology: v6e:2x2x1
jax: 0.10.0
libtpu: 0.0.40
codegen_flags: <defaults>
</compile_context>

<pallas_src>
import functools
import math

import jax
import jax.numpy as jnp
from jax.experimental import pallas as pl
from jax.experimental.pallas import tpu as pltpu


def _layernorm(v, gamma, beta, eps=1e-5):
    # f32 math regardless of matmul dtype (matches nn.LayerNorm eps=1e-5).
    mu = jnp.mean(v, axis=-1, keepdims=True)
    var = jnp.mean((v - mu) ** 2, axis=-1, keepdims=True)
    return (v - mu) * jax.lax.rsqrt(var + eps) * gamma + beta


def _transformer_block_kernel(
    # inputs
    x_ref,
    wq_ref, bq_ref, wk_ref, bk_ref, wv_ref, bv_ref, wo_ref, bo_ref,
    ln1_g_ref, ln1_b_ref, ln2_g_ref, ln2_b_ref,
    w1a_ref, b1a_ref, w1b_ref, b1b_ref, w2_ref, b2_ref,
    # outputs
    out_ref,
    *, n_heads, d_k, tb, seq, flat, matmul_dtype,
):
    D = n_heads * d_k
    R = tb * seq                                   # rows processed this step
    md = matmul_dtype
    inv_scale = 1.0 / float(d_k) ** 0.5

    if flat:
        x = x_ref[...].astype(jnp.float32)                   # (R, D), no reshape
    else:
        x = x_ref[...].reshape(R, D).astype(jnp.float32)     # leading-dim merge only

    # ---- attention branch (prenorm) ----
    xn = _layernorm(x, ln1_g_ref[...], ln1_b_ref[...]).astype(md)

    q = jnp.dot(xn, wq_ref[...], preferred_element_type=jnp.float32) + bq_ref[...]
    k = jnp.dot(xn, wk_ref[...], preferred_element_type=jnp.float32) + bk_ref[...]
    v = jnp.dot(xn, wv_ref[...], preferred_element_type=jnp.float32) + bv_ref[...]
    q = q * inv_scale                              # fold 1/sqrt(d_k) into Q once

    # Per-head attention, batched over the tb batch elements.  Lane slices +
    # leading-dim reshapes only (no head stack -> no extra (R, d_k) copies);
    # the per-(head,batch) matmuls contract only d_k and are intentionally
    # small -- the big dense matmuls own the MXU.
    ctx_parts = []
    for h in range(n_heads):
        sl = slice(h * d_k, (h + 1) * d_k)
        qh = q[:, sl].reshape(tb, seq, d_k).astype(md)
        kh = k[:, sl].reshape(tb, seq, d_k).astype(md)
        vh = v[:, sl].reshape(tb, seq, d_k).astype(md)
        s = jnp.einsum('bqd,bkd->bqk', qh, kh,
                       preferred_element_type=jnp.float32)      # (tb, S, S)
        s = jnp.exp(s - jnp.max(s, axis=-1, keepdims=True))
        p = (s * pl.reciprocal(jnp.sum(s, axis=-1, keepdims=True),
                               approx=True)).astype(md)
        ctx_parts.append(
            jnp.einsum('bqk,bkd->bqd', p, vh,
                       preferred_element_type=jnp.float32).reshape(R, d_k))
    ctx = jnp.concatenate(ctx_parts, axis=-1).astype(md)        # (R, D)

    attn_out = (jnp.dot(ctx, wo_ref[...], preferred_element_type=jnp.float32)
                + bo_ref[...])
    x1 = x + attn_out                               # residual (dropout = identity)

    # ---- feed-forward branch (prenorm, ReGLU via pre-split W1 halves) ----
    xn2 = _layernorm(x1, ln2_g_ref[...], ln2_b_ref[...]).astype(md)
    a = jnp.dot(xn2, w1a_ref[...], preferred_element_type=jnp.float32) + b1a_ref[...]
    b = jnp.dot(xn2, w1b_ref[...], preferred_element_type=jnp.float32) + b1b_ref[...]
    ff_in = (jnp.maximum(a, 0.0) * b).astype(md)    # ReGLU
    ff = (jnp.dot(ff_in, w2_ref[...], preferred_element_type=jnp.float32)
          + b2_ref[...])

    y = x1 + ff
    if flat:
        out_ref[...] = y.astype(out_ref.dtype)
    else:
        out_ref[...] = y.reshape(tb, seq, D).astype(out_ref.dtype)


def _tpu_budget():
    """Per-generation VMEM budget and grid policy (guarded; v7x-safe default)."""
    vmem_phys = 64 * 2**20
    try:
        info = pltpu.get_tpu_info()
        vmem_phys = int(getattr(info, "vmem_capacity_bytes", vmem_phys))
    except Exception:
        pass
    if vmem_phys >= 100 * 2**20:
        # v5e / v6e: 128 MiB VMEM, single TensorCore -> go big, 1 step is fine.
        return 112 * 2**20, False
    # v7x: 64 MiB per TC, 2 TCs -> leave headroom, keep >=2 grid steps.
    return 48 * 2**20, True


def _pick_block_batch(B, S, fits, prefer_multi_step):
    """Largest batch block whose per-step footprint fits the VMEM budget.

    Single-core chips (v5e/v6e): target ~1024 MXU rows per step (more only if
    no divisor reaches it).  v7x: target 256 rows but keep >=2 grid steps for
    the 2 TensorCores whenever each step still feeds >=128 rows.
    """
    divs = [d for d in range(1, B + 1) if B % d == 0 and fits(d)]
    if not divs:
        return 1
    rows_target = 256 if prefer_multi_step else 1024
    reaching = [d for d in divs if d * S >= rows_target]
    tb = min(reaching) if reaching else max(divs)
    if prefer_multi_step and B // tb < 2:
        for d in sorted(divs, reverse=True):
            if d < tb and B // d >= 2 and d * S >= 128:
                return d
    return tb


def transformer_block(x, params, *, n_heads, d_hidden,
                      matmul_dtype=jnp.bfloat16, block_batch=None):
    B, S, D = x.shape
    assert D % n_heads == 0
    d_k = D // n_heads

    (wq, bq, wk, bk, wv, bv, wo, bo,
     ln1_g, ln1_b, ln2_g, ln2_b, w1, b1, w2, b2) = params

    # PyTorch Linear stores (out, in) -> transpose to (in, out); matmul weights
    # cast to matmul_dtype (f32 accumulation in-kernel).  Biases / LN params
    # stay f32 as (1, N) rows so every kernel ref is >= 2-D.
    def t(w):
        return jnp.asarray(w).T.astype(matmul_dtype)

    def row(v):
        return jnp.asarray(v, jnp.float32).reshape(1, -1)

    w1 = jnp.asarray(w1)
    b1 = jnp.asarray(b1)
    weight_arrays = [
        t(wq), row(bq), t(wk), row(bk), t(wv), row(bv), t(wo), row(bo),
        row(ln1_g), row(ln1_b), row(ln2_g), row(ln2_b),
        t(w1[:d_hidden]), row(b1[:d_hidden]),      # ReGLU 'a' half
        t(w1[d_hidden:]), row(b1[d_hidden:]),      # ReGLU 'b' half
        t(w2), row(b2),
    ]
    weight_bytes = sum(int(a.size) * a.dtype.itemsize for a in weight_arrays)

    vmem_budget, prefer_multi_step = _tpu_budget()

    def step_bytes(tb):
        # Single application of bytes/elem (f32 activations), conservative
        # double-buffered weights + x/out blocks.
        R = tb * S
        act = 4 * (R * (10 * D + 3 * d_hidden) + 2 * n_heads * tb * S * S)
        io = 2 * 2 * R * D * x.dtype.itemsize
        return 2 * weight_bytes + io + act

    if block_batch is not None:
        tb = block_batch
        assert B % tb == 0, f"block_batch {tb} must divide batch {B}"
    else:
        tb = _pick_block_batch(B, S, lambda d: step_bytes(d) <= vmem_budget,
                               prefer_multi_step)

    vmem_limit = int(min(vmem_budget,
                         max(step_bytes(tb) + 4 * 2**20, 32 * 2**20)))

    # Lane-dense flat layout when the last dim is already a multiple of 128.
    flat = (D % 128 == 0) and ((tb * S) % 8 == 0)

    kernel = functools.partial(
        _transformer_block_kernel,
        n_heads=n_heads, d_k=d_k, tb=tb, seq=S, flat=flat,
        matmul_dtype=matmul_dtype,
    )

    if flat:
        x_in = x.reshape(B * S, D)
        data_block = (tb * S, D)
        data_map = lambda b: (b, 0)
        out_shape = jax.ShapeDtypeStruct((B * S, D), x.dtype)
    else:
        # TODO(synk): for D < 128 we keep the proven 3-D (tb, S, D) block
        # (masked lane stores); a lane-dense (B, S*D) layout would need an
        # in-kernel lane<->sublane reshape.
        x_in = x
        data_block = (tb, S, D)
        data_map = lambda b: (b, 0, 0)
        out_shape = jax.ShapeDtypeStruct((B, S, D), x.dtype)

    def call(single_buffer_weights):
        if single_buffer_weights:
            # Constant index_map across the grid -> a single resident copy is
            # enough; halves weight VMEM (matters most under v7x's 64 MiB).
            w_specs = [pl.BlockSpec(a.shape, lambda b: (0, 0),
                                    pipeline_mode=pl.Buffered(1))
                       for a in weight_arrays]
        else:
            w_specs = [pl.BlockSpec(a.shape, lambda b: (0, 0))
                       for a in weight_arrays]
        return pl.pallas_call(
            kernel,
            out_shape=out_shape,
            grid_spec=pltpu.PrefetchScalarGridSpec(
                num_scalar_prefetch=0,
                grid=(B // tb,),
                in_specs=[pl.BlockSpec(data_block, data_map)] + w_specs,
                out_specs=pl.BlockSpec(data_block, data_map),
            ),
            compiler_params=pltpu.CompilerParams(
                dimension_semantics=("parallel",),
                vmem_limit_bytes=vmem_limit,
            ),
        )(x_in, *weight_arrays)

    try:
        out = call(True)
    except Exception:
        # Graceful degradation if this Pallas build rejects single-buffering.
        out = call(False)
    return out.reshape(B, S, D)


def transformer_block_ref(x, params, *, n_heads, d_hidden):
    """Pure-JAX f32 reference mirroring the PyTorch forward (eval mode)."""
    (wq, bq, wk, bk, wv, bv, wo, bo,
     ln1_g, ln1_b, ln2_g, ln2_b, w1, b1, w2, b2) = params
    B, S, D = x.shape
    d_k = D // n_heads

    def ln(v, g, b_):
        mu = v.mean(-1, keepdims=True)
        var = ((v - mu) ** 2).mean(-1, keepdims=True)
        return (v - mu) / jnp.sqrt(var + 1e-5) * g + b_

    xn = ln(x, ln1_g, ln1_b)
    q = xn @ wq.T + bq
    k = xn @ wk.T + bk
    v = xn @ wv.T + bv
    q = q.reshape(B, S, n_heads, d_k).transpose(0, 2, 1, 3)
    k = k.reshape(B, S, n_heads, d_k).transpose(0, 2, 1, 3)
    v = v.reshape(B, S, n_heads, d_k).transpose(0, 2, 1, 3)
    scores = jnp.einsum("bhqd,bhkd->bhqk", q, k) / float(d_k ** 0.5)
    scores = scores - scores.max(-1, keepdims=True)
    attn = jax.nn.softmax(scores, axis=-1)
    ctx = jnp.einsum("bhqk,bhkd->bhqd", attn, v).transpose(0, 2, 1, 3).reshape(B, S, D)
    x1 = x + (ctx @ wo.T + bo)
    xn2 = ln(x1, ln2_g, ln2_b)
    h = xn2 @ w1.T + b1
    a, b_ = h[..., :d_hidden], h[..., d_hidden:]
    ff = (jnp.maximum(a, 0.0) * b_) @ w2.T + b2
    return x1 + ff


def init_params(key, d_model, d_hidden):
    ks = jax.random.split(key, 12)

    def lin(k, fan_in, fan_out):
        bound = 1.0 / math.sqrt(fan_in)
        kw, kb = jax.random.split(k)
        w = jax.random.uniform(kw, (fan_out, fan_in), jnp.float32, -bound, bound)
        b = jax.random.uniform(kb, (fan_out,), jnp.float32, -bound, bound)
        return w, b

    wq, bq = lin(ks[0], d_model, d_model)
    wk, bk = lin(ks[1], d_model, d_model)
    wv, bv = lin(ks[2], d_model, d_model)
    wo, bo = lin(ks[3], d_model, d_model)
    ln1_g = jnp.ones((d_model,), jnp.float32)
    ln1_b = jnp.zeros((d_model,), jnp.float32)
    ln2_g = jnp.ones((d_model,), jnp.float32)
    ln2_b = jnp.zeros((d_model,), jnp.float32)
    w1, b1 = lin(ks[4], d_model, 2 * d_hidden)      # ReGLU -> 2*d_hidden
    w2, b2 = lin(ks[5], d_hidden, d_model)
    return (wq, bq, wk, bk, wv, bv, wo, bo,
            ln1_g, ln1_b, ln2_g, ln2_b, w1, b1, w2, b2)


if __name__ == "__main__":
    key = jax.random.PRNGKey(0)
    kx, kp, kx2, kp2 = jax.random.split(key, 4)

    # --- Config A: module's small shapes (D=32 < 128 -> 3-D block path) ---
    B, S, D = 2, 8, 32
    n_heads, d_hidden = 4, 64
    x = jax.random.normal(kx, (B, S, D), jnp.float32)
    params = init_params(kp, D, d_hidden)
    ref = transformer_block_ref(x, params, n_heads=n_heads, d_hidden=d_hidden)

    # f32 matmul operands.
    out_f32 = transformer_block(x, params, n_heads=n_heads, d_hidden=d_hidden,
                                matmul_dtype=jnp.float32)
    out_f32 = jax.block_until_ready(out_f32)
    assert out_f32.shape == (B, S, D)
    err = float(jnp.max(jnp.abs(out_f32 - ref)))
    assert jnp.allclose(out_f32, ref, atol=1e-2, rtol=1e-2), err

    # Default path: bf16 matmul operands, f32 accumulation (MXU fast path).
    out_bf16 = transformer_block(x, params, n_heads=n_heads, d_hidden=d_hidden)
    out_bf16 = jax.block_until_ready(out_bf16)
    err_bf16 = float(jnp.max(jnp.abs(out_bf16 - ref)))
    assert jnp.allclose(out_bf16, ref, atol=0.2, rtol=0.2), err_bf16

    # --- Config B: lane-dense flat path (D multiple of 128) ---
    B2, S2, D2 = 4, 8, 128
    n_heads2, d_hidden2 = 4, 96
    x2 = jax.random.normal(kx2, (B2, S2, D2), jnp.float32)
    params2 = init_params(kp2, D2, d_hidden2)
    ref2 = transformer_block_ref(x2, params2, n_heads=n_heads2, d_hidden=d_hidden2)
    out2 = transformer_block(x2, params2, n_heads=n_heads2, d_hidden=d_hidden2)
    out2 = jax.block_until_ready(out2)
    err2 = float(jnp.max(jnp.abs(out2 - ref2)))
    assert jnp.allclose(out2, ref2, atol=0.25, rtol=0.25), err2

    # TODO(synk): dropout is treated as eval-mode identity (no RNG path in-kernel);
    # the torch NaN-rescue branch after softmax is unreachable in eval mode and is omitted.
    print("KERNEL_OK")
</pallas_src>

<mosaic_0001>
module attributes {stable_mosaic.version = 11 : i64} {
  func.func @_transformer_block_kernel(%arg0: i32, %arg1: memref<2x8x32xf32, #tpu.memory_space<vmem>>, %arg2: memref<32x32xf32, #tpu.memory_space<vmem>>, %arg3: memref<1x32xf32, #tpu.memory_space<vmem>>, %arg4: memref<32x32xf32, #tpu.memory_space<vmem>>, %arg5: memref<1x32xf32, #tpu.memory_space<vmem>>, %arg6: memref<32x32xf32, #tpu.memory_space<vmem>>, %arg7: memref<1x32xf32, #tpu.memory_space<vmem>>, %arg8: memref<32x32xf32, #tpu.memory_space<vmem>>, %arg9: memref<1x32xf32, #tpu.memory_space<vmem>>, %arg10: memref<1x32xf32, #tpu.memory_space<vmem>>, %arg11: memref<1x32xf32, #tpu.memory_space<vmem>>, %arg12: memref<1x32xf32, #tpu.memory_space<vmem>>, %arg13: memref<1x32xf32, #tpu.memory_space<vmem>>, %arg14: memref<32x64xf32, #tpu.memory_space<vmem>>, %arg15: memref<1x64xf32, #tpu.memory_space<vmem>>, %arg16: memref<32x64xf32, #tpu.memory_space<vmem>>, %arg17: memref<1x64xf32, #tpu.memory_space<vmem>>, %arg18: memref<64x32xf32, #tpu.memory_space<vmem>>, %arg19: memref<1x32xf32, #tpu.memory_space<vmem>>, %arg20: memref<2x8x32xf32, #tpu.memory_space<vmem>>) attributes {dimension_semantics = [#tpu.dimension_semantics<parallel>], iteration_bounds = array<i64: 1>, scalar_prefetch = 0 : i64, scratch_operands = 0 : i64, tpu.core_type = #tpu.core_type<tc>, window_params = [{transform_indices = @transform_0, window_bounds = array<i64: 2, 8, 32>}, {pipeline_mode = #tpu.pipeline_mode<synchronous>, transform_indices = @transform_1, window_bounds = array<i64: 32, 32>}, {pipeline_mode = #tpu.pipeline_mode<synchronous>, transform_indices = @transform_2, window_bounds = array<i64: 1, 32>}, {pipeline_mode = #tpu.pipeline_mode<synchronous>, transform_indices = @transform_3, window_bounds = array<i64: 32, 32>}, {pipeline_mode = #tpu.pipeline_mode<synchronous>, transform_indices = @transform_4, window_bounds = array<i64: 1, 32>}, {pipeline_mode = #tpu.pipeline_mode<synchronous>, transform_indices = @transform_5, window_bounds = array<i64: 32, 32>}, {pipeline_mode = #tpu.pipeline_mode<synchronous>, transform_indices = @transform_6, window_bounds = array<i64: 1, 32>}, {pipeline_mode = #tpu.pipeline_mode<synchronous>, transform_indices = @transform_7, window_bounds = array<i64: 32, 32>}, {pipeline_mode = #tpu.pipeline_mode<synchronous>, transform_indices = @transform_8, window_bounds = array<i64: 1, 32>}, {pipeline_mode = #tpu.pipeline_mode<synchronous>, transform_indices = @transform_9, window_bounds = array<i64: 1, 32>}, {pipeline_mode = #tpu.pipeline_mode<synchronous>, transform_indices = @transform_10, window_bounds = array<i64: 1, 32>}, {pipeline_mode = #tpu.pipeline_mode<synchronous>, transform_indices = @transform_11, window_bounds = array<i64: 1, 32>}, {pipeline_mode = #tpu.pipeline_mode<synchronous>, transform_indices = @transform_12, window_bounds = array<i64: 1, 32>}, {pipeline_mode = #tpu.pipeline_mode<synchronous>, transform_indices = @transform_13, window_bounds = array<i64: 32, 64>}, {pipeline_mode = #tpu.pipeline_mode<synchronous>, transform_indices = @transform_14, window_bounds = array<i64: 1, 64>}, {pipeline_mode = #tpu.pipeline_mode<synchronous>, transform_indices = @transform_15, window_bounds = array<i64: 32, 64>}, {pipeline_mode = #tpu.pipeline_mode<synchronous>, transform_indices = @transform_16, window_bounds = array<i64: 1, 64>}, {pipeline_mode = #tpu.pipeline_mode<synchronous>, transform_indices = @transform_17, window_bounds = array<i64: 64, 32>}, {pipeline_mode = #tpu.pipeline_mode<synchronous>, transform_indices = @transform_18, window_bounds = array<i64: 1, 32>}, {transform_indices = @transform_19, window_bounds = array<i64: 2, 8, 32>}]} {
    %c0 = arith.constant 0 : index
    %c0_0 = arith.constant 0 : index
    %c0_1 = arith.constant 0 : index
    %0 = vector.load %arg1[%c0, %c0_0, %c0_1] : memref<2x8x32xf32, #tpu.memory_space<vmem>>, vector<2x8x32xf32>
    %1 = vector.shape_cast %0 : vector<2x8x32xf32> to vector<16x32xf32>
    %c0_2 = arith.constant 0 : index
    %c0_3 = arith.constant 0 : index
    %2 = vector.load %arg10[%c0_2, %c0_3] : memref<1x32xf32, #tpu.memory_space<vmem>>, vector<1x32xf32>
    %c0_4 = arith.constant 0 : index
    %c0_5 = arith.constant 0 : index
    %3 = vector.load %arg11[%c0_4, %c0_5] : memref<1x32xf32, #tpu.memory_space<vmem>>, vector<1x32xf32>
    %cst = arith.constant dense<0.000000e+00> : vector<16xf32>
    %4 = vector.multi_reduction <add>, %1, %cst [1] : vector<16x32xf32> to vector<16xf32>
    %5 = vector.shape_cast %4 : vector<16xf32> to vector<16x1xf32>
    %cst_6 = arith.constant 3.200000e+01 : f32
    %6 = vector.broadcast %cst_6 : f32 to vector<16x1xf32>
    %7 = arith.divf %5, %6 : vector<16x1xf32>
    %8 = vector.broadcast %7 : vector<16x1xf32> to vector<16x32xf32>
    %9 = arith.subf %1, %8 : vector<16x32xf32>
    %10 = arith.mulf %9, %9 : vector<16x32xf32>
    %cst_7 = arith.constant dense<0.000000e+00> : vector<16xf32>
    %11 = vector.multi_reduction <add>, %10, %cst_7 [1] : vector<16x32xf32> to vector<16xf32>
    %12 = vector.shape_cast %11 : vector<16xf32> to vector<16x1xf32>
    %cst_8 = arith.constant 3.200000e+01 : f32
    %13 = vector.broadcast %cst_8 : f32 to vector<16x1xf32>
    %14 = arith.divf %12, %13 : vector<16x1xf32>
    %15 = vector.broadcast %7 : vector<16x1xf32> to vector<16x32xf32>
    %16 = arith.subf %1, %15 : vector<16x32xf32>
    %cst_9 = arith.constant 9.99999974E-6 : f32
    %17 = vector.broadcast %cst_9 : f32 to vector<16x1xf32>
    %18 = arith.addf %14, %17 : vector<16x1xf32>
    %19 = math.rsqrt %18 : vector<16x1xf32>
    %20 = vector.broadcast %19 : vector<16x1xf32> to vector<16x32xf32>
    %21 = arith.mulf %16, %20 : vector<16x32xf32>
    %22 = vector.broadcast %2 : vector<1x32xf32> to vector<16x32xf32>
    %23 = arith.mulf %21, %22 : vector<16x32xf32>
    %24 = vector.broadcast %3 : vector<1x32xf32> to vector<16x32xf32>
    %25 = arith.addf %23, %24 : vector<16x32xf32>
    %c0_10 = arith.constant 0 : index
    %c0_11 = arith.constant 0 : index
    %26 = vector.load %arg2[%c0_10, %c0_11] : memref<32x32xf32, #tpu.memory_space<vmem>>, vector<32x32xf32>
    %cst_12 = arith.constant dense<0.000000e+00> : vector<16x32xf32>
    %27 = tpu.matmul %25, %26, %cst_12 {dimension_numbers = #tpu.dot_dimension_numbers<[1], [0], [0], [1], [0, 0, 1, 1], [], []>} : vector<16x32xf32>, vector<32x32xf32>, vector<16x32xf32> -> vector<16x32xf32>
    %c0_13 = arith.constant 0 : index
    %c0_14 = arith.constant 0 : index
    %28 = vector.load %arg3[%c0_13, %c0_14] : memref<1x32xf32, #tpu.memory_space<vmem>>, vector<1x32xf32>
    %29 = vector.broadcast %28 : vector<1x32xf32> to vector<16x32xf32>
    %30 = arith.addf %27, %29 : vector<16x32xf32>
    %c0_15 = arith.constant 0 : index
    %c0_16 = arith.constant 0 : index
    %31 = vector.load %arg4[%c0_15, %c0_16] : memref<32x32xf32, #tpu.memory_space<vmem>>, vector<32x32xf32>
    %cst_17 = arith.constant dense<0.000000e+00> : vector<16x32xf32>
    %32 = tpu.matmul %25, %31, %cst_17 {dimension_numbers = #tpu.dot_dimension_numbers<[1], [0], [0], [1], [0, 0, 1, 1], [], []>} : vector<16x32xf32>, vector<32x32xf32>, vector<16x32xf32> -> vector<16x32xf32>
    %c0_18 = arith.constant 0 : index
    %c0_19 = arith.constant 0 : index
    %33 = vector.load %arg5[%c0_18, %c0_19] : memref<1x32xf32, #tpu.memory_space<vmem>>, vector<1x32xf32>
    %34 = vector.broadcast %33 : vector<1x32xf32> to vector<16x32xf32>
    %35 = arith.addf %32, %34 : vector<16x32xf32>
    %c0_20 = arith.constant 0 : index
    %c0_21 = arith.constant 0 : index
    %36 = vector.load %arg6[%c0_20, %c0_21] : memref<32x32xf32, #tpu.memory_space<vmem>>, vector<32x32xf32>
    %cst_22 = arith.constant dense<0.000000e+00> : vector<16x32xf32>
    %37 = tpu.matmul %25, %36, %cst_22 {dimension_numbers = #tpu.dot_dimension_numbers<[1], [0], [0], [1], [0, 0, 1, 1], [], []>} : vector<16x32xf32>, vector<32x32xf32>, vector<16x32xf32> -> vector<16x32xf32>
    %c0_23 = arith.constant 0 : index
    %c0_24 = arith.constant 0 : index
    %38 = vector.load %arg7[%c0_23, %c0_24] : memref<1x32xf32, #tpu.memory_space<vmem>>, vector<1x32xf32>
    %39 = vector.broadcast %38 : vector<1x32xf32> to vector<16x32xf32>
    %40 = arith.addf %37, %39 : vector<16x32xf32>
    %cst_25 = arith.constant 0.353553385 : f32
    %41 = vector.broadcast %cst_25 : f32 to vector<16x32xf32>
    %42 = arith.mulf %30, %41 : vector<16x32xf32>
    %43 = vector.extract_strided_slice %42 {offsets = [0, 0], sizes = [16, 8], strides = [1, 1]} : vector<16x32xf32> to vector<16x8xf32>
    %44 = vector.shape_cast %43 : vector<16x8xf32> to vector<2x8x8xf32>
    %45 = vector.extract_strided_slice %35 {offsets = [0, 0], sizes = [16, 8], strides = [1, 1]} : vector<16x32xf32> to vector<16x8xf32>
    %46 = vector.shape_cast %45 : vector<16x8xf32> to vector<2x8x8xf32>
    %47 = vector.extract_strided_slice %40 {offsets = [0, 0], sizes = [16, 8], strides = [1, 1]} : vector<16x32xf32> to vector<16x8xf32>
    %48 = vector.shape_cast %47 : vector<16x8xf32> to vector<2x8x8xf32>
    "tpu.trace_start"() <{level = 10 : i32, message = "bqd,bkd->bqk"}> : () -> ()
    %cst_26 = arith.constant dense<0.000000e+00> : vector<2x8x8xf32>
    %49 = tpu.matmul %44, %46, %cst_26 {dimension_numbers = #tpu.dot_dimension_numbers<[2], [2], [1], [1], [0, 0, 0, 1, 1, 1], [0], [0]>} : vector<2x8x8xf32>, vector<2x8x8xf32>, vector<2x8x8xf32> -> vector<2x8x8xf32>
    "tpu.trace_stop"() : () -> ()
    %cst_27 = arith.constant dense<0xFF800000> : vector<2x8xf32>
    %50 = vector.multi_reduction <maximumf>, %49, %cst_27 [2] : vector<2x8x8xf32> to vector<2x8xf32>
    %51 = vector.shape_cast %50 : vector<2x8xf32> to vector<2x8x1xf32>
    %52 = vector.broadcast %51 : vector<2x8x1xf32> to vector<2x8x8xf32>
    %53 = arith.subf %49, %52 : vector<2x8x8xf32>
    %54 = math.exp %53 : vector<2x8x8xf32>
    %cst_28 = arith.constant dense<0.000000e+00> : vector<2x8xf32>
    %55 = vector.multi_reduction <add>, %54, %cst_28 [2] : vector<2x8x8xf32> to vector<2x8xf32>
    %56 = vector.shape_cast %55 : vector<2x8xf32> to vector<2x8x1xf32>
    %57 = tpu.reciprocal %56 {approx = true} : vector<2x8x1xf32> -> vector<2x8x1xf32>
    %58 = vector.broadcast %57 : vector<2x8x1xf32> to vector<2x8x8xf32>
    %59 = arith.mulf %54, %58 : vector<2x8x8xf32>
    "tpu.trace_start"() <{level = 10 : i32, message = "bqk,bkd->bqd"}> : () -> ()
    %cst_29 = arith.constant dense<0.000000e+00> : vector<2x8x8xf32>
    %60 = tpu.matmul %59, %48, %cst_29 {dimension_numbers = #tpu.dot_dimension_numbers<[2], [1], [1], [2], [0, 0, 0, 1, 1, 2], [0], [0]>} : vector<2x8x8xf32>, vector<2x8x8xf32>, vector<2x8x8xf32> -> vector<2x8x8xf32>
    "tpu.trace_stop"() : () -> ()
    %61 = vector.shape_cast %60 : vector<2x8x8xf32> to vector<16x8xf32>
    %62 = vector.extract_strided_slice %42 {offsets = [0, 8], sizes = [16, 8], strides = [1, 1]} : vector<16x32xf32> to vector<16x8xf32>
    %63 = vector.shape_cast %62 : vector<16x8xf32> to vector<2x8x8xf32>
    %64 = vector.extract_strided_slice %35 {offsets = [0, 8], sizes = [16, 8], strides = [1, 1]} : vector<16x32xf32> to vector<16x8xf32>
    %65 = vector.shape_cast %64 : vector<16x8xf32> to vector<2x8x8xf32>
    %66 = vector.extract_strided_slice %40 {offsets = [0, 8], sizes = [16, 8], strides = [1, 1]} : vector<16x32xf32> to vector<16x8xf32>
    %67 = vector.shape_cast %66 : vector<16x8xf32> to vector<2x8x8xf32>
    "tpu.trace_start"() <{level = 10 : i32, message = "bqd,bkd->bqk"}> : () -> ()
    %cst_30 = arith.constant dense<0.000000e+00> : vector<2x8x8xf32>
    %68 = tpu.matmul %63, %65, %cst_30 {dimension_numbers = #tpu.dot_dimension_numbers<[2], [2], [1], [1], [0, 0, 0, 1, 1, 1], [0], [0]>} : vector<2x8x8xf32>, vector<2x8x8xf32>, vector<2x8x8xf32> -> vector<2x8x8xf32>
    "tpu.trace_stop"() : () -> ()
    %cst_31 = arith.constant dense<0xFF800000> : vector<2x8xf32>
    %69 = vector.multi_reduction <maximumf>, %68, %cst_31 [2] : vector<2x8x8xf32> to vector<2x8xf32>
    %70 = vector.shape_cast %69 : vector<2x8xf32> to vector<2x8x1xf32>
    %71 = vector.broadcast %70 : vector<2x8x1xf32> to vector<2x8x8xf32>
    %72 = arith.subf %68, %71 : vector<2x8x8xf32>
    %73 = math.exp %72 : vector<2x8x8xf32>
    %cst_32 = arith.constant dense<0.000000e+00> : vector<2x8xf32>
    %74 = vector.multi_reduction <add>, %73, %cst_32 [2] : vector<2x8x8xf32> to vector<2x8xf32>
    %75 = vector.shape_cast %74 : vector<2x8xf32> to vector<2x8x1xf32>
    %76 = tpu.reciprocal %75 {approx = true} : vector<2x8x1xf32> -> vector<2x8x1xf32>
    %77 = vector.broadcast %76 : vector<2x8x1xf32> to vector<2x8x8xf32>
    %78 = arith.mulf %73, %77 : vector<2x8x8xf32>
    "tpu.trace_start"() <{level = 10 : i32, message = "bqk,bkd->bqd"}> : () -> ()
    %cst_33 = arith.constant dense<0.000000e+00> : vector<2x8x8xf32>
    %79 = tpu.matmul %78, %67, %cst_33 {dimension_numbers = #tpu.dot_dimension_numbers<[2], [1], [1], [2], [0, 0, 0, 1, 1, 2], [0], [0]>} : vector<2x8x8xf32>, vector<2x8x8xf32>, vector<2x8x8xf32> -> vector<2x8x8xf32>
    "tpu.trace_stop"() : () -> ()
    %80 = vector.shape_cast %79 : vector<2x8x8xf32> to vector<16x8xf32>
    %81 = vector.extract_strided_slice %42 {offsets = [0, 16], sizes = [16, 8], strides = [1, 1]} : vector<16x32xf32> to vector<16x8xf32>
    %82 = vector.shape_cast %81 : vector<16x8xf32> to vector<2x8x8xf32>
    %83 = vector.extract_strided_slice %35 {offsets = [0, 16], sizes = [16, 8], strides = [1, 1]} : vector<16x32xf32> to vector<16x8xf32>
    %84 = vector.shape_cast %83 : vector<16x8xf32> to vector<2x8x8xf32>
    %85 = vector.extract_strided_slice %40 {offsets = [0, 16], sizes = [16, 8], strides = [1, 1]} : vector<16x32xf32> to vector<16x8xf32>
    %86 = vector.shape_cast %85 : vector<16x8xf32> to vector<2x8x8xf32>
    "tpu.trace_start"() <{level = 10 : i32, message = "bqd,bkd->bqk"}> : () -> ()
    %cst_34 = arith.constant dense<0.000000e+00> : vector<2x8x8xf32>
    %87 = tpu.matmul %82, %84, %cst_34 {dimension_numbers = #tpu.dot_dimension_numbers<[2], [2], [1], [1], [0, 0, 0, 1, 1, 1], [0], [0]>} : vector<2x8x8xf32>, vector<2x8x8xf32>, vector<2x8x8xf32> -> vector<2x8x8xf32>
    "tpu.trace_stop"() : () -> ()
    %cst_35 = arith.constant dense<0xFF800000> : vector<2x8xf32>
    %88 = vector.multi_reduction <maximumf>, %87, %cst_35 [2] : vector<2x8x8xf32> to vector<2x8xf32>
    %89 = vector.shape_cast %88 : vector<2x8xf32> to vector<2x8x1xf32>
    %90 = vector.broadcast %89 : vector<2x8x1xf32> to vector<2x8x8xf32>
    %91 = arith.subf %87, %90 : vector<2x8x8xf32>
    %92 = math.exp %91 : vector<2x8x8xf32>
    %cst_36 = arith.constant dense<0.000000e+00> : vector<2x8xf32>
    %93 = vector.multi_reduction <add>, %92, %cst_36 [2] : vector<2x8x8xf32> to vector<2x8xf32>
    %94 = vector.shape_cast %93 : vector<2x8xf32> to vector<2x8x1xf32>
    %95 = tpu.reciprocal %94 {approx = true} : vector<2x8x1xf32> -> vector<2x8x1xf32>
    %96 = vector.broadcast %95 : vector<2x8x1xf32> to vector<2x8x8xf32>
    %97 = arith.mulf %92, %96 : vector<2x8x8xf32>
    "tpu.trace_start"() <{level = 10 : i32, message = "bqk,bkd->bqd"}> : () -> ()
    %cst_37 = arith.constant dense<0.000000e+00> : vector<2x8x8xf32>
    %98 = tpu.matmul %97, %86, %cst_37 {dimension_numbers = #tpu.dot_dimension_numbers<[2], [1], [1], [2], [0, 0, 0, 1, 1, 2], [0], [0]>} : vector<2x8x8xf32>, vector<2x8x8xf32>, vector<2x8x8xf32> -> vector<2x8x8xf32>
    "tpu.trace_stop"() : () -> ()
    %99 = vector.shape_cast %98 : vector<2x8x8xf32> to vector<16x8xf32>
    %100 = vector.extract_strided_slice %42 {offsets = [0, 24], sizes = [16, 8], strides = [1, 1]} : vector<16x32xf32> to vector<16x8xf32>
    %101 = vector.shape_cast %100 : vector<16x8xf32> to vector<2x8x8xf32>
    %102 = vector.extract_strided_slice %35 {offsets = [0, 24], sizes = [16, 8], strides = [1, 1]} : vector<16x32xf32> to vector<16x8xf32>
    %103 = vector.shape_cast %102 : vector<16x8xf32> to vector<2x8x8xf32>
    %104 = vector.extract_strided_slice %40 {offsets = [0, 24], sizes = [16, 8], strides = [1, 1]} : vector<16x32xf32> to vector<16x8xf32>
    %105 = vector.shape_cast %104 : vector<16x8xf32> to vector<2x8x8xf32>
    "tpu.trace_start"() <{level = 10 : i32, message = "bqd,bkd->bqk"}> : () -> ()
    %cst_38 = arith.constant dense<0.000000e+00> : vector<2x8x8xf32>
    %106 = tpu.matmul %101, %103, %cst_38 {dimension_numbers = #tpu.dot_dimension_numbers<[2], [2], [1], [1], [0, 0, 0, 1, 1, 1], [0], [0]>} : vector<2x8x8xf32>, vector<2x8x8xf32>, vector<2x8x8xf32> -> vector<2x8x8xf32>
    "tpu.trace_stop"() : () -> ()
    %cst_39 = arith.constant dense<0xFF800000> : vector<2x8xf32>
    %107 = vector.multi_reduction <maximumf>, %106, %cst_39 [2] : vector<2x8x8xf32> to vector<2x8xf32>
    %108 = vector.shape_cast %107 : vector<2x8xf32> to vector<2x8x1xf32>
    %109 = vector.broadcast %108 : vector<2x8x1xf32> to vector<2x8x8xf32>
    %110 = arith.subf %106, %109 : vector<2x8x8xf32>
    %111 = math.exp %110 : vector<2x8x8xf32>
    %cst_40 = arith.constant dense<0.000000e+00> : vector<2x8xf32>
    %112 = vector.multi_reduction <add>, %111, %cst_40 [2] : vector<2x8x8xf32> to vector<2x8xf32>
    %113 = vector.shape_cast %112 : vector<2x8xf32> to vector<2x8x1xf32>
    %114 = tpu.reciprocal %113 {approx = true} : vector<2x8x1xf32> -> vector<2x8x1xf32>
    %115 = vector.broadcast %114 : vector<2x8x1xf32> to vector<2x8x8xf32>
    %116 = arith.mulf %111, %115 : vector<2x8x8xf32>
    "tpu.trace_start"() <{level = 10 : i32, message = "bqk,bkd->bqd"}> : () -> ()
    %cst_41 = arith.constant dense<0.000000e+00> : vector<2x8x8xf32>
    %117 = tpu.matmul %116, %105, %cst_41 {dimension_numbers = #tpu.dot_dimension_numbers<[2], [1], [1], [2], [0, 0, 0, 1, 1, 2], [0], [0]>} : vector<2x8x8xf32>, vector<2x8x8xf32>, vector<2x8x8xf32> -> vector<2x8x8xf32>
    "tpu.trace_stop"() : () -> ()
    %118 = vector.shape_cast %117 : vector<2x8x8xf32> to vector<16x8xf32>
    %119 = tpu.concatenate %61, %80, %99, %118 in 1 : vector<16x8xf32>, vector<16x8xf32>, vector<16x8xf32>, vector<16x8xf32> -> vector<16x32xf32>
    %c0_42 = arith.constant 0 : index
    %c0_43 = arith.constant 0 : index
    %120 = vector.load %arg8[%c0_42, %c0_43] : memref<32x32xf32, #tpu.memory_space<vmem>>, vector<32x32xf32>
    %cst_44 = arith.constant dense<0.000000e+00> : vector<16x32xf32>
    %121 = tpu.matmul %119, %120, %cst_44 {dimension_numbers = #tpu.dot_dimension_numbers<[1], [0], [0], [1], [0, 0, 1, 1], [], []>} : vector<16x32xf32>, vector<32x32xf32>, vector<16x32xf32> -> vector<16x32xf32>
    %c0_45 = arith.constant 0 : index
    %c0_46 = arith.constant 0 : index
    %122 = vector.load %arg9[%c0_45, %c0_46] : memref<1x32xf32, #tpu.memory_space<vmem>>, vector<1x32xf32>
    %123 = vector.broadcast %122 : vector<1x32xf32> to vector<16x32xf32>
    %124 = arith.addf %121, %123 : vector<16x32xf32>
    %125 = arith.addf %1, %124 : vector<16x32xf32>
    %c0_47 = arith.constant 0 : index
    %c0_48 = arith.constant 0 : index
    %126 = vector.load %arg12[%c0_47, %c0_48] : memref<1x32xf32, #tpu.memory_space<vmem>>, vector<1x32xf32>
    %c0_49 = arith.constant 0 : index
    %c0_50 = arith.constant 0 : index
    %127 = vector.load %arg13[%c0_49, %c0_50] : memref<1x32xf32, #tpu.memory_space<vmem>>, vector<1x32xf32>
    %cst_51 = arith.constant dense<0.000000e+00> : vector<16xf32>
    %128 = vector.multi_reduction <add>, %125, %cst_51 [1] : vector<16x32xf32> to vector<16xf32>
    %129 = vector.shape_cast %128 : vector<16xf32> to vector<16x1xf32>
    %cst_52 = arith.constant 3.200000e+01 : f32
    %130 = vector.broadcast %cst_52 : f32 to vector<16x1xf32>
    %131 = arith.divf %129, %130 : vector<16x1xf32>
    %132 = vector.broadcast %131 : vector<16x1xf32> to vector<16x32xf32>
    %133 = arith.subf %125, %132 : vector<16x32xf32>
    %134 = arith.mulf %133, %133 : vector<16x32xf32>
    %cst_53 = arith.constant dense<0.000000e+00> : vector<16xf32>
    %135 = vector.multi_reduction <add>, %134, %cst_53 [1] : vector<16x32xf32> to vector<16xf32>
    %136 = vector.shape_cast %135 : vector<16xf32> to vector<16x1xf32>
    %cst_54 = arith.constant 3.200000e+01 : f32
    %137 = vector.broadcast %cst_54 : f32 to vector<16x1xf32>
    %138 = arith.divf %136, %137 : vector<16x1xf32>
    %139 = vector.broadcast %131 : vector<16x1xf32> to vector<16x32xf32>
    %140 = arith.subf %125, %139 : vector<16x32xf32>
    %cst_55 = arith.constant 9.99999974E-6 : f32
    %141 = vector.broadcast %cst_55 : f32 to vector<16x1xf32>
    %142 = arith.addf %138, %141 : vector<16x1xf32>
    %143 = math.rsqrt %142 : vector<16x1xf32>
    %144 = vector.broadcast %143 : vector<16x1xf32> to vector<16x32xf32>
    %145 = arith.mulf %140, %144 : vector<16x32xf32>
    %146 = vector.broadcast %126 : vector<1x32xf32> to vector<16x32xf32>
    %147 = arith.mulf %145, %146 : vector<16x32xf32>
    %148 = vector.broadcast %127 : vector<1x32xf32> to vector<16x32xf32>
    %149 = arith.addf %147, %148 : vector<16x32xf32>
    %c0_56 = arith.constant 0 : index
    %c0_57 = arith.constant 0 : index
    %150 = vector.load %arg14[%c0_56, %c0_57] : memref<32x64xf32, #tpu.memory_space<vmem>>, vector<32x64xf32>
    %cst_58 = arith.constant dense<0.000000e+00> : vector<16x64xf32>
    %151 = tpu.matmul %149, %150, %cst_58 {dimension_numbers = #tpu.dot_dimension_numbers<[1], [0], [0], [1], [0, 0, 1, 1], [], []>} : vector<16x32xf32>, vector<32x64xf32>, vector<16x64xf32> -> vector<16x64xf32>
    %c0_59 = arith.constant 0 : index
    %c0_60 = arith.constant 0 : index
    %152 = vector.load %arg15[%c0_59, %c0_60] : memref<1x64xf32, #tpu.memory_space<vmem>>, vector<1x64xf32>
    %153 = vector.broadcast %152 : vector<1x64xf32> to vector<16x64xf32>
    %154 = arith.addf %151, %153 : vector<16x64xf32>
    %c0_61 = arith.constant 0 : index
    %c0_62 = arith.constant 0 : index
    %155 = vector.load %arg16[%c0_61, %c0_62] : memref<32x64xf32, #tpu.memory_space<vmem>>, vector<32x64xf32>
    %cst_63 = arith.constant dense<0.000000e+00> : vector<16x64xf32>
    %156 = tpu.matmul %149, %155, %cst_63 {dimension_numbers = #tpu.dot_dimension_numbers<[1], [0], [0], [1], [0, 0, 1, 1], [], []>} : vector<16x32xf32>, vector<32x64xf32>, vector<16x64xf32> -> vector<16x64xf32>
    %c0_64 = arith.constant 0 : index
    %c0_65 = arith.constant 0 : index
    %157 = vector.load %arg17[%c0_64, %c0_65] : memref<1x64xf32, #tpu.memory_space<vmem>>, vector<1x64xf32>
    %158 = vector.broadcast %157 : vector<1x64xf32> to vector<16x64xf32>
    %159 = arith.addf %156, %158 : vector<16x64xf32>
    %cst_66 = arith.constant 0.000000e+00 : f32
    %160 = vector.broadcast %cst_66 : f32 to vector<16x64xf32>
    %161 = arith.maximumf %154, %160 : vector<16x64xf32>
    %162 = arith.mulf %161, %159 : vector<16x64xf32>
    %c0_67 = arith.constant 0 : index
    %c0_68 = arith.constant 0 : index
    %163 = vector.load %arg18[%c0_67, %c0_68] : memref<64x32xf32, #tpu.memory_space<vmem>>, vector<64x32xf32>
    %cst_69 = arith.constant dense<0.000000e+00> : vector<16x32xf32>
    %164 = tpu.matmul %162, %163, %cst_69 {dimension_numbers = #tpu.dot_dimension_numbers<[1], [0], [0], [1], [0, 0, 1, 1], [], []>} : vector<16x64xf32>, vector<64x32xf32>, vector<16x32xf32> -> vector<16x32xf32>
    %c0_70 = arith.constant 0 : index
    %c0_71 = arith.constant 0 : index
    %165 = vector.load %arg19[%c0_70, %c0_71] : memref<1x32xf32, #tpu.memory_space<vmem>>, vector<1x32xf32>
    %166 = vector.broadcast %165 : vector<1x32xf32> to vector<16x32xf32>
    %167 = arith.addf %164, %166 : vector<16x32xf32>
    %168 = arith.addf %125, %167 : vector<16x32xf32>
    %169 = vector.shape_cast %168 : vector<16x32xf32> to vector<2x8x32xf32>
    %c0_72 = arith.constant 0 : index
    %c0_73 = arith.constant 0 : index
    %c0_74 = arith.constant 0 : index
    %170 = vector.load %arg20[%c0_72, %c0_73, %c0_74] : memref<2x8x32xf32, #tpu.memory_space<vmem>>, vector<2x8x32xf32>
    tpu.vector_store %arg20[%c0_72, %c0_73, %c0_74], %169 {strides = array<i32>} : memref<2x8x32xf32, #tpu.memory_space<vmem>>, vector<2x8x32xf32>,
    return
  }
  func.func @transform_0(%arg0: i32) -> (i32, i32, i32) {
    %c0_i32 = arith.constant 0 : i32
    %c0_i32_0 = arith.constant 0 : i32
    %c0_i32_1 = arith.constant 0 : i32
    return %arg0, %c0_i32, %c0_i32_0 : i32, i32, i32
  }
  func.func @transform_1(%arg0: i32) -> (i32, i32) {
    %c0_i32 = arith.constant 0 : i32
    %c0_i32_0 = arith.constant 0 : i32
    %c0_i32_1 = arith.constant 0 : i32
    return %c0_i32, %c0_i32_0 : i32, i32
  }
  func.func @transform_2(%arg0: i32) -> (i32, i32) {
    %c0_i32 = arith.constant 0 : i32
    %c0_i32_0 = arith.constant 0 : i32
    %c0_i32_1 = arith.constant 0 : i32
    return %c0_i32, %c0_i32_0 : i32, i32
  }
  func.func @transform_3(%arg0: i32) -> (i32, i32) {
    %c0_i32 = arith.constant 0 : i32
    %c0_i32_0 = arith.constant 0 : i32
    %c0_i32_1 = arith.constant 0 : i32
    return %c0_i32, %c0_i32_0 : i32, i32
  }
  func.func @transform_4(%arg0: i32) -> (i32, i32) {
    %c0_i32 = arith.constant 0 : i32
    %c0_i32_0 = arith.constant 0 : i32
    %c0_i32_1 = arith.constant 0 : i32
    return %c0_i32, %c0_i32_0 : i32, i32
  }
  func.func @transform_5(%arg0: i32) -> (i32, i32) {
    %c0_i32 = arith.constant 0 : i32
    %c0_i32_0 = arith.constant 0 : i32
    %c0_i32_1 = arith.constant 0 : i32
    return %c0_i32, %c0_i32_0 : i32, i32
  }
  func.func @transform_6(%arg0: i32) -> (i32, i32) {
    %c0_i32 = arith.constant 0 : i32
    %c0_i32_0 = arith.constant 0 : i32
    %c0_i32_1 = arith.constant 0 : i32
    return %c0_i32, %c0_i32_0 : i32, i32
  }
  func.func @transform_7(%arg0: i32) -> (i32, i32) {
    %c0_i32 = arith.constant 0 : i32
    %c0_i32_0 = arith.constant 0 : i32
    %c0_i32_1 = arith.constant 0 : i32
    return %c0_i32, %c0_i32_0 : i32, i32
  }
  func.func @transform_8(%arg0: i32) -> (i32, i32) {
    %c0_i32 = arith.constant 0 : i32
    %c0_i32_0 = arith.constant 0 : i32
    %c0_i32_1 = arith.constant 0 : i32
    return %c0_i32, %c0_i32_0 : i32, i32
  }
  func.func @transform_9(%arg0: i32) -> (i32, i32) {
    %c0_i32 = arith.constant 0 : i32
    %c0_i32_0 = arith.constant 0 : i32
    %c0_i32_1 = arith.constant 0 : i32
    return %c0_i32, %c0_i32_0 : i32, i32
  }
  func.func @transform_10(%arg0: i32) -> (i32, i32) {
    %c0_i32 = arith.constant 0 : i32
    %c0_i32_0 = arith.constant 0 : i32
    %c0_i32_1 = arith.constant 0 : i32
    return %c0_i32, %c0_i32_0 : i32, i32
  }
  func.func @transform_11(%arg0: i32) -> (i32, i32) {
    %c0_i32 = arith.constant 0 : i32
    %c0_i32_0 = arith.constant 0 : i32
    %c0_i32_1 = arith.constant 0 : i32
    return %c0_i32, %c0_i32_0 : i32, i32
  }
  func.func @transform_12(%arg0: i32) -> (i32, i32) {
    %c0_i32 = arith.constant 0 : i32
    %c0_i32_0 = arith.constant 0 : i32
    %c0_i32_1 = arith.constant 0 : i32
    return %c0_i32, %c0_i32_0 : i32, i32
  }
  func.func @transform_13(%arg0: i32) -> (i32, i32) {
    %c0_i32 = arith.constant 0 : i32
    %c0_i32_0 = arith.constant 0 : i32
    %c0_i32_1 = arith.constant 0 : i32
    return %c0_i32, %c0_i32_0 : i32, i32
  }
  func.func @transform_14(%arg0: i32) -> (i32, i32) {
    %c0_i32 = arith.constant 0 : i32
    %c0_i32_0 = arith.constant 0 : i32
    %c0_i32_1 = arith.constant 0 : i32
    return %c0_i32, %c0_i32_0 : i32, i32
  }
  func.func @transform_15(%arg0: i32) -> (i32, i32) {
    %c0_i32 = arith.constant 0 : i32
    %c0_i32_0 = arith.constant 0 : i32
    %c0_i32_1 = arith.constant 0 : i32
    return %c0_i32, %c0_i32_0 : i32, i32
  }
  func.func @transform_16(%arg0: i32) -> (i32, i32) {
    %c0_i32 = arith.constant 0 : i32
    %c0_i32_0 = arith.constant 0 : i32
    %c0_i32_1 = arith.constant 0 : i32
    return %c0_i32, %c0_i32_0 : i32, i32
  }
  func.func @transform_17(%arg0: i32) -> (i32, i32) {
    %c0_i32 = arith.constant 0 : i32
    %c0_i32_0 = arith.constant 0 : i32
    %c0_i32_1 = arith.constant 0 : i32
    return %c0_i32, %c0_i32_0 : i32, i32
  }
  func.func @transform_18(%arg0: i32) -> (i32, i32) {
    %c0_i32 = arith.constant 0 : i32
    %c0_i32_0 = arith.constant 0 : i32
    %c0_i32_1 = arith.constant 0 : i32
    return %c0_i32, %c0_i32_0 : i32, i32
  }
  func.func @transform_19(%arg0: i32) -> (i32, i32, i32) {
    %c0_i32 = arith.constant 0 : i32
    %c0_i32_0 = arith.constant 0 : i32
    %c0_i32_1 = arith.constant 0 : i32
    return %arg0, %c0_i32, %c0_i32_0 : i32, i32, i32
  }
}

module attributes {stable_mosaic.version = 11 : i64} {
  func.func @_transformer_block_kernel(%arg0: i32, %arg1: memref<2x8x32xf32, #tpu.memory_space<vmem>>, %arg2: memref<32x32xf32, #tpu.memory_space<vmem>>, %arg3: memref<1x32xf32, #tpu.memory_space<vmem>>, %arg4: memref<32x32xf32, #tpu.memory_space<vmem>>, %arg5: memref<1x32xf32, #tpu.memory_space<vmem>>, %arg6: memref<32x32xf32, #tpu.memory_space<vmem>>, %arg7: memref<1x32xf32, #tpu.memory_space<vmem>>, %arg8: memref<32x32xf32, #tpu.memory_space<vmem>>, %arg9: memref<1x32xf32, #tpu.memory_space<vmem>>, %arg10: memref<1x32xf32, #tpu.memory_space<vmem>>, %arg11: memref<1x32xf32, #tpu.memory_space<vmem>>, %arg12: memref<1x32xf32, #tpu.memory_space<vmem>>, %arg13: memref<1x32xf32, #tpu.memory_space<vmem>>, %arg14: memref<32x64xf32, #tpu.memory_space<vmem>>, %arg15: memref<1x64xf32, #tpu.memory_space<vmem>>, %arg16: memref<32x64xf32, #tpu.memory_space<vmem>>, %arg17: memref<1x64xf32, #tpu.memory_space<vmem>>, %arg18: memref<64x32xf32, #tpu.memory_space<vmem>>, %arg19: memref<1x32xf32, #tpu.memory_space<vmem>>, %arg20: memref<2x8x32xf32, #tpu.memory_space<vmem>>) attributes {dimension_semantics = [#tpu.dimension_semantics<parallel>], iteration_bounds = array<i64: 1>, scalar_prefetch = 0 : i64, scratch_operands = 0 : i64, tpu.core_type = #tpu.core_type<tc>, window_params = [{transform_indices = @transform_0, window_bounds = array<i64: 2, 8, 32>}, {pipeline_mode = #tpu.pipeline_mode<synchronous>, transform_indices = @transform_1, window_bounds = array<i64: 32, 32>}, {pipeline_mode = #tpu.pipeline_mode<synchronous>, transform_indices = @transform_2, window_bounds = array<i64: 1, 32>}, {pipeline_mode = #tpu.pipeline_mode<synchronous>, transform_indices = @transform_3, window_bounds = array<i64: 32, 32>}, {pipeline_mode = #tpu.pipeline_mode<synchronous>, transform_indices = @transform_4, window_bounds = array<i64: 1, 32>}, {pipeline_mode = #tpu.pipeline_mode<synchronous>, transform_indices = @transform_5, window_bounds = array<i64: 32, 32>}, {pipeline_mode = #tpu.pipeline_mode<synchronous>, transform_indices = @transform_6, window_bounds = array<i64: 1, 32>}, {pipeline_mode = #tpu.pipeline_mode<synchronous>, transform_indices = @transform_7, window_bounds = array<i64: 32, 32>}, {pipeline_mode = #tpu.pipeline_mode<synchronous>, transform_indices = @transform_8, window_bounds = array<i64: 1, 32>}, {pipeline_mode = #tpu.pipeline_mode<synchronous>, transform_indices = @transform_9, window_bounds = array<i64: 1, 32>}, {pipeline_mode = #tpu.pipeline_mode<synchronous>, transform_indices = @transform_10, window_bounds = array<i64: 1, 32>}, {pipeline_mode = #tpu.pipeline_mode<synchronous>, transform_indices = @transform_11, window_bounds = array<i64: 1, 32>}, {pipeline_mode = #tpu.pipeline_mode<synchronous>, transform_indices = @transform_12, window_bounds = array<i64: 1, 32>}, {pipeline_mode = #tpu.pipeline_mode<synchronous>, transform_indices = @transform_13, window_bounds = array<i64: 32, 64>}, {pipeline_mode = #tpu.pipeline_mode<synchronous>, transform_indices = @transform_14, window_bounds = array<i64: 1, 64>}, {pipeline_mode = #tpu.pipeline_mode<synchronous>, transform_indices = @transform_15, window_bounds = array<i64: 32, 64>}, {pipeline_mode = #tpu.pipeline_mode<synchronous>, transform_indices = @transform_16, window_bounds = array<i64: 1, 64>}, {pipeline_mode = #tpu.pipeline_mode<synchronous>, transform_indices = @transform_17, window_bounds = array<i64: 64, 32>}, {pipeline_mode = #tpu.pipeline_mode<synchronous>, transform_indices = @transform_18, window_bounds = array<i64: 1, 32>}, {transform_indices = @transform_19, window_bounds = array<i64: 2, 8, 32>}]} {
    %c0 = arith.constant 0 : index
    %c0_0 = arith.constant 0 : index
    %c0_1 = arith.constant 0 : index
    %0 = vector.load %arg1[%c0, %c0_0, %c0_1] : memref<2x8x32xf32, #tpu.memory_space<vmem>>, vector<2x8x32xf32>
    %1 = vector.shape_cast %0 : vector<2x8x32xf32> to vector<16x32xf32>
    %c0_2 = arith.constant 0 : index
    %c0_3 = arith.constant 0 : index
    %2 = vector.load %arg10[%c0_2, %c0_3] : memref<1x32xf32, #tpu.memory_space<vmem>>, vector<1x32xf32>
    %c0_4 = arith.constant 0 : index
    %c0_5 = arith.constant 0 : index
    %3 = vector.load %arg11[%c0_4, %c0_5] : memref<1x32xf32, #tpu.memory_space<vmem>>, vector<1x32xf32>
    %cst = arith.constant dense<0.000000e+00> : vector<16xf32>
    %4 = vector.multi_reduction <add>, %1, %cst [1] : vector<16x32xf32> to vector<16xf32>
    %5 = vector.shape_cast %4 : vector<16xf32> to vector<16x1xf32>
    %cst_6 = arith.constant 3.200000e+01 : f32
    %6 = vector.broadcast %cst_6 : f32 to vector<16x1xf32>
    %7 = arith.divf %5, %6 : vector<16x1xf32>
    %8 = vector.broadcast %7 : vector<16x1xf32> to vector<16x32xf32>
    %9 = arith.subf %1, %8 : vector<16x32xf32>
    %10 = arith.mulf %9, %9 : vector<16x32xf32>
    %cst_7 = arith.constant dense<0.000000e+00> : vector<16xf32>
    %11 = vector.multi_reduction <add>, %10, %cst_7 [1] : vector<16x32xf32> to vector<16xf32>
    %12 = vector.shape_cast %11 : vector<16xf32> to vector<16x1xf32>
    %cst_8 = arith.constant 3.200000e+01 : f32
    %13 = vector.broadcast %cst_8 : f32 to vector<16x1xf32>
    %14 = arith.divf %12, %13 : vector<16x1xf32>
    %15 = vector.broadcast %7 : vector<16x1xf32> to vector<16x32xf32>
    %16 = arith.subf %1, %15 : vector<16x32xf32>
    %cst_9 = arith.constant 9.99999974E-6 : f32
    %17 = vector.broadcast %cst_9 : f32 to vector<16x1xf32>
    %18 = arith.addf %14, %17 : vector<16x1xf32>
    %19 = math.rsqrt %18 : vector<16x1xf32>
    %20 = vector.broadcast %19 : vector<16x1xf32> to vector<16x32xf32>
    %21 = arith.mulf %16, %20 : vector<16x32xf32>
    %22 = vector.broadcast %2 : vector<1x32xf32> to vector<16x32xf32>
    %23 = arith.mulf %21, %22 : vector<16x32xf32>
    %24 = vector.broadcast %3 : vector<1x32xf32> to vector<16x32xf32>
    %25 = arith.addf %23, %24 : vector<16x32xf32>
    %c0_10 = arith.constant 0 : index
    %c0_11 = arith.constant 0 : index
    %26 = vector.load %arg2[%c0_10, %c0_11] : memref<32x32xf32, #tpu.memory_space<vmem>>, vector<32x32xf32>
    %cst_12 = arith.constant dense<0.000000e+00> : vector<16x32xf32>
    %27 = tpu.matmul %25, %26, %cst_12 {dimension_numbers = #tpu.dot_dimension_numbers<[1], [0], [0], [1], [0, 0, 1, 1], [], []>} : vector<16x32xf32>, vector<32x32xf32>, vector<16x32xf32> -> vector<16x32xf32>
    %c0_13 = arith.constant 0 : index
    %c0_14 = arith.constant 0 : index
    %28 = vector.load %arg3[%c0_13, %c0_14] : memref<1x32xf32, #tpu.memory_space<vmem>>, vector<1x32xf32>
    %29 = vector.broadcast %28 : vector<1x32xf32> to vector<16x32xf32>
    %30 = arith.addf %27, %29 : vector<16x32xf32>
    %c0_15 = arith.constant 0 : index
    %c0_16 = arith.constant 0 : index
    %31 = vector.load %arg4[%c0_15, %c0_16] : memref<32x32xf32, #tpu.memory_space<vmem>>, vector<32x32xf32>
    %cst_17 = arith.constant dense<0.000000e+00> : vector<16x32xf32>
    %32 = tpu.matmul %25, %31, %cst_17 {dimension_numbers = #tpu.dot_dimension_numbers<[1], [0], [0], [1], [0, 0, 1, 1], [], []>} : vector<16x32xf32>, vector<32x32xf32>, vector<16x32xf32> -> vector<16x32xf32>
    %c0_18 = arith.constant 0 : index
    %c0_19 = arith.constant 0 : index
    %33 = vector.load %arg5[%c0_18, %c0_19] : memref<1x32xf32, #tpu.memory_space<vmem>>, vector<1x32xf32>
    %34 = vector.broadcast %33 : vector<1x32xf32> to vector<16x32xf32>
    %35 = arith.addf %32, %34 : vector<16x32xf32>
    %c0_20 = arith.constant 0 : index
    %c0_21 = arith.constant 0 : index
    %36 = vector.load %arg6[%c0_20, %c0_21] : memref<32x32xf32, #tpu.memory_space<vmem>>, vector<32x32xf32>
    %cst_22 = arith.constant dense<0.000000e+00> : vector<16x32xf32>
    %37 = tpu.matmul %25, %36, %cst_22 {dimension_numbers = #tpu.dot_dimension_numbers<[1], [0], [0], [1], [0, 0, 1, 1], [], []>} : vector<16x32xf32>, vector<32x32xf32>, vector<16x32xf32> -> vector<16x32xf32>
    %c0_23 = arith.constant 0 : index
    %c0_24 = arith.constant 0 : index
    %38 = vector.load %arg7[%c0_23, %c0_24] : memref<1x32xf32, #tpu.memory_space<vmem>>, vector<1x32xf32>
    %39 = vector.broadcast %38 : vector<1x32xf32> to vector<16x32xf32>
    %40 = arith.addf %37, %39 : vector<16x32xf32>
    %cst_25 = arith.constant 0.353553385 : f32
    %41 = vector.broadcast %cst_25 : f32 to vector<16x32xf32>
    %42 = arith.mulf %30, %41 : vector<16x32xf32>
    %43 = vector.extract_strided_slice %42 {offsets = [0, 0], sizes = [16, 8], strides = [1, 1]} : vector<16x32xf32> to vector<16x8xf32>
    %44 = vector.shape_cast %43 : vector<16x8xf32> to vector<2x8x8xf32>
    %45 = vector.extract_strided_slice %35 {offsets = [0, 0], sizes = [16, 8], strides = [1, 1]} : vector<16x32xf32> to vector<16x8xf32>
    %46 = vector.shape_cast %45 : vector<16x8xf32> to vector<2x8x8xf32>
    %47 = vector.extract_strided_slice %40 {offsets = [0, 0], sizes = [16, 8], strides = [1, 1]} : vector<16x32xf32> to vector<16x8xf32>
    %48 = vector.shape_cast %47 : vector<16x8xf32> to vector<2x8x8xf32>
    "tpu.trace_start"() <{level = 10 : i32, message = "bqd,bkd->bqk"}> : () -> ()
    %cst_26 = arith.constant dense<0.000000e+00> : vector<2x8x8xf32>
    %49 = tpu.matmul %44, %46, %cst_26 {dimension_numbers = #tpu.dot_dimension_numbers<[2], [2], [1], [1], [0, 0, 0, 1, 1, 1], [0], [0]>} : vector<2x8x8xf32>, vector<2x8x8xf32>, vector<2x8x8xf32> -> vector<2x8x8xf32>
    "tpu.trace_stop"() : () -> ()
    %cst_27 = arith.constant dense<0xFF800000> : vector<2x8xf32>
    %50 = vector.multi_reduction <maximumf>, %49, %cst_27 [2] : vector<2x8x8xf32> to vector<2x8xf32>
    %51 = vector.shape_cast %50 : vector<2x8xf32> to vector<2x8x1xf32>
    %52 = vector.broadcast %51 : vector<2x8x1xf32> to vector<2x8x8xf32>
    %53 = arith.subf %49, %52 : vector<2x8x8xf32>
    %54 = math.exp %53 : vector<2x8x8xf32>
    %cst_28 = arith.constant dense<0.000000e+00> : vector<2x8xf32>
    %55 = vector.multi_reduction <add>, %54, %cst_28 [2] : vector<2x8x8xf32> to vector<2x8xf32>
    %56 = vector.shape_cast %55 : vector<2x8xf32> to vector<2x8x1xf32>
    %57 = tpu.reciprocal %56 {approx = true} : vector<2x8x1xf32> -> vector<2x8x1xf32>
    %58 = vector.broadcast %57 : vector<2x8x1xf32> to vector<2x8x8xf32>
    %59 = arith.mulf %54, %58 : vector<2x8x8xf32>
    "tpu.trace_start"() <{level = 10 : i32, message = "bqk,bkd->bqd"}> : () -> ()
    %cst_29 = arith.constant dense<0.000000e+00> : vector<2x8x8xf32>
    %60 = tpu.matmul %59, %48, %cst_29 {dimension_numbers = #tpu.dot_dimension_numbers<[2], [1], [1], [2], [0, 0, 0, 1, 1, 2], [0], [0]>} : vector<2x8x8xf32>, vector<2x8x8xf32>, vector<2x8x8xf32> -> vector<2x8x8xf32>
    "tpu.trace_stop"() : () -> ()
    %61 = vector.shape_cast %60 : vector<2x8x8xf32> to vector<16x8xf32>
    %62 = vector.extract_strided_slice %42 {offsets = [0, 8], sizes = [16, 8], strides = [1, 1]} : vector<16x32xf32> to vector<16x8xf32>
    %63 = vector.shape_cast %62 : vector<16x8xf32> to vector<2x8x8xf32>
    %64 = vector.extract_strided_slice %35 {offsets = [0, 8], sizes = [16, 8], strides = [1, 1]} : vector<16x32xf32> to vector<16x8xf32>
    %65 = vector.shape_cast %64 : vector<16x8xf32> to vector<2x8x8xf32>
    %66 = vector.extract_strided_slice %40 {offsets = [0, 8], sizes = [16, 8], strides = [1, 1]} : vector<16x32xf32> to vector<16x8xf32>
    %67 = vector.shape_cast %66 : vector<16x8xf32> to vector<2x8x8xf32>
    "tpu.trace_start"() <{level = 10 : i32, message = "bqd,bkd->bqk"}> : () -> ()
    %cst_30 = arith.constant dense<0.000000e+00> : vector<2x8x8xf32>
    %68 = tpu.matmul %63, %65, %cst_30 {dimension_numbers = #tpu.dot_dimension_numbers<[2], [2], [1], [1], [0, 0, 0, 1, 1, 1], [0], [0]>} : vector<2x8x8xf32>, vector<2x8x8xf32>, vector<2x8x8xf32> -> vector<2x8x8xf32>
    "tpu.trace_stop"() : () -> ()
    %cst_31 = arith.constant dense<0xFF800000> : vector<2x8xf32>
    %69 = vector.multi_reduction <maximumf>, %68, %cst_31 [2] : vector<2x8x8xf32> to vector<2x8xf32>
    %70 = vector.shape_cast %69 : vector<2x8xf32> to vector<2x8x1xf32>
    %71 = vector.broadcast %70 : vector<2x8x1xf32> to vector<2x8x8xf32>
    %72 = arith.subf %68, %71 : vector<2x8x8xf32>
    %73 = math.exp %72 : vector<2x8x8xf32>
    %cst_32 = arith.constant dense<0.000000e+00> : vector<2x8xf32>
    %74 = vector.multi_reduction <add>, %73, %cst_32 [2] : vector<2x8x8xf32> to vector<2x8xf32>
    %75 = vector.shape_cast %74 : vector<2x8xf32> to vector<2x8x1xf32>
    %76 = tpu.reciprocal %75 {approx = true} : vector<2x8x1xf32> -> vector<2x8x1xf32>
    %77 = vector.broadcast %76 : vector<2x8x1xf32> to vector<2x8x8xf32>
    %78 = arith.mulf %73, %77 : vector<2x8x8xf32>
    "tpu.trace_start"() <{level = 10 : i32, message = "bqk,bkd->bqd"}> : () -> ()
    %cst_33 = arith.constant dense<0.000000e+00> : vector<2x8x8xf32>
    %79 = tpu.matmul %78, %67, %cst_33 {dimension_numbers = #tpu.dot_dimension_numbers<[2], [1], [1], [2], [0, 0, 0, 1, 1, 2], [0], [0]>} : vector<2x8x8xf32>, vector<2x8x8xf32>, vector<2x8x8xf32> -> vector<2x8x8xf32>
    "tpu.trace_stop"() : () -> ()
    %80 = vector.shape_cast %79 : vector<2x8x8xf32> to vector<16x8xf32>
    %81 = vector.extract_strided_slice %42 {offsets = [0, 16], sizes = [16, 8], strides = [1, 1]} : vector<16x32xf32> to vector<16x8xf32>
    %82 = vector.shape_cast %81 : vector<16x8xf32> to vector<2x8x8xf32>
    %83 = vector.extract_strided_slice %35 {offsets = [0, 16], sizes = [16, 8], strides = [1, 1]} : vector<16x32xf32> to vector<16x8xf32>
    %84 = vector.shape_cast %83 : vector<16x8xf32> to vector<2x8x8xf32>
    %85 = vector.extract_strided_slice %40 {offsets = [0, 16], sizes = [16, 8], strides = [1, 1]} : vector<16x32xf32> to vector<16x8xf32>
    %86 = vector.shape_cast %85 : vector<16x8xf32> to vector<2x8x8xf32>
    "tpu.trace_start"() <{level = 10 : i32, message = "bqd,bkd->bqk"}> : () -> ()
    %cst_34 = arith.constant dense<0.000000e+00> : vector<2x8x8xf32>
    %87 = tpu.matmul %82, %84, %cst_34 {dimension_numbers = #tpu.dot_dimension_numbers<[2], [2], [1], [1], [0, 0, 0, 1, 1, 1], [0], [0]>} : vector<2x8x8xf32>, vector<2x8x8xf32>, vector<2x8x8xf32> -> vector<2x8x8xf32>
    "tpu.trace_stop"() : () -> ()
    %cst_35 = arith.constant dense<0xFF800000> : vector<2x8xf32>
    %88 = vector.multi_reduction <maximumf>, %87, %cst_35 [2] : vector<2x8x8xf32> to vector<2x8xf32>
    %89 = vector.shape_cast %88 : vector<2x8xf32> to vector<2x8x1xf32>
    %90 = vector.broadcast %89 : vector<2x8x1xf32> to vector<2x8x8xf32>
    %91 = arith.subf %87, %90 : vector<2x8x8xf32>
    %92 = math.exp %91 : vector<2x8x8xf32>
    %cst_36 = arith.constant dense<0.000000e+00> : vector<2x8xf32>
    %93 = vector.multi_reduction <add>, %92, %cst_36 [2] : vector<2x8x8xf32> to vector<2x8xf32>
    %94 = vector.shape_cast %93 : vector<2x8xf32> to vector<2x8x1xf32>
    %95 = tpu.reciprocal %94 {approx = true} : vector<2x8x1xf32> -> vector<2x8x1xf32>
    %96 = vector.broadcast %95 : vector<2x8x1xf32> to vector<2x8x8xf32>
    %97 = arith.mulf %92, %96 : vector<2x8x8xf32>
    "tpu.trace_start"() <{level = 10 : i32, message = "bqk,bkd->bqd"}> : () -> ()
    %cst_37 = arith.constant dense<0.000000e+00> : vector<2x8x8xf32>
    %98 = tpu.matmul %97, %86, %cst_37 {dimension_numbers = #tpu.dot_dimension_numbers<[2], [1], [1], [2], [0, 0, 0, 1, 1, 2], [0], [0]>} : vector<2x8x8xf32>, vector<2x8x8xf32>, vector<2x8x8xf32> -> vector<2x8x8xf32>
    "tpu.trace_stop"() : () -> ()
    %99 = vector.shape_cast %98 : vector<2x8x8xf32> to vector<16x8xf32>
    %100 = vector.extract_strided_slice %42 {offsets = [0, 24], sizes = [16, 8], strides = [1, 1]} : vector<16x32xf32> to vector<16x8xf32>
    %101 = vector.shape_cast %100 : vector<16x8xf32> to vector<2x8x8xf32>
    %102 = vector.extract_strided_slice %35 {offsets = [0, 24], sizes = [16, 8], strides = [1, 1]} : vector<16x32xf32> to vector<16x8xf32>
    %103 = vector.shape_cast %102 : vector<16x8xf32> to vector<2x8x8xf32>
    %104 = vector.extract_strided_slice %40 {offsets = [0, 24], sizes = [16, 8], strides = [1, 1]} : vector<16x32xf32> to vector<16x8xf32>
    %105 = vector.shape_cast %104 : vector<16x8xf32> to vector<2x8x8xf32>
    "tpu.trace_start"() <{level = 10 : i32, message = "bqd,bkd->bqk"}> : () -> ()
    %cst_38 = arith.constant dense<0.000000e+00> : vector<2x8x8xf32>
    %106 = tpu.matmul %101, %103, %cst_38 {dimension_numbers = #tpu.dot_dimension_numbers<[2], [2], [1], [1], [0, 0, 0, 1, 1, 1], [0], [0]>} : vector<2x8x8xf32>, vector<2x8x8xf32>, vector<2x8x8xf32> -> vector<2x8x8xf32>
    "tpu.trace_stop"() : () -> ()
    %cst_39 = arith.constant dense<0xFF800000> : vector<2x8xf32>
    %107 = vector.multi_reduction <maximumf>, %106, %cst_39 [2] : vector<2x8x8xf32> to vector<2x8xf32>
    %108 = vector.shape_cast %107 : vector<2x8xf32> to vector<2x8x1xf32>
    %109 = vector.broadcast %108 : vector<2x8x1xf32> to vector<2x8x8xf32>
    %110 = arith.subf %106, %109 : vector<2x8x8xf32>
    %111 = math.exp %110 : vector<2x8x8xf32>
    %cst_40 = arith.constant dense<0.000000e+00> : vector<2x8xf32>
    %112 = vector.multi_reduction <add>, %111, %cst_40 [2] : vector<2x8x8xf32> to vector<2x8xf32>
    %113 = vector.shape_cast %112 : vector<2x8xf32> to vector<2x8x1xf32>
    %114 = tpu.reciprocal %113 {approx = true} : vector<2x8x1xf32> -> vector<2x8x1xf32>
    %115 = vector.broadcast %114 : vector<2x8x1xf32> to vector<2x8x8xf32>
    %116 = arith.mulf %111, %115 : vector<2x8x8xf32>
    "tpu.trace_start"() <{level = 10 : i32, message = "bqk,bkd->bqd"}> : () -> ()
    %cst_41 = arith.constant dense<0.000000e+00> : vector<2x8x8xf32>
    %117 = tpu.matmul %116, %105, %cst_41 {dimension_numbers = #tpu.dot_dimension_numbers<[2], [1], [1], [2], [0, 0, 0, 1, 1, 2], [0], [0]>} : vector<2x8x8xf32>, vector<2x8x8xf32>, vector<2x8x8xf32> -> vector<2x8x8xf32>
    "tpu.trace_stop"() : () -> ()
    %118 = vector.shape_cast %117 : vector<2x8x8xf32> to vector<16x8xf32>
    %119 = tpu.concatenate %61, %80, %99, %118 in 1 : vector<16x8xf32>, vector<16x8xf32>, vector<16x8xf32>, vector<16x8xf32> -> vector<16x32xf32>
    %c0_42 = arith.constant 0 : index
    %c0_43 = arith.constant 0 : index
    %120 = vector.load %arg8[%c0_42, %c0_43] : memref<32x32xf32, #tpu.memory_space<vmem>>, vector<32x32xf32>
    %cst_44 = arith.constant dense<0.000000e+00> : vector<16x32xf32>
    %121 = tpu.matmul %119, %120, %cst_44 {dimension_numbers = #tpu.dot_dimension_numbers<[1], [0], [0], [1], [0, 0, 1, 1], [], []>} : vector<16x32xf32>, vector<32x32xf32>, vector<16x32xf32> -> vector<16x32xf32>
    %c0_45 = arith.constant 0 : index
    %c0_46 = arith.constant 0 : index
    %122 = vector.load %arg9[%c0_45, %c0_46] : memref<1x32xf32, #tpu.memory_space<vmem>>, vector<1x32xf32>
    %123 = vector.broadcast %122 : vector<1x32xf32> to vector<16x32xf32>
    %124 = arith.addf %121, %123 : vector<16x32xf32>
    %125 = arith.addf %1, %124 : vector<16x32xf32>
    %c0_47 = arith.constant 0 : index
    %c0_48 = arith.constant 0 : index
    %126 = vector.load %arg12[%c0_47, %c0_48] : memref<1x32xf32, #tpu.memory_space<vmem>>, vector<1x32xf32>
    %c0_49 = arith.constant 0 : index
    %c0_50 = arith.constant 0 : index
    %127 = vector.load %arg13[%c0_49, %c0_50] : memref<1x32xf32, #tpu.memory_space<vmem>>, vector<1x32xf32>
    %cst_51 = arith.constant dense<0.000000e+00> : vector<16xf32>
    %128 = vector.multi_reduction <add>, %125, %cst_51 [1] : vector<16x32xf32> to vector<16xf32>
    %129 = vector.shape_cast %128 : vector<16xf32> to vector<16x1xf32>
    %cst_52 = arith.constant 3.200000e+01 : f32
    %130 = vector.broadcast %cst_52 : f32 to vector<16x1xf32>
    %131 = arith.divf %129, %130 : vector<16x1xf32>
    %132 = vector.broadcast %131 : vector<16x1xf32> to vector<16x32xf32>
    %133 = arith.subf %125, %132 : vector<16x32xf32>
    %134 = arith.mulf %133, %133 : vector<16x32xf32>
    %cst_53 = arith.constant dense<0.000000e+00> : vector<16xf32>
    %135 = vector.multi_reduction <add>, %134, %cst_53 [1] : vector<16x32xf32> to vector<16xf32>
    %136 = vector.shape_cast %135 : vector<16xf32> to vector<16x1xf32>
    %cst_54 = arith.constant 3.200000e+01 : f32
    %137 = vector.broadcast %cst_54 : f32 to vector<16x1xf32>
    %138 = arith.divf %136, %137 : vector<16x1xf32>
    %139 = vector.broadcast %131 : vector<16x1xf32> to vector<16x32xf32>
    %140 = arith.subf %125, %139 : vector<16x32xf32>
    %cst_55 = arith.constant 9.99999974E-6 : f32
    %141 = vector.broadcast %cst_55 : f32 to vector<16x1xf32>
    %142 = arith.addf %138, %141 : vector<16x1xf32>
    %143 = math.rsqrt %142 : vector<16x1xf32>
    %144 = vector.broadcast %143 : vector<16x1xf32> to vector<16x32xf32>
    %145 = arith.mulf %140, %144 : vector<16x32xf32>
    %146 = vector.broadcast %126 : vector<1x32xf32> to vector<16x32xf32>
    %147 = arith.mulf %145, %146 : vector<16x32xf32>
    %148 = vector.broadcast %127 : vector<1x32xf32> to vector<16x32xf32>
    %149 = arith.addf %147, %148 : vector<16x32xf32>
    %c0_56 = arith.constant 0 : index
    %c0_57 = arith.constant 0 : index
    %150 = vector.load %arg14[%c0_56, %c0_57] : memref<32x64xf32, #tpu.memory_space<vmem>>, vector<32x64xf32>
    %cst_58 = arith.constant dense<0.000000e+00> : vector<16x64xf32>
    %151 = tpu.matmul %149, %150, %cst_58 {dimension_numbers = #tpu.dot_dimension_numbers<[1], [0], [0], [1], [0, 0, 1, 1], [], []>} : vector<16x32xf32>, vector<32x64xf32>, vector<16x64xf32> -> vector<16x64xf32>
    %c0_59 = arith.constant 0 : index
    %c0_60 = arith.constant 0 : index
    %152 = vector.load %arg15[%c0_59, %c0_60] : memref<1x64xf32, #tpu.memory_space<vmem>>, vector<1x64xf32>
    %153 = vector.broadcast %152 : vector<1x64xf32> to vector<16x64xf32>
    %154 = arith.addf %151, %153 : vector<16x64xf32>
    %c0_61 = arith.constant 0 : index
    %c0_62 = arith.constant 0 : index
    %155 = vector.load %arg16[%c0_61, %c0_62] : memref<32x64xf32, #tpu.memory_space<vmem>>, vector<32x64xf32>
    %cst_63 = arith.constant dense<0.000000e+00> : vector<16x64xf32>
    %156 = tpu.matmul %149, %155, %cst_63 {dimension_numbers = #tpu.dot_dimension_numbers<[1], [0], [0], [1], [0, 0, 1, 1], [], []>} : vector<16x32xf32>, vector<32x64xf32>, vector<16x64xf32> -> vector<16x64xf32>
    %c0_64 = arith.constant 0 : index
    %c0_65 = arith.constant 0 : index
    %157 = vector.load %arg17[%c0_64, %c0_65] : memref<1x64xf32, #tpu.memory_space<vmem>>, vector<1x64xf32>
    %158 = vector.broadcast %157 : vector<1x64xf32> to vector<16x64xf32>
    %159 = arith.addf %156, %158 : vector<16x64xf32>
    %cst_66 = arith.constant 0.000000e+00 : f32
    %160 = vector.broadcast %cst_66 : f32 to vector<16x64xf32>
    %161 = arith.maximumf %154, %160 : vector<16x64xf32>
    %162 = arith.mulf %161, %159 : vector<16x64xf32>
    %c0_67 = arith.constant 0 : index
    %c0_68 = arith.constant 0 : index
    %163 = vector.load %arg18[%c0_67, %c0_68] : memref<64x32xf32, #tpu.memory_space<vmem>>, vector<64x32xf32>
    %cst_69 = arith.constant dense<0.000000e+00> : vector<16x32xf32>
    %164 = tpu.matmul %162, %163, %cst_69 {dimension_numbers = #tpu.dot_dimension_numbers<[1], [0], [0], [1], [0, 0, 1, 1], [], []>} : vector<16x64xf32>, vector<64x32xf32>, vector<16x32xf32> -> vector<16x32xf32>
    %c0_70 = arith.constant 0 : index
    %c0_71 = arith.constant 0 : index
    %165 = vector.load %arg19[%c0_70, %c0_71] : memref<1x32xf32, #tpu.memory_space<vmem>>, vector<1x32xf32>
    %166 = vector.broadcast %165 : vector<1x32xf32> to vector<16x32xf32>
    %167 = arith.addf %164, %166 : vector<16x32xf32>
    %168 = arith.addf %125, %167 : vector<16x32xf32>
    %169 = vector.shape_cast %168 : vector<16x32xf32> to vector<2x8x32xf32>
    %c0_72 = arith.constant 0 : index
    %c0_73 = arith.constant 0 : index
    %c0_74 = arith.constant 0 : index
    %170 = vector.load %arg20[%c0_72, %c0_73, %c0_74] : memref<2x8x32xf32, #tpu.memory_space<vmem>>, vector<2x8x32xf32>
    tpu.vector_store %arg20[%c0_72, %c0_73, %c0_74], %169 {strides = array<i32>} : memref<2x8x32xf32, #tpu.memory_space<vmem>>, vector<2x8x32xf32>,
    return
  }
  func.func @transform_0(%arg0: i32) -> (i32, i32, i32) {
    %c0_i32 = arith.constant 0 : i32
    %c0_i32_0 = arith.constant 0 : i32
    %c0_i32_1 = arith.constant 0 : i32
    return %arg0, %c0_i32, %c0_i32_0 : i32, i32, i32
  }
  func.func @transform_1(%arg0: i32) -> (i32, i32) {
    %c0_i32 = arith.constant 0 : i32
    %c0_i32_0 = arith.constant 0 : i32
    %c0_i32_1 = arith.constant 0 : i32
    return %c0_i32, %c0_i32_0 : i32, i32
  }
  func.func @transform_2(%arg0: i32) -> (i32, i32) {
    %c0_i32 = arith.constant 0 : i32
    %c0_i32_0 = arith.constant 0 : i32
    %c0_i32_1 = arith.constant 0 : i32
    return %c0_i32, %c0_i32_0 : i32, i32
  }
  func.func @transform_3(%arg0: i32) -> (i32, i32) {
    %c0_i32 = arith.constant 0 : i32
    %c0_i32_0 = arith.constant 0 : i32
    %c0_i32_1 = arith.constant 0 : i32
    return %c0_i32, %c0_i32_0 : i32, i32
  }
  func.func @transform_4(%arg0: i32) -> (i32, i32) {
    %c0_i32 = arith.constant 0 : i32
    %c0_i32_0 = arith.constant 0 : i32
    %c0_i32_1 = arith.constant 0 : i32
    return %c0_i32, %c0_i32_0 : i32, i32
  }
  func.func @transform_5(%arg0: i32) -> (i32, i32) {
    %c0_i32 = arith.constant 0 : i32
    %c0_i32_0 = arith.constant 0 : i32
    %c0_i32_1 = arith.constant 0 : i32
    return %c0_i32, %c0_i32_0 : i32, i32
  }
  func.func @transform_6(%arg0: i32) -> (i32, i32) {
    %c0_i32 = arith.constant 0 : i32
    %c0_i32_0 = arith.constant 0 : i32
    %c0_i32_1 = arith.constant 0 : i32
    return %c0_i32, %c0_i32_0 : i32, i32
  }
  func.func @transform_7(%arg0: i32) -> (i32, i32) {
    %c0_i32 = arith.constant 0 : i32
    %c0_i32_0 = arith.constant 0 : i32
    %c0_i32_1 = arith.constant 0 : i32
    return %c0_i32, %c0_i32_0 : i32, i32
  }
  func.func @transform_8(%arg0: i32) -> (i32, i32) {
    %c0_i32 = arith.constant 0 : i32
    %c0_i32_0 = arith.constant 0 : i32
    %c0_i32_1 = arith.constant 0 : i32
    return %c0_i32, %c0_i32_0 : i32, i32
  }
  func.func @transform_9(%arg0: i32) -> (i32, i32) {
    %c0_i32 = arith.constant 0 : i32
    %c0_i32_0 = arith.constant 0 : i32
    %c0_i32_1 = arith.constant 0 : i32
    return %c0_i32, %c0_i32_0 : i32, i32
  }
  func.func @transform_10(%arg0: i32) -> (i32, i32) {
    %c0_i32 = arith.constant 0 : i32
    %c0_i32_0 = arith.constant 0 : i32
    %c0_i32_1 = arith.constant 0 : i32
    return %c0_i32, %c0_i32_0 : i32, i32
  }
  func.func @transform_11(%arg0: i32) -> (i32, i32) {
    %c0_i32 = arith.constant 0 : i32
    %c0_i32_0 = arith.constant 0 : i32
    %c0_i32_1 = arith.constant 0 : i32
    return %c0_i32, %c0_i32_0 : i32, i32
  }
  func.func @transform_12(%arg0: i32) -> (i32, i32) {
    %c0_i32 = arith.constant 0 : i32
    %c0_i32_0 = arith.constant 0 : i32
    %c0_i32_1 = arith.constant 0 : i32
    return %c0_i32, %c0_i32_0 : i32, i32
  }
  func.func @transform_13(%arg0: i32) -> (i32, i32) {
    %c0_i32 = arith.constant 0 : i32
    %c0_i32_0 = arith.constant 0 : i32
    %c0_i32_1 = arith.constant 0 : i32
    return %c0_i32, %c0_i32_0 : i32, i32
  }
  func.func @transform_14(%arg0: i32) -> (i32, i32) {
    %c0_i32 = arith.constant 0 : i32
    %c0_i32_0 = arith.constant 0 : i32
    %c0_i32_1 = arith.constant 0 : i32
    return %c0_i32, %c0_i32_0 : i32, i32
  }
  func.func @transform_15(%arg0: i32) -> (i32, i32) {
    %c0_i32 = arith.constant 0 : i32
    %c0_i32_0 = arith.constant 0 : i32
    %c0_i32_1 = arith.constant 0 : i32
    return %c0_i32, %c0_i32_0 : i32, i32
  }
  func.func @transform_16(%arg0: i32) -> (i32, i32) {
    %c0_i32 = arith.constant 0 : i32
    %c0_i32_0 = arith.constant 0 : i32
    %c0_i32_1 = arith.constant 0 : i32
    return %c0_i32, %c0_i32_0 : i32, i32
  }
  func.func @transform_17(%arg0: i32) -> (i32, i32) {
    %c0_i32 = arith.constant 0 : i32
    %c0_i32_0 = arith.constant 0 : i32
    %c0_i32_1 = arith.constant 0 : i32
    return %c0_i32, %c0_i32_0 : i32, i32
  }
  func.func @transform_18(%arg0: i32) -> (i32, i32) {
    %c0_i32 = arith.constant 0 : i32
    %c0_i32_0 = arith.constant 0 : i32
    %c0_i32_1 = arith.constant 0 : i32
    return %c0_i32, %c0_i32_0 : i32, i32
  }
  func.func @transform_19(%arg0: i32) -> (i32, i32, i32) {
    %c0_i32 = arith.constant 0 : i32
    %c0_i32_0 = arith.constant 0 : i32
    %c0_i32_1 = arith.constant 0 : i32
    return %arg0, %c0_i32, %c0_i32_0 : i32, i32, i32
  }
}

</mosaic_0001>

<llo_original>
// kernel: tpu_custom_call.1
$region0: #{tpu_custom_call.1}
  #allocation0 [shape = 'u32[]', space=smem, size = 0x4, offset = 0x4, fixed_abs, tag = 'smem constant byte address 0x4 - core index']
  #allocation1 [shape = 'u32[144,128]{1,0:T(1,128)}', space=vmem, size = 0x12000, scoped, tag = 'internal scratch']
  %s0 = inlined_call_operand.hbm [shape: f32[2,8,32], index: 0, kind: input, shape index: {}]
  %s1 = inlined_call_operand.vmem [shape: f32[32,32], index: 1, kind: input, shape index: {}]
  %s2 = inlined_call_operand.vmem [shape: f32[1,32], index: 2, kind: input, shape index: {}]
  %s3 = inlined_call_operand.vmem [shape: f32[32,32], index: 3, kind: input, shape index: {}]
  %s4 = inlined_call_operand.vmem [shape: f32[1,32], index: 4, kind: input, shape index: {}]
  %s5 = inlined_call_operand.vmem [shape: f32[32,32], index: 5, kind: input, shape index: {}]
  %s6 = inlined_call_operand.vmem [shape: f32[1,32], index: 6, kind: input, shape index: {}]
  %s7 = inlined_call_operand.hbm [shape: f32[32,32], index: 7, kind: input, shape index: {}]
  %s8 = inlined_call_operand.vmem [shape: f32[1,32], index: 8, kind: input, shape index: {}]
  %s9 = inlined_call_operand.vmem [shape: f32[1,32], index: 9, kind: input, shape index: {}]
  %s10 = inlined_call_operand.vmem [shape: f32[1,32], index: 10, kind: input, shape index: {}]
  %s11 = inlined_call_operand.vmem [shape: f32[1,32], index: 11, kind: input, shape index: {}]
  %s12 = inlined_call_operand.vmem [shape: f32[1,32], index: 12, kind: input, shape index: {}]
  %s13 = inlined_call_operand.hbm [shape: f32[32,64], index: 13, kind: input, shape index: {}]
  %s14 = inlined_call_operand.vmem [shape: f32[1,64], index: 14, kind: input, shape index: {}]
  %s15 = inlined_call_operand.hbm [shape: f32[32,64], index: 15, kind: input, shape index: {}]
  %s16 = inlined_call_operand.vmem [shape: f32[1,64], index: 16, kind: input, shape index: {}]
  %s17 = inlined_call_operand.vmem [shape: f32[64,32], index: 17, kind: input, shape index: {}]
  %s18 = inlined_call_operand.vmem [shape: f32[1,32], index: 18, kind: input, shape index: {}]
  %s19 = inlined_call_operand.hbm [shape: f32[2,8,32], index: 19, kind: output, shape index: {}]
  %s20 = sld [smem:[#allocation0]]
  $region102: #{tpu_custom_call.1} parent=0
    _
  %s22 = ssub.s32 1, %s20
  %s23 = scalar_select 0, %s22, %s20
  $region1: #{tpu_custom_call.1} parent=0
    #allocation2 [shape = 'u8[8192]{0}', space=vmem, size = 0x2000, scoped, tag = 'input window, operand 0, single buffered']
    #allocation3 [shape = 's32[1]{0}', space=sflag, size = 0x4, scoped, tag = 'scoped memory for tpu_custom_call.1']
    #allocation4 [shape = 's32[1]{0}', space=sflag, size = 0x4, scoped, tag = 'scoped memory for tpu_custom_call.1']
    #allocation5 [shape = 'u8[16384]{0}', space=vmem, size = 0x4000, scoped, tag = 'input window, operand 7, single buffered']
    #allocation6 [shape = 's32[1]{0}', space=sflag, size = 0x4, scoped, tag = 'scoped memory for tpu_custom_call.1']
    #allocation7 [shape = 'u8[16384]{0}', space=vmem, size = 0x4000, scoped, tag = 'input window, operand 13, single buffered']
    #allocation8 [shape = 'u8[16384]{0}', space=vmem, size = 0x4000, scoped, tag = 'input window, operand 15, single buffered']
    #allocation9 [shape = 's32[1]{0}', space=sflag, size = 0x4, scoped, tag = 'scoped memory for tpu_custom_call.1']
    #allocation10 [shape = 'u8[8192]{0}', space=vmem, size = 0x2000, scoped, tag = 'output window, operand 0, single buffered']
    %24 = vsyncpa [#allocation3], 0
    %25 = vsyncpa [#allocation6], 0
    %26 = vsyncpa [#allocation9], 0
    %27 = vsyncpa [#allocation4], 0
    // Predicated region
    $region2: #{tpu_custom_call.1} parent=1 // pred_check
      _
    $region3: #{tpu_custom_call.1} parent=1 // pred_check_branch
      %29 = sbr.rel (0) target = $region5
    $region4: #{tpu_custom_call.1} parent=1 // pred_region
      %s31 = ssub.s32 256, 256
      %32 = vsyncadd [#allocation3], %s31
      %s33 = sshll.u32 [#allocation2], 4
      %s34 = int_to_ptr.vmem [resolvable:$true] %s33
      %39 = dma.hbm_to_vmem [thread:$0]  %s0, 256, %s34, [#allocation3], 128, 128, 8
    $region5: #{tpu_custom_call.1} parent=1 // pred_fallthru
      _
    // Predicated region
    $region6: #{tpu_custom_call.1} parent=1 // pred_check
      _
    $region7: #{tpu_custom_call.1} parent=1 // pred_check_branch
      %41 = sbr.rel (0) target = $region9
    $region8: #{tpu_custom_call.1} parent=1 // pred_region
      _
    $region9: #{tpu_custom_call.1} parent=1 // pred_fallthru
      _
    // Predicated region
    $region10: #{tpu_custom_call.1} parent=1 // pred_check
      _
    $region11: #{tpu_custom_call.1} parent=1 // pred_check_branch
      %43 = sbr.rel (0) target = $region13
    $region12: #{tpu_custom_call.1} parent=1 // pred_region
      _
    $region13: #{tpu_custom_call.1} parent=1 // pred_fallthru
      _
    // Predicated region
    $region14: #{tpu_custom_call.1} parent=1 // pred_check
      _
    $region15: #{tpu_custom_call.1} parent=1 // pred_check_branch
      %45 = sbr.rel (0) target = $region17
    $region16: #{tpu_custom_call.1} parent=1 // pred_region
      _
    $region17: #{tpu_custom_call.1} parent=1 // pred_fallthru
      _
    // Predicated region
    $region18: #{tpu_custom_call.1} parent=1 // pred_check
      _
    $region19: #{tpu_custom_call.1} parent=1 // pred_check_branch
      %47 = sbr.rel (0) target = $region21
    $region20: #{tpu_custom_call.1} parent=1 // pred_region
      _
    $region21: #{tpu_custom_call.1} parent=1 // pred_fallthru
      _
    // Predicated region
    $region22: #{tpu_custom_call.1} parent=1 // pred_check
      _
    $region23: #{tpu_custom_call.1} parent=1 // pred_check_branch
      %49 = sbr.rel (0) target = $region25
    $region24: #{tpu_custom_call.1} parent=1 // pred_region
      _
    $region25: #{tpu_custom_call.1} parent=1 // pred_fallthru
      _
    // Predicated region
    $region26: #{tpu_custom_call.1} parent=1 // pred_check
      _
    $region27: #{tpu_custom_call.1} parent=1 // pred_check_branch
      %51 = sbr.rel (0) target = $region29
    $region28: #{tpu_custom_call.1} parent=1 // pred_region
      _
    $region29: #{tpu_custom_call.1} parent=1 // pred_fallthru
      _
    // Predicated region
    $region30: #{tpu_custom_call.1} parent=1 // pred_check
      _
    $region31: #{tpu_custom_call.1} parent=1 // pred_check_branch
      %53 = sbr.rel (0) target = $region33
    $region32: #{tpu_custom_call.1} parent=1 // pred_region
      %s55 = ssub.s32 512, 512
      %56 = vsyncadd [#allocation6], %s55
      %s57 = sshll.u32 [#allocation5], 4
      %s58 = int_to_ptr.vmem [resolvable:$true] %s57
      %63 = dma.hbm_to_vmem [thread:$0]  %s7, 512, %s58, [#allocation6], 128, 128, 8
    $region33: #{tpu_custom_call.1} parent=1 // pred_fallthru
      _
    // Predicated region
    $region34: #{tpu_custom_call.1} parent=1 // pred_check
      _
    $region35: #{tpu_custom_call.1} parent=1 // pred_check_branch
      %65 = sbr.rel (0) target = $region37
    $region36: #{tpu_custom_call.1} parent=1 // pred_region
      _
    $region37: #{tpu_custom_call.1} parent=1 // pred_fallthru
      _
    // Predicated region
    $region38: #{tpu_custom_call.1} parent=1 // pred_check
      _
    $region39: #{tpu_custom_call.1} parent=1 // pred_check_branch
      %67 = sbr.rel (0) target = $region41
    $region40: #{tpu_custom_call.1} parent=1 // pred_region
      _
    $region41: #{tpu_custom_call.1} parent=1 // pred_fallthru
      _
    // Predicated region
    $region42: #{tpu_custom_call.1} parent=1 // pred_check
      _
    $region43: #{tpu_custom_call.1} parent=1 // pred_check_branch
      %69 = sbr.rel (0) target = $region45
    $region44: #{tpu_custom_call.1} parent=1 // pred_region
      _
    $region45: #{tpu_custom_call.1} parent=1 // pred_fallthru
      _
    // Predicated region
    $region46: #{tpu_custom_call.1} parent=1 // pred_check
      _
    $region47: #{tpu_custom_call.1} parent=1 // pred_check_branch
      %71 = sbr.rel (0) target = $region49
    $region48: #{tpu_custom_call.1} parent=1 // pred_region
      _
    $region49: #{tpu_custom_call.1} parent=1 // pred_fallthru
      _
    // Predicated region
    $region50: #{tpu_custom_call.1} parent=1 // pred_check
      _
    $region51: #{tpu_custom_call.1} parent=1 // pred_check_branch
      %73 = sbr.rel (0) target = $region53
    $region52: #{tpu_custom_call.1} parent=1 // pred_region
      _
    $region53: #{tpu_custom_call.1} parent=1 // pred_fallthru
      _
    // Predicated region
    $region54: #{tpu_custom_call.1} parent=1 // pred_check
      _
    $region55: #{tpu_custom_call.1} parent=1 // pred_check_branch
      %75 = sbr.rel (0) target = $region57
    $region56: #{tpu_custom_call.1} parent=1 // pred_region
      %s77 = ssub.s32 512, 512
      %78 = vsyncadd [#allocation6], %s77
      %s79 = sshll.u32 [#allocation7], 4
      %s80 = int_to_ptr.vmem [resolvable:$true] %s79
      %85 = dma.hbm_to_vmem [thread:$0]  %s13, 512, %s80, [#allocation6], 128, 128, 8
    $region57: #{tpu_custom_call.1} parent=1 // pred_fallthru
      _
    // Predicated region
    $region58: #{tpu_custom_call.1} parent=1 // pred_check
      _
    $region59: #{tpu_custom_call.1} parent=1 // pred_check_branch
      %87 = sbr.rel (0) target = $region61
    $region60: #{tpu_custom_call.1} parent=1 // pred_region
      _
    $region61: #{tpu_custom_call.1} parent=1 // pred_fallthru
      _
    // Predicated region
    $region62: #{tpu_custom_call.1} parent=1 // pred_check
      _
    $region63: #{tpu_custom_call.1} parent=1 // pred_check_branch
      %89 = sbr.rel (0) target = $region65
    $region64: #{tpu_custom_call.1} parent=1 // pred_region
      %s91 = ssub.s32 512, 512
      %92 = vsyncadd [#allocation9], %s91
      %s93 = sshll.u32 [#allocation8], 4
      %s94 = int_to_ptr.vmem [resolvable:$true] %s93
      %99 = dma.hbm_to_vmem [thread:$0]  %s15, 512, %s94, [#allocation9], 128, 128, 8
    $region65: #{tpu_custom_call.1} parent=1 // pred_fallthru
      _
    // Predicated region
    $region66: #{tpu_custom_call.1} parent=1 // pred_check
      _
    $region67: #{tpu_custom_call.1} parent=1 // pred_check_branch
      %101 = sbr.rel (0) target = $region69
    $region68: #{tpu_custom_call.1} parent=1 // pred_region
      _
    $region69: #{tpu_custom_call.1} parent=1 // pred_fallthru
      _
    // Predicated region
    $region70: #{tpu_custom_call.1} parent=1 // pred_check
      _
    $region71: #{tpu_custom_call.1} parent=1 // pred_check_branch
      %103 = sbr.rel (0) target = $region73
    $region72: #{tpu_custom_call.1} parent=1 // pred_region
      _
    $region73: #{tpu_custom_call.1} parent=1 // pred_fallthru
      _
    // Predicated region
    $region74: #{tpu_custom_call.1} parent=1 // pred_check
      _
    $region75: #{tpu_custom_call.1} parent=1 // pred_check_branch
      %105 = sbr.rel (0) target = $region77
    $region76: #{tpu_custom_call.1} parent=1 // pred_region
      _
    $region77: #{tpu_custom_call.1} parent=1 // pred_fallthru
      _
    // Predicated region
    $region78: #{tpu_custom_call.1} parent=1 // pred_check
      _
    $region79: #{tpu_custom_call.1} parent=1 // pred_check_branch
      %107 = sbr.rel (0) target = $region81
    $region80: #{tpu_custom_call.1} parent=1 // pred_region
      %108 = dma.done [#allocation3], 256
    $region81: #{tpu_custom_call.1} parent=1 // pred_fallthru
      _
    // Predicated region
    $region82: #{tpu_custom_call.1} parent=1 // pred_check
      _
    $region83: #{tpu_custom_call.1} parent=1 // pred_check_branch
      %110 = sbr.rel (0) target = $region85
    $region84: #{tpu_custom_call.1} parent=1 // pred_region
      %111 = dma.done [#allocation6], 512
    $region85: #{tpu_custom_call.1} parent=1 // pred_fallthru
      _
    // Predicated region
    $region86: #{tpu_custom_call.1} parent=1 // pred_check
      _
    $region87: #{tpu_custom_call.1} parent=1 // pred_check_branch
      %113 = sbr.rel (0) target = $region89
    $region88: #{tpu_custom_call.1} parent=1 // pred_region
      %114 = dma.done [#allocation6], 512
    $region89: #{tpu_custom_call.1} parent=1 // pred_fallthru
      _
    // Predicated region
    $region90: #{tpu_custom_call.1} parent=1 // pred_check
      _
    $region91: #{tpu_custom_call.1} parent=1 // pred_check_branch
      %116 = sbr.rel (0) target = $region93
    $region92: #{tpu_custom_call.1} parent=1 // pred_region
      %117 = dma.done [#allocation9], 512
    $region93: #{tpu_custom_call.1} parent=1 // pred_fallthru
      _
    %v118 = vld [vmem:[#allocation2] sm:$0xff]
    %v119 = vld [vmem:[#allocation2 + $0x8] sm:$0xff]
    %v120 = vld [vmem:[%s9] sm:$0x1]
    %v121 = vld [vmem:[%s10] sm:$0x1]
    %vm122 = vcmask 261120
    %v123 = vsel %vm122, %v118, 0.0
    %124 = vadd.xlane.f32.xlu0 %v123
    %v125 = vpop.xlane.xlu0 %124
    %v126 = vsel %vm122, %v119, 0.0
    %127 = vadd.xlane.f32.xlu0 %v126
    %v128 = vpop.xlane.xlu0 %127
    %v129 = vrcp.pop 32.0
    %v130 = vmul.f32 %v125, %v129
    %v131 = vmul.f32 %v128, %v129
    %v132 = vsub.f32 %v118, %v130
    %v133 = vsub.f32 %v119, %v131
    %v134 = vmul.f32 %v132, %v132
    %v135 = vmul.f32 %v133, %v133
    %v136 = vsel %vm122, %v134, 0.0
    %137 = vadd.xlane.f32.xlu0 %v136
    %v138 = vpop.xlane.xlu0 %137
    %v139 = vsel %vm122, %v135, 0.0
    %140 = vadd.xlane.f32.xlu0 %v139
    %v141 = vpop.xlane.xlu0 %140
    %v142 = vmul.f32 %v138, %v129
    %v143 = vmul.f32 %v141, %v129
    %v144 = vadd.f32 %v142, 1e-05
    %v145 = vadd.f32 %v143, 1e-05
    %v146 = vrsqrt.pop %v144
    %v147 = vrsqrt.pop %v145
    %v148 = vmul.f32 %v132, %v146
    %v149 = vmul.f32 %v133, %v147
    %v151 = vlaneseq
    %v152 = vshrl.u32 %v151, 7
    %v153 = vsub.s32 0, %v152
    %v154 = vrot.slane %v120, %v153
    %v156 = vmul.f32 %v148, %v154
    %v157 = vmul.f32 %v149, %v154
    %v159 = vlaneseq
    %v160 = vshrl.u32 %v159, 7
    %v161 = vsub.s32 0, %v160
    %v162 = vrot.slane %v121, %v161
    %v164 = vadd.f32 %v156, %v162
    %v165 = vadd.f32 %v157, %v162
    %v166 = vld [vmem:[%s1] sm:$0xff]
    %v167 = vld [vmem:[%s1 + $0x8] sm:$0xff]
    %v168 = vld [vmem:[%s1 + $0x10] sm:$0xff]
    %v169 = vld [vmem:[%s1 + $0x18] sm:$0xff]
    %v170 = vld [vmem:[%s2] sm:$0x1]
    %v172 = vlaneseq
    %v173 = vshrl.u32 %v172, 7
    %v174 = vsub.s32 0, %v173
    %v175 = vrot.slane %v170, %v174
    %v178 = vsel %vm122, %v164, 0
    %v181 = vsel %vm122, %v165, 0
    %183 = vmatprep.subr.mxu0 0.0
    %184 = vmatpush1.msra.mxu0 0.0
    %185 = vmatprep.subr.mxu0 0.0
    %186 = vmatpush1.msra.mxu0 0.0
    %187 = vmatprep.subr.mxu0 0.0
    %188 = vmatpush1.msra.mxu0 0.0
    %189 = vmatprep.subr.mxu0 0.0
    %190 = vmatpush1.msra.mxu0 0.0
    %191 = vmatprep.subr.mxu0 0.0
    %192 = vmatpush1.msra.mxu0 0.0
    %193 = vmatprep.subr.mxu0 0.0
    %194 = vmatpush1.msra.mxu0 0.0
    %195 = vmatprep.subr.mxu0 0.0
    %196 = vmatpush1.msra.mxu0 0.0
    %197 = vmatprep.subr.mxu0 0.0
    %198 = vmatpush1.msra.mxu0 0.0
    %199 = vmatprep.subr.mxu0 0.0
    %200 = vmatpush1.msra.mxu0 0.0
    %201 = vmatprep.subr.mxu0 0.0
    %202 = vmatpush1.msra.mxu0 0.0
    %203 = vmatprep.subr.mxu0 0.0
    %204 = vmatpush1.msra.mxu0 0.0
    %205 = vmatprep.subr.mxu0 0.0
    %206 = vmatpush1.msra.mxu0 0.0
    %207 = vmatprep.subr.mxu0 0.0
    %208 = vmatpush1.msra.mxu0 %v169
    %209 = vmatprep.subr.mxu0 0.0
    %210 = vmatpush1.msra.mxu0 %v168
    %211 = vmatprep.subr.mxu0 0.0
    %212 = vmatpush1.msra.mxu0 %v167
    %213 = vmatprep.subr.mxu0 0.0
    %214 = vmatpush1.msra.mxu0 %v166
    %215 = vmatprep.subr.mxu0 0.0
    %216 = vmatpush2.msra.mxu0 0.0
    %217 = vmatprep.subr.mxu0 0.0
    %218 = vmatpush2.msra.mxu0 0.0
    %219 = vmatprep.subr.mxu0 0.0
    %220 = vmatpush2.msra.mxu0 0.0
    %221 = vmatprep.subr.mxu0 0.0
    %222 = vmatpush2.msra.mxu0 0.0
    %223 = vmatprep.subr.mxu0 0.0
    %224 = vmatpush2.msra.mxu0 0.0
    %225 = vmatprep.subr.mxu0 0.0
    %226 = vmatpush2.msra.mxu0 0.0
    %227 = vmatprep.subr.mxu0 0.0
    %228 = vmatpush2.msra.mxu0 0.0
    %229 = vmatprep.subr.mxu0 0.0
    %230 = vmatpush2.msra.mxu0 0.0
    %231 = vmatprep.subr.mxu0 0.0
    %232 = vmatpush2.msra.mxu0 0.0
    %233 = vmatprep.subr.mxu0 0.0
    %234 = vmatpush2.msra.mxu0 0.0
    %235 = vmatprep.subr.mxu0 0.0
    %236 = vmatpush2.msra.mxu0 0.0
    %237 = vmatprep.subr.mxu0 0.0
    %238 = vmatpush2.msra.mxu0 0.0
    %239 = vmatprep.subr.mxu0 0.0
    %240 = vmatpush2.msra.mxu0 0.0
    %241 = vmatprep.subr.mxu0 0.0
    %242 = vmatpush2.msra.mxu0 0.0
    %243 = vmatprep.subr.mxu0 0.0
    %244 = vmatpush2.msra.mxu0 0.0
    %245 = vmatprep.subr.mxu0 0.0
    %246 = vmatpush2.msra.mxu0 0.0
    %247 = vmatprep.mubr.f32.mxu0 0.0
    %248 = vmatmul.mubr.f32.gmra.mxu0 %v178
    %v249 = vpop.f32.mrf.mxu0
    %v250 = vadd.f32 %v175, %v249
    %v251 = vpop.f32.mrf.mxu0
    %252 = vmatprep.mubr.f32.mxu0 0.0
    %253 = vmatmul.mubr.f32.gmra.mxu0 %v181
    %v254 = vpop.f32.mrf.mxu0
    %v255 = vadd.f32 %v175, %v254
    %v256 = vpop.f32.mrf.mxu0
    %257 = vdwg.mxu0
    %v258 = vld [vmem:[%s3] sm:$0xff]
    %v259 = vld [vmem:[%s3 + $0x8] sm:$0xff]
    %v260 = vld [vmem:[%s3 + $0x10] sm:$0xff]
    %v261 = vld [vmem:[%s3 + $0x18] sm:$0xff]
    %v262 = vld [vmem:[%s4] sm:$0x1]
    %v264 = vlaneseq
    %v265 = vshrl.u32 %v264, 7
    %v266 = vsub.s32 0, %v265
    %v267 = vrot.slane %v262, %v266
    %269 = vmatprep.subr.mxu0 0.0
    %270 = vmatpush1.msra.mxu0 0.0
    %271 = vmatprep.subr.mxu0 0.0
    %272 = vmatpush1.msra.mxu0 0.0
    %273 = vmatprep.subr.mxu0 0.0
    %274 = vmatpush1.msra.mxu0 0.0
    %275 = vmatprep.subr.mxu0 0.0
    %276 = vmatpush1.msra.mxu0 0.0
    %277 = vmatprep.subr.mxu0 0.0
    %278 = vmatpush1.msra.mxu0 0.0
    %279 = vmatprep.subr.mxu0 0.0
    %280 = vmatpush1.msra.mxu0 0.0
    %281 = vmatprep.subr.mxu0 0.0
    %282 = vmatpush1.msra.mxu0 0.0
    %283 = vmatprep.subr.mxu0 0.0
    %284 = vmatpush1.msra.mxu0 0.0
    %285 = vmatprep.subr.mxu0 0.0
    %286 = vmatpush1.msra.mxu0 0.0
    %287 = vmatprep.subr.mxu0 0.0
    %288 = vmatpush1.msra.mxu0 0.0
    %289 = vmatprep.subr.mxu0 0.0
    %290 = vmatpush1.msra.mxu0 0.0
    %291 = vmatprep.subr.mxu0 0.0
    %292 = vmatpush1.msra.mxu0 0.0
    %293 = vmatprep.subr.mxu0 0.0
    %294 = vmatpush1.msra.mxu0 %v261
    %295 = vmatprep.subr.mxu0 0.0
    %296 = vmatpush1.msra.mxu0 %v260
    %297 = vmatprep.subr.mxu0 0.0
    %298 = vmatpush1.msra.mxu0 %v259
    %299 = vmatprep.subr.mxu0 0.0
    %300 = vmatpush1.msra.mxu0 %v258
    %301 = vmatprep.subr.mxu0 0.0
    %302 = vmatpush2.msra.mxu0 0.0
    %303 = vmatprep.subr.mxu0 0.0
    %304 = vmatpush2.msra.mxu0 0.0
    %305 = vmatprep.subr.mxu0 0.0
    %306 = vmatpush2.msra.mxu0 0.0
    %307 = vmatprep.subr.mxu0 0.0
    %308 = vmatpush2.msra.mxu0 0.0
    %309 = vmatprep.subr.mxu0 0.0
    %310 = vmatpush2.msra.mxu0 0.0
    %311 = vmatprep.subr.mxu0 0.0
    %312 = vmatpush2.msra.mxu0 0.0
    %313 = vmatprep.subr.mxu0 0.0
    %314 = vmatpush2.msra.mxu0 0.0
    %315 = vmatprep.subr.mxu0 0.0
    %316 = vmatpush2.msra.mxu0 0.0
    %317 = vmatprep.subr.mxu0 0.0
    %318 = vmatpush2.msra.mxu0 0.0
    %319 = vmatprep.subr.mxu0 0.0
    %320 = vmatpush2.msra.mxu0 0.0
    %321 = vmatprep.subr.mxu0 0.0
    %322 = vmatpush2.msra.mxu0 0.0
    %323 = vmatprep.subr.mxu0 0.0
    %324 = vmatpush2.msra.mxu0 0.0
    %325 = vmatprep.subr.mxu0 0.0
    %326 = vmatpush2.msra.mxu0 0.0
    %327 = vmatprep.subr.mxu0 0.0
    %328 = vmatpush2.msra.mxu0 0.0
    %329 = vmatprep.subr.mxu0 0.0
    %330 = vmatpush2.msra.mxu0 0.0
    %331 = vmatprep.subr.mxu0 0.0
    %332 = vmatpush2.msra.mxu0 0.0
    %333 = vmatprep.mubr.f32.mxu0 0.0
    %334 = vmatmul.mubr.f32.gmra.mxu0 %v178
    %v335 = vpop.f32.mrf.mxu0
    %v336 = vadd.f32 %v267, %v335
    %v337 = vpop.f32.mrf.mxu0
    %338 = vmatprep.mubr.f32.mxu0 0.0
    %339 = vmatmul.mubr.f32.gmra.mxu0 %v181
    %v340 = vpop.f32.mrf.mxu0
    %v341 = vadd.f32 %v267, %v340
    %v342 = vpop.f32.mrf.mxu0
    %343 = vdwg.mxu0
    %v344 = vld [vmem:[%s5] sm:$0xff]
    %v345 = vld [vmem:[%s5 + $0x8] sm:$0xff]
    %v346 = vld [vmem:[%s5 + $0x10] sm:$0xff]
    %v347 = vld [vmem:[%s5 + $0x18] sm:$0xff]
    %v348 = vld [vmem:[%s6] sm:$0x1]
    %v350 = vlaneseq
    %v351 = vshrl.u32 %v350, 7
    %v352 = vsub.s32 0, %v351
    %v353 = vrot.slane %v348, %v352
    %355 = vmatprep.subr.mxu0 0.0
    %356 = vmatpush1.msra.mxu0 0.0
    %357 = vmatprep.subr.mxu0 0.0
    %358 = vmatpush1.msra.mxu0 0.0
    %359 = vmatprep.subr.mxu0 0.0
    %360 = vmatpush1.msra.mxu0 0.0
    %361 = vmatprep.subr.mxu0 0.0
    %362 = vmatpush1.msra.mxu0 0.0
    %363 = vmatprep.subr.mxu0 0.0
    %364 = vmatpush1.msra.mxu0 0.0
    %365 = vmatprep.subr.mxu0 0.0
    %366 = vmatpush1.msra.mxu0 0.0
    %367 = vmatprep.subr.mxu0 0.0
    %368 = vmatpush1.msra.mxu0 0.0
    %369 = vmatprep.subr.mxu0 0.0
    %370 = vmatpush1.msra.mxu0 0.0
    %371 = vmatprep.subr.mxu0 0.0
    %372 = vmatpush1.msra.mxu0 0.0
    %373 = vmatprep.subr.mxu0 0.0
    %374 = vmatpush1.msra.mxu0 0.0
    %375 = vmatprep.subr.mxu0 0.0
    %376 = vmatpush1.msra.mxu0 0.0
    %377 = vmatprep.subr.mxu0 0.0
    %378 = vmatpush1.msra.mxu0 0.0
    %379 = vmatprep.subr.mxu0 0.0
    %380 = vmatpush1.msra.mxu0 %v347
    %381 = vmatprep.subr.mxu0 0.0
    %382 = vmatpush1.msra.mxu0 %v346
    %383 = vmatprep.subr.mxu0 0.0
    %384 = vmatpush1.msra.mxu0 %v345
    %385 = vmatprep.subr.mxu0 0.0
    %386 = vmatpush1.msra.mxu0 %v344
    %387 = vmatprep.subr.mxu0 0.0
    %388 = vmatpush2.msra.mxu0 0.0
    %389 = vmatprep.subr.mxu0 0.0
    %390 = vmatpush2.msra.mxu0 0.0
    %391 = vmatprep.subr.mxu0 0.0
    %392 = vmatpush2.msra.mxu0 0.0
    %393 = vmatprep.subr.mxu0 0.0
    %394 = vmatpush2.msra.mxu0 0.0
    %395 = vmatprep.subr.mxu0 0.0
    %396 = vmatpush2.msra.mxu0 0.0
    %397 = vmatprep.subr.mxu0 0.0
    %398 = vmatpush2.msra.mxu0 0.0
    %399 = vmatprep.subr.mxu0 0.0
    %400 = vmatpush2.msra.mxu0 0.0
    %401 = vmatprep.subr.mxu0 0.0
    %402 = vmatpush2.msra.mxu0 0.0
    %403 = vmatprep.subr.mxu0 0.0
    %404 = vmatpush2.msra.mxu0 0.0
    %405 = vmatprep.subr.mxu0 0.0
    %406 = vmatpush2.msra.mxu0 0.0
    %407 = vmatprep.subr.mxu0 0.0
    %408 = vmatpush2.msra.mxu0 0.0
    %409 = vmatprep.subr.mxu0 0.0
    %410 = vmatpush2.msra.mxu0 0.0
    %411 = vmatprep.subr.mxu0 0.0
    %412 = vmatpush2.msra.mxu0 0.0
    %413 = vmatprep.subr.mxu0 0.0
    %414 = vmatpush2.msra.mxu0 0.0
    %415 = vmatprep.subr.mxu0 0.0
    %416 = vmatpush2.msra.mxu0 0.0
    %417 = vmatprep.subr.mxu0 0.0
    %418 = vmatpush2.msra.mxu0 0.0
    %419 = vmatprep.mubr.f32.mxu0 0.0
    %420 = vmatmul.mubr.f32.gmra.mxu0 %v178
    %v421 = vpop.f32.mrf.mxu0
    %v422 = vadd.f32 %v353, %v421
    %v423 = vpop.f32.mrf.mxu0
    %424 = vmatprep.mubr.f32.mxu0 0.0
    %425 = vmatmul.mubr.f32.gmra.mxu0 %v181
    %v426 = vpop.f32.mrf.mxu0
    %v427 = vadd.f32 %v353, %v426
    %v428 = vpop.f32.mrf.mxu0
    %429 = vdwg.mxu0
    %v430 = vmul.f32 %v250, 0.35355338
    %v431 = vmul.f32 %v255, 0.35355338
    %vm432 = vcmask 64512
    %v434 = vsel %vm432, %v430, 0
    %v437 = vsel %vm432, %v336, 0
    %439 = vmatprep.subr.mxu0 0.0
    %440 = vmatpush1.xpose.msra.mxu0 0.0
    %441 = vmatprep.subr.mxu0 0.0
    %442 = vmatpush1.xpose.msra.mxu0 0.0
    %443 = vmatprep.subr.mxu0 0.0
    %444 = vmatpush1.xpose.msra.mxu0 0.0
    %445 = vmatprep.subr.mxu0 0.0
    %446 = vmatpush1.xpose.msra.mxu0 0.0
    %447 = vmatprep.subr.mxu0 0.0
    %448 = vmatpush1.xpose.msra.mxu0 0.0
    %449 = vmatprep.subr.mxu0 0.0
    %450 = vmatpush1.xpose.msra.mxu0 0.0
    %451 = vmatprep.subr.mxu0 0.0
    %452 = vmatpush1.xpose.msra.mxu0 0.0
    %453 = vmatprep.subr.mxu0 0.0
    %454 = vmatpush1.xpose.msra.mxu0 0.0
    %455 = vmatprep.subr.mxu0 0.0
    %456 = vmatpush1.xpose.msra.mxu0 0.0
    %457 = vmatprep.subr.mxu0 0.0
    %458 = vmatpush1.xpose.msra.mxu0 0.0
    %459 = vmatprep.subr.mxu0 0.0
    %460 = vmatpush1.xpose.msra.mxu0 0.0
    %461 = vmatprep.subr.mxu0 0.0
    %462 = vmatpush1.xpose.msra.mxu0 0.0
    %463 = vmatprep.subr.mxu0 0.0
    %464 = vmatpush1.xpose.msra.mxu0 0.0
    %465 = vmatprep.subr.mxu0 0.0
    %466 = vmatpush1.xpose.msra.mxu0 0.0
    %467 = vmatprep.subr.mxu0 0.0
    %468 = vmatpush1.xpose.msra.mxu0 0.0
    %469 = vmatprep.subr.mxu0 0.0
    %470 = vmatpush1.xpose.msra.mxu0 %v437
    %471 = vmatprep.subr.mxu0 0.0
    %472 = vmatpush2.xpose.msra.mxu0 0.0
    %473 = vmatprep.subr.mxu0 0.0
    %474 = vmatpush2.xpose.msra.mxu0 0.0
    %475 = vmatprep.subr.mxu0 0.0
    %476 = vmatpush2.xpose.msra.mxu0 0.0
    %477 = vmatprep.subr.mxu0 0.0
    %478 = vmatpush2.xpose.msra.mxu0 0.0
    %479 = vmatprep.subr.mxu0 0.0
    %480 = vmatpush2.xpose.msra.mxu0 0.0
    %481 = vmatprep.subr.mxu0 0.0
    %482 = vmatpush2.xpose.msra.mxu0 0.0
    %483 = vmatprep.subr.mxu0 0.0
    %484 = vmatpush2.xpose.msra.mxu0 0.0
    %485 = vmatprep.subr.mxu0 0.0
    %486 = vmatpush2.xpose.msra.mxu0 0.0
    %487 = vmatprep.subr.mxu0 0.0
    %488 = vmatpush2.xpose.msra.mxu0 0.0
    %489 = vmatprep.subr.mxu0 0.0
    %490 = vmatpush2.xpose.msra.mxu0 0.0
    %491 = vmatprep.subr.mxu0 0.0
    %492 = vmatpush2.xpose.msra.mxu0 0.0
    %493 = vmatprep.subr.mxu0 0.0
    %494 = vmatpush2.xpose.msra.mxu0 0.0
    %495 = vmatprep.subr.mxu0 0.0
    %496 = vmatpush2.xpose.msra.mxu0 0.0
    %497 = vmatprep.subr.mxu0 0.0
    %498 = vmatpush2.xpose.msra.mxu0 0.0
    %499 = vmatprep.subr.mxu0 0.0
    %500 = vmatpush2.xpose.msra.mxu0 0.0
    %501 = vmatprep.subr.mxu0 0.0
    %502 = vmatpush2.xpose.msra.mxu0 0.0
    %503 = vmatprep.mubr.f32.mxu0 0.0
    %504 = vmatmul.mubr.f32.gmra.mxu0 %v434
    %v505 = vpop.f32.mrf.mxu0
    %v506 = vadd.f32 0.0, %v505
    %v507 = vpop.f32.mrf.mxu0
    %508 = vdwg.mxu0
    %v510 = vsel %vm432, %v431, 0
    %v513 = vsel %vm432, %v341, 0
    %515 = vmatprep.subr.mxu0 0.0
    %516 = vmatpush1.xpose.msra.mxu0 0.0
    %517 = vmatprep.subr.mxu0 0.0
    %518 = vmatpush1.xpose.msra.mxu0 0.0
    %519 = vmatprep.subr.mxu0 0.0
    %520 = vmatpush1.xpose.msra.mxu0 0.0
    %521 = vmatprep.subr.mxu0 0.0
    %522 = vmatpush1.xpose.msra.mxu0 0.0
    %523 = vmatprep.subr.mxu0 0.0
    %524 = vmatpush1.xpose.msra.mxu0 0.0
    %525 = vmatprep.subr.mxu0 0.0
    %526 = vmatpush1.xpose.msra.mxu0 0.0
    %527 = vmatprep.subr.mxu0 0.0
    %528 = vmatpush1.xpose.msra.mxu0 0.0
    %529 = vmatprep.subr.mxu0 0.0
    %530 = vmatpush1.xpose.msra.mxu0 0.0
    %531 = vmatprep.subr.mxu0 0.0
    %532 = vmatpush1.xpose.msra.mxu0 0.0
    %533 = vmatprep.subr.mxu0 0.0
    %534 = vmatpush1.xpose.msra.mxu0 0.0
    %535 = vmatprep.subr.mxu0 0.0
    %536 = vmatpush1.xpose.msra.mxu0 0.0
    %537 = vmatprep.subr.mxu0 0.0
    %538 = vmatpush1.xpose.msra.mxu0 0.0
    %539 = vmatprep.subr.mxu0 0.0
    %540 = vmatpush1.xpose.msra.mxu0 0.0
    %541 = vmatprep.subr.mxu0 0.0
    %542 = vmatpush1.xpose.msra.mxu0 0.0
    %543 = vmatprep.subr.mxu0 0.0
    %544 = vmatpush1.xpose.msra.mxu0 0.0
    %545 = vmatprep.subr.mxu0 0.0
    %546 = vmatpush1.xpose.msra.mxu0 %v513
    %547 = vmatprep.subr.mxu0 0.0
    %548 = vmatpush2.xpose.msra.mxu0 0.0
    %549 = vmatprep.subr.mxu0 0.0
    %550 = vmatpush2.xpose.msra.mxu0 0.0
    %551 = vmatprep.subr.mxu0 0.0
    %552 = vmatpush2.xpose.msra.mxu0 0.0
    %553 = vmatprep.subr.mxu0 0.0
    %554 = vmatpush2.xpose.msra.mxu0 0.0
    %555 = vmatprep.subr.mxu0 0.0
    %556 = vmatpush2.xpose.msra.mxu0 0.0
    %557 = vmatprep.subr.mxu0 0.0
    %558 = vmatpush2.xpose.msra.mxu0 0.0
    %559 = vmatprep.subr.mxu0 0.0
    %560 = vmatpush2.xpose.msra.mxu0 0.0
    %561 = vmatprep.subr.mxu0 0.0
    %562 = vmatpush2.xpose.msra.mxu0 0.0
    %563 = vmatprep.subr.mxu0 0.0
    %564 = vmatpush2.xpose.msra.mxu0 0.0
    %565 = vmatprep.subr.mxu0 0.0
    %566 = vmatpush2.xpose.msra.mxu0 0.0
    %567 = vmatprep.subr.mxu0 0.0
    %568 = vmatpush2.xpose.msra.mxu0 0.0
    %569 = vmatprep.subr.mxu0 0.0
    %570 = vmatpush2.xpose.msra.mxu0 0.0
    %571 = vmatprep.subr.mxu0 0.0
    %572 = vmatpush2.xpose.msra.mxu0 0.0
    %573 = vmatprep.subr.mxu0 0.0
    %574 = vmatpush2.xpose.msra.mxu0 0.0
    %575 = vmatprep.subr.mxu0 0.0
    %576 = vmatpush2.xpose.msra.mxu0 0.0
    %577 = vmatprep.subr.mxu0 0.0
    %578 = vmatpush2.xpose.msra.mxu0 0.0
    %579 = vmatprep.mubr.f32.mxu0 0.0
    %580 = vmatmul.mubr.f32.gmra.mxu0 %v510
    %v581 = vpop.f32.mrf.mxu0
    %v582 = vadd.f32 0.0, %v581
    %v583 = vpop.f32.mrf.mxu0
    %584 = vdwg.mxu0
    %v585 = vsel %vm432, %v506, -inf
    %586 = vmax.xlane.f32.xlu0 %v585
    %v587 = vpop.xlane.xlu0 %586
    %v588 = vsel %vm432, %v582, -inf
    %589 = vmax.xlane.f32.xlu0 %v588
    %v590 = vpop.xlane.xlu0 %589
    %v591 = vsub.f32 %v506, %v587
    %v592 = vsub.f32 %v582, %v590
    %v593 = vmul.f32 %v591, 1.442695
    %v594 = vpow.pop %v593
    %v595 = vmul.f32 %v592, 1.442695
    %v596 = vpow.pop %v595
    %v597 = vsel %vm432, %v594, 0.0
    %598 = vadd.xlane.f32.xlu0 %v597
    %v599 = vpop.xlane.xlu0 %598
    %v600 = vsel %vm432, %v596, 0.0
    %601 = vadd.xlane.f32.xlu0 %v600
    %v602 = vpop.xlane.xlu0 %601
    %v603 = vrcp.pop %v599
    %v604 = vrcp.pop %v602
    %v605 = vmul.f32 %v594, %v603
    %v606 = vmul.f32 %v596, %v604
    %v608 = vsel %vm432, %v605, 0
    %610 = vmatprep.subr.mxu0 0.0
    %611 = vmatpush1.msra.mxu0 0.0
    %612 = vmatprep.subr.mxu0 0.0
    %613 = vmatpush1.msra.mxu0 0.0
    %614 = vmatprep.subr.mxu0 0.0
    %615 = vmatpush1.msra.mxu0 0.0
    %616 = vmatprep.subr.mxu0 0.0
    %617 = vmatpush1.msra.mxu0 0.0
    %618 = vmatprep.subr.mxu0 0.0
    %619 = vmatpush1.msra.mxu0 0.0
    %620 = vmatprep.subr.mxu0 0.0
    %621 = vmatpush1.msra.mxu0 0.0
    %622 = vmatprep.subr.mxu0 0.0
    %623 = vmatpush1.msra.mxu0 0.0
    %624 = vmatprep.subr.mxu0 0.0
    %625 = vmatpush1.msra.mxu0 0.0
    %626 = vmatprep.subr.mxu0 0.0
    %627 = vmatpush1.msra.mxu0 0.0
    %628 = vmatprep.subr.mxu0 0.0
    %629 = vmatpush1.msra.mxu0 0.0
    %630 = vmatprep.subr.mxu0 0.0
    %631 = vmatpush1.msra.mxu0 0.0
    %632 = vmatprep.subr.mxu0 0.0
    %633 = vmatpush1.msra.mxu0 0.0
    %634 = vmatprep.subr.mxu0 0.0
    %635 = vmatpush1.msra.mxu0 0.0
    %636 = vmatprep.subr.mxu0 0.0
    %637 = vmatpush1.msra.mxu0 0.0
    %638 = vmatprep.subr.mxu0 0.0
    %639 = vmatpush1.msra.mxu0 0.0
    %640 = vmatprep.subr.mxu0 0.0
    %641 = vmatpush1.msra.mxu0 %v422
    %642 = vmatprep.subr.mxu0 0.0
    %643 = vmatpush2.msra.mxu0 0.0
    %644 = vmatprep.subr.mxu0 0.0
    %645 = vmatpush2.msra.mxu0 0.0
    %646 = vmatprep.subr.mxu0 0.0
    %647 = vmatpush2.msra.mxu0 0.0
    %648 = vmatprep.subr.mxu0 0.0
    %649 = vmatpush2.msra.mxu0 0.0
    %650 = vmatprep.subr.mxu0 0.0
    %651 = vmatpush2.msra.mxu0 0.0
    %652 = vmatprep.subr.mxu0 0.0
    %653 = vmatpush2.msra.mxu0 0.0
    %654 = vmatprep.subr.mxu0 0.0
    %655 = vmatpush2.msra.mxu0 0.0
    %656 = vmatprep.subr.mxu0 0.0
    %657 = vmatpush2.msra.mxu0 0.0
    %658 = vmatprep.subr.mxu0 0.0
    %659 = vmatpush2.msra.mxu0 0.0
    %660 = vmatprep.subr.mxu0 0.0
    %661 = vmatpush2.msra.mxu0 0.0
    %662 = vmatprep.subr.mxu0 0.0
    %663 = vmatpush2.msra.mxu0 0.0
    %664 = vmatprep.subr.mxu0 0.0
    %665 = vmatpush2.msra.mxu0 0.0
    %666 = vmatprep.subr.mxu0 0.0
    %667 = vmatpush2.msra.mxu0 0.0
    %668 = vmatprep.subr.mxu0 0.0
    %669 = vmatpush2.msra.mxu0 0.0
    %670 = vmatprep.subr.mxu0 0.0
    %671 = vmatpush2.msra.mxu0 0.0
    %672 = vmatprep.subr.mxu0 0.0
    %673 = vmatpush2.msra.mxu0 0.0
    %674 = vmatprep.mubr.f32.mxu0 0.0
    %675 = vmatmul.mubr.f32.gmra.mxu0 %v608
    %v676 = vpop.f32.mrf.mxu0
    %v677 = vadd.f32 0.0, %v676
    %v678 = vpop.f32.mrf.mxu0
    %679 = vdwg.mxu0
    %v681 = vsel %vm432, %v606, 0
    %683 = vmatprep.subr.mxu0 0.0
    %684 = vmatpush1.msra.mxu0 0.0
    %685 = vmatprep.subr.mxu0 0.0
    %686 = vmatpush1.msra.mxu0 0.0
    %687 = vmatprep.subr.mxu0 0.0
    %688 = vmatpush1.msra.mxu0 0.0
    %689 = vmatprep.subr.mxu0 0.0
    %690 = vmatpush1.msra.mxu0 0.0
    %691 = vmatprep.subr.mxu0 0.0
    %692 = vmatpush1.msra.mxu0 0.0
    %693 = vmatprep.subr.mxu0 0.0
    %694 = vmatpush1.msra.mxu0 0.0
    %695 = vmatprep.subr.mxu0 0.0
    %696 = vmatpush1.msra.mxu0 0.0
    %697 = vmatprep.subr.mxu0 0.0
    %698 = vmatpush1.msra.mxu0 0.0
    %699 = vmatprep.subr.mxu0 0.0
    %700 = vmatpush1.msra.mxu0 0.0
    %701 = vmatprep.subr.mxu0 0.0
    %702 = vmatpush1.msra.mxu0 0.0
    %703 = vmatprep.subr.mxu0 0.0
    %704 = vmatpush1.msra.mxu0 0.0
    %705 = vmatprep.subr.mxu0 0.0
    %706 = vmatpush1.msra.mxu0 0.0
    %707 = vmatprep.subr.mxu0 0.0
    %708 = vmatpush1.msra.mxu0 0.0
    %709 = vmatprep.subr.mxu0 0.0
    %710 = vmatpush1.msra.mxu0 0.0
    %711 = vmatprep.subr.mxu0 0.0
    %712 = vmatpush1.msra.mxu0 0.0
    %713 = vmatprep.subr.mxu0 0.0
    %714 = vmatpush1.msra.mxu0 %v427
    %715 = vmatprep.subr.mxu0 0.0
    %716 = vmatpush2.msra.mxu0 0.0
    %717 = vmatprep.subr.mxu0 0.0
    %718 = vmatpush2.msra.mxu0 0.0
    %719 = vmatprep.subr.mxu0 0.0
    %720 = vmatpush2.msra.mxu0 0.0
    %721 = vmatprep.subr.mxu0 0.0
    %722 = vmatpush2.msra.mxu0 0.0
    %723 = vmatprep.subr.mxu0 0.0
    %724 = vmatpush2.msra.mxu0 0.0
    %725 = vmatprep.subr.mxu0 0.0
    %726 = vmatpush2.msra.mxu0 0.0
    %727 = vmatprep.subr.mxu0 0.0
    %728 = vmatpush2.msra.mxu0 0.0
    %729 = vmatprep.subr.mxu0 0.0
    %730 = vmatpush2.msra.mxu0 0.0
    %731 = vmatprep.subr.mxu0 0.0
    %732 = vmatpush2.msra.mxu0 0.0
    %733 = vmatprep.subr.mxu0 0.0
    %734 = vmatpush2.msra.mxu0 0.0
    %735 = vmatprep.subr.mxu0 0.0
    %736 = vmatpush2.msra.mxu0 0.0
    %737 = vmatprep.subr.mxu0 0.0
    %738 = vmatpush2.msra.mxu0 0.0
    %739 = vmatprep.subr.mxu0 0.0
    %740 = vmatpush2.msra.mxu0 0.0
    %741 = vmatprep.subr.mxu0 0.0
    %742 = vmatpush2.msra.mxu0 0.0
    %743 = vmatprep.subr.mxu0 0.0
    %744 = vmatpush2.msra.mxu0 0.0
    %745 = vmatprep.subr.mxu0 0.0
    %746 = vmatpush2.msra.mxu0 0.0
    %747 = vmatprep.mubr.f32.mxu0 0.0
    %748 = vmatmul.mubr.f32.gmra.mxu0 %v681
    %v749 = vpop.f32.mrf.mxu0
    %v750 = vadd.f32 0.0, %v749
    %v751 = vpop.f32.mrf.mxu0
    %752 = vdwg.mxu0
    %753 = vrot.lane.b32.xlu0 %v430, 120
    %v754 = vpop.permute.xlu0 %753
    %755 = vrot.lane.b32.xlu0 %v336, 120
    %v756 = vpop.permute.xlu0 %755
    %v757 = vsel %vm432, %v754, 0
    %v759 = vsel %vm432, %v756, 0
    %761 = vmatprep.subr.mxu0 0.0
    %762 = vmatpush1.xpose.msra.mxu0 0.0
    %763 = vmatprep.subr.mxu0 0.0
    %764 = vmatpush1.xpose.msra.mxu0 0.0
    %765 = vmatprep.subr.mxu0 0.0
    %766 = vmatpush1.xpose.msra.mxu0 0.0
    %767 = vmatprep.subr.mxu0 0.0
    %768 = vmatpush1.xpose.msra.mxu0 0.0
    %769 = vmatprep.subr.mxu0 0.0
    %770 = vmatpush1.xpose.msra.mxu0 0.0
    %771 = vmatprep.subr.mxu0 0.0
    %772 = vmatpush1.xpose.msra.mxu0 0.0
    %773 = vmatprep.subr.mxu0 0.0
    %774 = vmatpush1.xpose.msra.mxu0 0.0
    %775 = vmatprep.subr.mxu0 0.0
    %776 = vmatpush1.xpose.msra.mxu0 0.0
    %777 = vmatprep.subr.mxu0 0.0
    %778 = vmatpush1.xpose.msra.mxu0 0.0
    %779 = vmatprep.subr.mxu0 0.0
    %780 = vmatpush1.xpose.msra.mxu0 0.0
    %781 = vmatprep.subr.mxu0 0.0
    %782 = vmatpush1.xpose.msra.mxu0 0.0
    %783 = vmatprep.subr.mxu0 0.0
    %784 = vmatpush1.xpose.msra.mxu0 0.0
    %785 = vmatprep.subr.mxu0 0.0
    %786 = vmatpush1.xpose.msra.mxu0 0.0
    %787 = vmatprep.subr.mxu0 0.0
    %788 = vmatpush1.xpose.msra.mxu0 0.0
    %789 = vmatprep.subr.mxu0 0.0
    %790 = vmatpush1.xpose.msra.mxu0 0.0
    %791 = vmatprep.subr.mxu0 0.0
    %792 = vmatpush1.xpose.msra.mxu0 %v759
    %793 = vmatprep.subr.mxu0 0.0
    %794 = vmatpush2.xpose.msra.mxu0 0.0
    %795 = vmatprep.subr.mxu0 0.0
    %796 = vmatpush2.xpose.msra.mxu0 0.0
    %797 = vmatprep.subr.mxu0 0.0
    %798 = vmatpush2.xpose.msra.mxu0 0.0
    %799 = vmatprep.subr.mxu0 0.0
    %800 = vmatpush2.xpose.msra.mxu0 0.0
    %801 = vmatprep.subr.mxu0 0.0
    %802 = vmatpush2.xpose.msra.mxu0 0.0
    %803 = vmatprep.subr.mxu0 0.0
    %804 = vmatpush2.xpose.msra.mxu0 0.0
    %805 = vmatprep.subr.mxu0 0.0
    %806 = vmatpush2.xpose.msra.mxu0 0.0
    %807 = vmatprep.subr.mxu0 0.0
    %808 = vmatpush2.xpose.msra.mxu0 0.0
    %809 = vmatprep.subr.mxu0 0.0
    %810 = vmatpush2.xpose.msra.mxu0 0.0
    %811 = vmatprep.subr.mxu0 0.0
    %812 = vmatpush2.xpose.msra.mxu0 0.0
    %813 = vmatprep.subr.mxu0 0.0
    %814 = vmatpush2.xpose.msra.mxu0 0.0
    %815 = vmatprep.subr.mxu0 0.0
    %816 = vmatpush2.xpose.msra.mxu0 0.0
    %817 = vmatprep.subr.mxu0 0.0
    %818 = vmatpush2.xpose.msra.mxu0 0.0
    %819 = vmatprep.subr.mxu0 0.0
    %820 = vmatpush2.xpose.msra.mxu0 0.0
    %821 = vmatprep.subr.mxu0 0.0
    %822 = vmatpush2.xpose.msra.mxu0 0.0
    %823 = vmatprep.subr.mxu0 0.0
    %824 = vmatpush2.xpose.msra.mxu0 0.0
    %825 = vmatprep.mubr.f32.mxu0 0.0
    %826 = vmatmul.mubr.f32.gmra.mxu0 %v757
    %v827 = vpop.f32.mrf.mxu0
    %v828 = vadd.f32 0.0, %v827
    %v829 = vpop.f32.mrf.mxu0
    %830 = vdwg.mxu0
    %831 = vrot.lane.b32.xlu0 %v431, 120
    %v832 = vpop.permute.xlu0 %831
    %833 = vrot.lane.b32.xlu0 %v341, 120
    %v834 = vpop.permute.xlu0 %833
    %v835 = vsel %vm432, %v832, 0
    %v837 = vsel %vm432, %v834, 0
    %839 = vmatprep.subr.mxu0 0.0
    %840 = vmatpush1.xpose.msra.mxu0 0.0
    %841 = vmatprep.subr.mxu0 0.0
    %842 = vmatpush1.xpose.msra.mxu0 0.0
    %843 = vmatprep.subr.mxu0 0.0
    %844 = vmatpush1.xpose.msra.mxu0 0.0
    %845 = vmatprep.subr.mxu0 0.0
    %846 = vmatpush1.xpose.msra.mxu0 0.0
    %847 = vmatprep.subr.mxu0 0.0
    %848 = vmatpush1.xpose.msra.mxu0 0.0
    %849 = vmatprep.subr.mxu0 0.0
    %850 = vmatpush1.xpose.msra.mxu0 0.0
    %851 = vmatprep.subr.mxu0 0.0
    %852 = vmatpush1.xpose.msra.mxu0 0.0
    %853 = vmatprep.subr.mxu0 0.0
    %854 = vmatpush1.xpose.msra.mxu0 0.0
    %855 = vmatprep.subr.mxu0 0.0
    %856 = vmatpush1.xpose.msra.mxu0 0.0
    %857 = vmatprep.subr.mxu0 0.0
    %858 = vmatpush1.xpose.msra.mxu0 0.0
    %859 = vmatprep.subr.mxu0 0.0
    %860 = vmatpush1.xpose.msra.mxu0 0.0
    %861 = vmatprep.subr.mxu0 0.0
    %862 = vmatpush1.xpose.msra.mxu0 0.0
    %863 = vmatprep.subr.mxu0 0.0
    %864 = vmatpush1.xpose.msra.mxu0 0.0
    %865 = vmatprep.subr.mxu0 0.0
    %866 = vmatpush1.xpose.msra.mxu0 0.0
    %867 = vmatprep.subr.mxu0 0.0
    %868 = vmatpush1.xpose.msra.mxu0 0.0
    %869 = vmatprep.subr.mxu0 0.0
    %870 = vmatpush1.xpose.msra.mxu0 %v837
    %871 = vmatprep.subr.mxu0 0.0
    %872 = vmatpush2.xpose.msra.mxu0 0.0
    %873 = vmatprep.subr.mxu0 0.0
    %874 = vmatpush2.xpose.msra.mxu0 0.0
    %875 = vmatprep.subr.mxu0 0.0
    %876 = vmatpush2.xpose.msra.mxu0 0.0
    %877 = vmatprep.subr.mxu0 0.0
    %878 = vmatpush2.xpose.msra.mxu0 0.0
    %879 = vmatprep.subr.mxu0 0.0
    %880 = vmatpush2.xpose.msra.mxu0 0.0
    %881 = vmatprep.subr.mxu0 0.0
    %882 = vmatpush2.xpose.msra.mxu0 0.0
    %883 = vmatprep.subr.mxu0 0.0
    %884 = vmatpush2.xpose.msra.mxu0 0.0
    %885 = vmatprep.subr.mxu0 0.0
    %886 = vmatpush2.xpose.msra.mxu0 0.0
    %887 = vmatprep.subr.mxu0 0.0
    %888 = vmatpush2.xpose.msra.mxu0 0.0
    %889 = vmatprep.subr.mxu0 0.0
    %890 = vmatpush2.xpose.msra.mxu0 0.0
    %891 = vmatprep.subr.mxu0 0.0
    %892 = vmatpush2.xpose.msra.mxu0 0.0
    %893 = vmatprep.subr.mxu0 0.0
    %894 = vmatpush2.xpose.msra.mxu0 0.0
    %895 = vmatprep.subr.mxu0 0.0
    %896 = vmatpush2.xpose.msra.mxu0 0.0
    %897 = vmatprep.subr.mxu0 0.0
    %898 = vmatpush2.xpose.msra.mxu0 0.0
    %899 = vmatprep.subr.mxu0 0.0
    %900 = vmatpush2.xpose.msra.mxu0 0.0
    %901 = vmatprep.subr.mxu0 0.0
    %902 = vmatpush2.xpose.msra.mxu0 0.0
    %903 = vmatprep.mubr.f32.mxu0 0.0
    %904 = vmatmul.mubr.f32.gmra.mxu0 %v835
    %v905 = vpop.f32.mrf.mxu0
    %v906 = vadd.f32 0.0, %v905
    %v907 = vpop.f32.mrf.mxu0
    %908 = vdwg.mxu0
    %v909 = vsel %vm432, %v828, -inf
    %910 = vmax.xlane.f32.xlu0 %v909
    %v911 = vpop.xlane.xlu0 %910
    %v912 = vsel %vm432, %v906, -inf
    %913 = vmax.xlane.f32.xlu0 %v912
    %v914 = vpop.xlane.xlu0 %913
    %v915 = vsub.f32 %v828, %v911
    %v916 = vsub.f32 %v906, %v914
    %v917 = vmul.f32 %v915, 1.442695
    %v918 = vpow.pop %v917
    %v919 = vmul.f32 %v916, 1.442695
    %v920 = vpow.pop %v919
    %v921 = vsel %vm432, %v918, 0.0
    %922 = vadd.xlane.f32.xlu0 %v921
    %v923 = vpop.xlane.xlu0 %922
    %v924 = vsel %vm432, %v920, 0.0
    %925 = vadd.xlane.f32.xlu0 %v924
    %v926 = vpop.xlane.xlu0 %925
    %v927 = vrcp.pop %v923
    %v928 = vrcp.pop %v926
    %v929 = vmul.f32 %v918, %v927
    %v930 = vmul.f32 %v920, %v928
    %932 = vrot.lane.b32.xlu0 %v422, 120
    %v933 = vpop.permute.xlu0 %932
    %v936 = vsel %vm432, %v929, 0
    %938 = vmatprep.subr.mxu0 0.0
    %939 = vmatpush1.msra.mxu0 0.0
    %940 = vmatprep.subr.mxu0 0.0
    %941 = vmatpush1.msra.mxu0 0.0
    %942 = vmatprep.subr.mxu0 0.0
    %943 = vmatpush1.msra.mxu0 0.0
    %944 = vmatprep.subr.mxu0 0.0
    %945 = vmatpush1.msra.mxu0 0.0
    %946 = vmatprep.subr.mxu0 0.0
    %947 = vmatpush1.msra.mxu0 0.0
    %948 = vmatprep.subr.mxu0 0.0
    %949 = vmatpush1.msra.mxu0 0.0
    %950 = vmatprep.subr.mxu0 0.0
    %951 = vmatpush1.msra.mxu0 0.0
    %952 = vmatprep.subr.mxu0 0.0
    %953 = vmatpush1.msra.mxu0 0.0
    %954 = vmatprep.subr.mxu0 0.0
    %955 = vmatpush1.msra.mxu0 0.0
    %956 = vmatprep.subr.mxu0 0.0
    %957 = vmatpush1.msra.mxu0 0.0
    %958 = vmatprep.subr.mxu0 0.0
    %959 = vmatpush1.msra.mxu0 0.0
    %960 = vmatprep.subr.mxu0 0.0
    %961 = vmatpush1.msra.mxu0 0.0
    %962 = vmatprep.subr.mxu0 0.0
    %963 = vmatpush1.msra.mxu0 0.0
    %964 = vmatprep.subr.mxu0 0.0
    %965 = vmatpush1.msra.mxu0 0.0
    %966 = vmatprep.subr.mxu0 0.0
    %967 = vmatpush1.msra.mxu0 0.0
    %968 = vmatprep.subr.mxu0 0.0
    %969 = vmatpush1.msra.mxu0 %v933
    %970 = vmatprep.subr.mxu0 0.0
    %971 = vmatpush2.msra.mxu0 0.0
    %972 = vmatprep.subr.mxu0 0.0
    %973 = vmatpush2.msra.mxu0 0.0
    %974 = vmatprep.subr.mxu0 0.0
    %975 = vmatpush2.msra.mxu0 0.0
    %976 = vmatprep.subr.mxu0 0.0
    %977 = vmatpush2.msra.mxu0 0.0
    %978 = vmatprep.subr.mxu0 0.0
    %979 = vmatpush2.msra.mxu0 0.0
    %980 = vmatprep.subr.mxu0 0.0
    %981 = vmatpush2.msra.mxu0 0.0
    %982 = vmatprep.subr.mxu0 0.0
    %983 = vmatpush2.msra.mxu0 0.0
    %984 = vmatprep.subr.mxu0 0.0
    %985 = vmatpush2.msra.mxu0 0.0
    %986 = vmatprep.subr.mxu0 0.0
    %987 = vmatpush2.msra.mxu0 0.0
    %988 = vmatprep.subr.mxu0 0.0
    %989 = vmatpush2.msra.mxu0 0.0
    %990 = vmatprep.subr.mxu0 0.0
    %991 = vmatpush2.msra.mxu0 0.0
    %992 = vmatprep.subr.mxu0 0.0
    %993 = vmatpush2.msra.mxu0 0.0
    %994 = vmatprep.subr.mxu0 0.0
    %995 = vmatpush2.msra.mxu0 0.0
    %996 = vmatprep.subr.mxu0 0.0
    %997 = vmatpush2.msra.mxu0 0.0
    %998 = vmatprep.subr.mxu0 0.0
    %999 = vmatpush2.msra.mxu0 0.0
    %1000 = vmatprep.subr.mxu0 0.0
    %1001 = vmatpush2.msra.mxu0 0.0
    %1002 = vmatprep.mubr.f32.mxu0 0.0
    %1003 = vmatmul.mubr.f32.gmra.mxu0 %v936
    %v1004 = vpop.f32.mrf.mxu0
    %v1005 = vadd.f32 0.0, %v1004
    %v1006 = vpop.f32.mrf.mxu0
    %1007 = vdwg.mxu0
    %1009 = vrot.lane.b32.xlu0 %v427, 120
    %v1010 = vpop.permute.xlu0 %1009
    %v1013 = vsel %vm432, %v930, 0
    %1015 = vmatprep.subr.mxu0 0.0
    %1016 = vmatpush1.msra.mxu0 0.0
    %1017 = vmatprep.subr.mxu0 0.0
    %1018 = vmatpush1.msra.mxu0 0.0
    %1019 = vmatprep.subr.mxu0 0.0
    %1020 = vmatpush1.msra.mxu0 0.0
    %1021 = vmatprep.subr.mxu0 0.0
    %1022 = vmatpush1.msra.mxu0 0.0
    %1023 = vmatprep.subr.mxu0 0.0
    %1024 = vmatpush1.msra.mxu0 0.0
    %1025 = vmatprep.subr.mxu0 0.0
    %1026 = vmatpush1.msra.mxu0 0.0
    %1027 = vmatprep.subr.mxu0 0.0
    %1028 = vmatpush1.msra.mxu0 0.0
    %1029 = vmatprep.subr.mxu0 0.0
    %1030 = vmatpush1.msra.mxu0 0.0
    %1031 = vmatprep.subr.mxu0 0.0
    %1032 = vmatpush1.msra.mxu0 0.0
    %1033 = vmatprep.subr.mxu0 0.0
    %1034 = vmatpush1.msra.mxu0 0.0
    %1035 = vmatprep.subr.mxu0 0.0
    %1036 = vmatpush1.msra.mxu0 0.0
    %1037 = vmatprep.subr.mxu0 0.0
    %1038 = vmatpush1.msra.mxu0 0.0
    %1039 = vmatprep.subr.mxu0 0.0
    %1040 = vmatpush1.msra.mxu0 0.0
    %1041 = vmatprep.subr.mxu0 0.0
    %1042 = vmatpush1.msra.mxu0 0.0
    %1043 = vmatprep.subr.mxu0 0.0
    %1044 = vmatpush1.msra.mxu0 0.0
    %1045 = vmatprep.subr.mxu0 0.0
    %1046 = vmatpush1.msra.mxu0 %v1010
    %1047 = vmatprep.subr.mxu0 0.0
    %1048 = vmatpush2.msra.mxu0 0.0
    %1049 = vmatprep.subr.mxu0 0.0
    %1050 = vmatpush2.msra.mxu0 0.0
    %1051 = vmatprep.subr.mxu0 0.0
    %1052 = vmatpush2.msra.mxu0 0.0
    %1053 = vmatprep.subr.mxu0 0.0
    %1054 = vmatpush2.msra.mxu0 0.0
    %1055 = vmatprep.subr.mxu0 0.0
    %1056 = vmatpush2.msra.mxu0 0.0
    %1057 = vmatprep.subr.mxu0 0.0
    %1058 = vmatpush2.msra.mxu0 0.0
    %1059 = vmatprep.subr.mxu0 0.0
    %1060 = vmatpush2.msra.mxu0 0.0
    %1061 = vmatprep.subr.mxu0 0.0
    %1062 = vmatpush2.msra.mxu0 0.0
    %1063 = vmatprep.subr.mxu0 0.0
    %1064 = vmatpush2.msra.mxu0 0.0
    %1065 = vmatprep.subr.mxu0 0.0
    %1066 = vmatpush2.msra.mxu0 0.0
    %1067 = vmatprep.subr.mxu0 0.0
    %1068 = vmatpush2.msra.mxu0 0.0
    %1069 = vmatprep.subr.mxu0 0.0
    %1070 = vmatpush2.msra.mxu0 0.0
    %1071 = vmatprep.subr.mxu0 0.0
    %1072 = vmatpush2.msra.mxu0 0.0
    %1073 = vmatprep.subr.mxu0 0.0
    %1074 = vmatpush2.msra.mxu0 0.0
    %1075 = vmatprep.subr.mxu0 0.0
    %1076 = vmatpush2.msra.mxu0 0.0
    %1077 = vmatprep.subr.mxu0 0.0
    %1078 = vmatpush2.msra.mxu0 0.0
    %1079 = vmatprep.mubr.f32.mxu0 0.0
    %1080 = vmatmul.mubr.f32.gmra.mxu0 %v1013
    %v1081 = vpop.f32.mrf.mxu0
    %v1082 = vadd.f32 0.0, %v1081
    %v1083 = vpop.f32.mrf.mxu0
    %1084 = vdwg.mxu0
    %1085 = vrot.lane.b32.xlu0 %v430, 112
    %v1086 = vpop.permute.xlu0 %1085
    %1087 = vrot.lane.b32.xlu0 %v336, 112
    %v1088 = vpop.permute.xlu0 %1087
    %v1089 = vsel %vm432, %v1086, 0
    %v1091 = vsel %vm432, %v1088, 0
    %1093 = vmatprep.subr.mxu0 0.0
    %1094 = vmatpush1.xpose.msra.mxu0 0.0
    %1095 = vmatprep.subr.mxu0 0.0
    %1096 = vmatpush1.xpose.msra.mxu0 0.0
    %1097 = vmatprep.subr.mxu0 0.0
    %1098 = vmatpush1.xpose.msra.mxu0 0.0
    %1099 = vmatprep.subr.mxu0 0.0
    %1100 = vmatpush1.xpose.msra.mxu0 0.0
    %1101 = vmatprep.subr.mxu0 0.0
    %1102 = vmatpush1.xpose.msra.mxu0 0.0
    %1103 = vmatprep.subr.mxu0 0.0
    %1104 = vmatpush1.xpose.msra.mxu0 0.0
    %1105 = vmatprep.subr.mxu0 0.0
    %1106 = vmatpush1.xpose.msra.mxu0 0.0
    %1107 = vmatprep.subr.mxu0 0.0
    %1108 = vmatpush1.xpose.msra.mxu0 0.0
    %1109 = vmatprep.subr.mxu0 0.0
    %1110 = vmatpush1.xpose.msra.mxu0 0.0
    %1111 = vmatprep.subr.mxu0 0.0
    %1112 = vmatpush1.xpose.msra.mxu0 0.0
    %1113 = vmatprep.subr.mxu0 0.0
    %1114 = vmatpush1.xpose.msra.mxu0 0.0
    %1115 = vmatprep.subr.mxu0 0.0
    %1116 = vmatpush1.xpose.msra.mxu0 0.0
    %1117 = vmatprep.subr.mxu0 0.0
    %1118 = vmatpush1.xpose.msra.mxu0 0.0
    %1119 = vmatprep.subr.mxu0 0.0
    %1120 = vmatpush1.xpose.msra.mxu0 0.0
    %1121 = vmatprep.subr.mxu0 0.0
    %1122 = vmatpush1.xpose.msra.mxu0 0.0
    %1123 = vmatprep.subr.mxu0 0.0
    %1124 = vmatpush1.xpose.msra.mxu0 %v1091
    %1125 = vmatprep.subr.mxu0 0.0
    %1126 = vmatpush2.xpose.msra.mxu0 0.0
    %1127 = vmatprep.subr.mxu0 0.0
    %1128 = vmatpush2.xpose.msra.mxu0 0.0
    %1129 = vmatprep.subr.mxu0 0.0
    %1130 = vmatpush2.xpose.msra.mxu0 0.0
    %1131 = vmatprep.subr.mxu0 0.0
    %1132 = vmatpush2.xpose.msra.mxu0 0.0
    %1133 = vmatprep.subr.mxu0 0.0
    %1134 = vmatpush2.xpose.msra.mxu0 0.0
    %1135 = vmatprep.subr.mxu0 0.0
    %1136 = vmatpush2.xpose.msra.mxu0 0.0
    %1137 = vmatprep.subr.mxu0 0.0
    %1138 = vmatpush2.xpose.msra.mxu0 0.0
    %1139 = vmatprep.subr.mxu0 0.0
    %1140 = vmatpush2.xpose.msra.mxu0 0.0
    %1141 = vmatprep.subr.mxu0 0.0
    %1142 = vmatpush2.xpose.msra.mxu0 0.0
    %1143 = vmatprep.subr.mxu0 0.0
    %1144 = vmatpush2.xpose.msra.mxu0 0.0
    %1145 = vmatprep.subr.mxu0 0.0
    %1146 = vmatpush2.xpose.msra.mxu0 0.0
    %1147 = vmatprep.subr.mxu0 0.0
    %1148 = vmatpush2.xpose.msra.mxu0 0.0
    %1149 = vmatprep.subr.mxu0 0.0
    %1150 = vmatpush2.xpose.msra.mxu0 0.0
    %1151 = vmatprep.subr.mxu0 0.0
    %1152 = vmatpush2.xpose.msra.mxu0 0.0
    %1153 = vmatprep.subr.mxu0 0.0
    %1154 = vmatpush2.xpose.msra.mxu0 0.0
    %1155 = vmatprep.subr.mxu0 0.0
    %1156 = vmatpush2.xpose.msra.mxu0 0.0
    %1157 = vmatprep.mubr.f32.mxu0 0.0
    %1158 = vmatmul.mubr.f32.gmra.mxu0 %v1089
    %v1159 = vpop.f32.mrf.mxu0
    %v1160 = vadd.f32 0.0, %v1159
    %v1161 = vpop.f32.mrf.mxu0
    %1162 = vdwg.mxu0
    %1163 = vrot.lane.b32.xlu0 %v431, 112
    %v1164 = vpop.permute.xlu0 %1163
    %1165 = vrot.lane.b32.xlu0 %v341, 112
    %v1166 = vpop.permute.xlu0 %1165
    %v1167 = vsel %vm432, %v1164, 0
    %v1169 = vsel %vm432, %v1166, 0
    %1171 = vmatprep.subr.mxu0 0.0
    %1172 = vmatpush1.xpose.msra.mxu0 0.0
    %1173 = vmatprep.subr.mxu0 0.0
    %1174 = vmatpush1.xpose.msra.mxu0 0.0
    %1175 = vmatprep.subr.mxu0 0.0
    %1176 = vmatpush1.xpose.msra.mxu0 0.0
    %1177 = vmatprep.subr.mxu0 0.0
    %1178 = vmatpush1.xpose.msra.mxu0 0.0
    %1179 = vmatprep.subr.mxu0 0.0
    %1180 = vmatpush1.xpose.msra.mxu0 0.0
    %1181 = vmatprep.subr.mxu0 0.0
    %1182 = vmatpush1.xpose.msra.mxu0 0.0
    %1183 = vmatprep.subr.mxu0 0.0
    %1184 = vmatpush1.xpose.msra.mxu0 0.0
    %1185 = vmatprep.subr.mxu0 0.0
    %1186 = vmatpush1.xpose.msra.mxu0 0.0
    %1187 = vmatprep.subr.mxu0 0.0
    %1188 = vmatpush1.xpose.msra.mxu0 0.0
    %1189 = vmatprep.subr.mxu0 0.0
    %1190 = vmatpush1.xpose.msra.mxu0 0.0
    %1191 = vmatprep.subr.mxu0 0.0
    %1192 = vmatpush1.xpose.msra.mxu0 0.0
    %1193 = vmatprep.subr.mxu0 0.0
    %1194 = vmatpush1.xpose.msra.mxu0 0.0
    %1195 = vmatprep.subr.mxu0 0.0
    %1196 = vmatpush1.xpose.msra.mxu0 0.0
    %1197 = vmatprep.subr.mxu0 0.0
    %1198 = vmatpush1.xpose.msra.mxu0 0.0
    %1199 = vmatprep.subr.mxu0 0.0
    %1200 = vmatpush1.xpose.msra.mxu0 0.0
    %1201 = vmatprep.subr.mxu0 0.0
    %1202 = vmatpush1.xpose.msra.mxu0 %v1169
    %1203 = vmatprep.subr.mxu0 0.0
    %1204 = vmatpush2.xpose.msra.mxu0 0.0
    %1205 = vmatprep.subr.mxu0 0.0
    %1206 = vmatpush2.xpose.msra.mxu0 0.0
    %1207 = vmatprep.subr.mxu0 0.0
    %1208 = vmatpush2.xpose.msra.mxu0 0.0
    %1209 = vmatprep.subr.mxu0 0.0
    %1210 = vmatpush2.xpose.msra.mxu0 0.0
    %1211 = vmatprep.subr.mxu0 0.0
    %1212 = vmatpush2.xpose.msra.mxu0 0.0
    %1213 = vmatprep.subr.mxu0 0.0
    %1214 = vmatpush2.xpose.msra.mxu0 0.0
    %1215 = vmatprep.subr.mxu0 0.0
    %1216 = vmatpush2.xpose.msra.mxu0 0.0
    %1217 = vmatprep.subr.mxu0 0.0
    %1218 = vmatpush2.xpose.msra.mxu0 0.0
    %1219 = vmatprep.subr.mxu0 0.0
    %1220 = vmatpush2.xpose.msra.mxu0 0.0
    %1221 = vmatprep.subr.mxu0 0.0
    %1222 = vmatpush2.xpose.msra.mxu0 0.0
    %1223 = vmatprep.subr.mxu0 0.0
    %1224 = vmatpush2.xpose.msra.mxu0 0.0
    %1225 = vmatprep.subr.mxu0 0.0
    %1226 = vmatpush2.xpose.msra.mxu0 0.0
    %1227 = vmatprep.subr.mxu0 0.0
    %1228 = vmatpush2.xpose.msra.mxu0 0.0
    %1229 = vmatprep.subr.mxu0 0.0
    %1230 = vmatpush2.xpose.msra.mxu0 0.0
    %1231 = vmatprep.subr.mxu0 0.0
    %1232 = vmatpush2.xpose.msra.mxu0 0.0
    %1233 = vmatprep.subr.mxu0 0.0
    %1234 = vmatpush2.xpose.msra.mxu0 0.0
    %1235 = vmatprep.mubr.f32.mxu0 0.0
    %1236 = vmatmul.mubr.f32.gmra.mxu0 %v1167
    %v1237 = vpop.f32.mrf.mxu0
    %v1238 = vadd.f32 0.0, %v1237
    %v1239 = vpop.f32.mrf.mxu0
    %1240 = vdwg.mxu0
    %v1241 = vsel %vm432, %v1160, -inf
    %1242 = vmax.xlane.f32.xlu0 %v1241
    %v1243 = vpop.xlane.xlu0 %1242
    %v1244 = vsel %vm432, %v1238, -inf
    %1245 = vmax.xlane.f32.xlu0 %v1244
    %v1246 = vpop.xlane.xlu0 %1245
    %v1247 = vsub.f32 %v1160, %v1243
    %v1248 = vsub.f32 %v1238, %v1246
    %v1249 = vmul.f32 %v1247, 1.442695
    %v1250 = vpow.pop %v1249
    %v1251 = vmul.f32 %v1248, 1.442695
    %v1252 = vpow.pop %v1251
    %v1253 = vsel %vm432, %v1250, 0.0
    %1254 = vadd.xlane.f32.xlu0 %v1253
    %v1255 = vpop.xlane.xlu0 %1254
    %v1256 = vsel %vm432, %v1252, 0.0
    %1257 = vadd.xlane.f32.xlu0 %v1256
    %v1258 = vpop.xlane.xlu0 %1257
    %v1259 = vrcp.pop %v1255
    %v1260 = vrcp.pop %v1258
    %v1261 = vmul.f32 %v1250, %v1259
    %v1262 = vmul.f32 %v1252, %v1260
    %1263 = vrot.lane.b32.xlu0 %v422, 112
    %v1264 = vpop.permute.xlu0 %1263
    %v1267 = vsel %vm432, %v1261, 0
    %1269 = vmatprep.subr.mxu0 0.0
    %1270 = vmatpush1.msra.mxu0 0.0
    %1271 = vmatprep.subr.mxu0 0.0
    %1272 = vmatpush1.msra.mxu0 0.0
    %1273 = vmatprep.subr.mxu0 0.0
    %1274 = vmatpush1.msra.mxu0 0.0
    %1275 = vmatprep.subr.mxu0 0.0
    %1276 = vmatpush1.msra.mxu0 0.0
    %1277 = vmatprep.subr.mxu0 0.0
    %1278 = vmatpush1.msra.mxu0 0.0
    %1279 = vmatprep.subr.mxu0 0.0
    %1280 = vmatpush1.msra.mxu0 0.0
    %1281 = vmatprep.subr.mxu0 0.0
    %1282 = vmatpush1.msra.mxu0 0.0
    %1283 = vmatprep.subr.mxu0 0.0
    %1284 = vmatpush1.msra.mxu0 0.0
    %1285 = vmatprep.subr.mxu0 0.0
    %1286 = vmatpush1.msra.mxu0 0.0
    %1287 = vmatprep.subr.mxu0 0.0
    %1288 = vmatpush1.msra.mxu0 0.0
    %1289 = vmatprep.subr.mxu0 0.0
    %1290 = vmatpush1.msra.mxu0 0.0
    %1291 = vmatprep.subr.mxu0 0.0
    %1292 = vmatpush1.msra.mxu0 0.0
    %1293 = vmatprep.subr.mxu0 0.0
    %1294 = vmatpush1.msra.mxu0 0.0
    %1295 = vmatprep.subr.mxu0 0.0
    %1296 = vmatpush1.msra.mxu0 0.0
    %1297 = vmatprep.subr.mxu0 0.0
    %1298 = vmatpush1.msra.mxu0 0.0
    %1299 = vmatprep.subr.mxu0 0.0
    %1300 = vmatpush1.msra.mxu0 %v1264
    %1301 = vmatprep.subr.mxu0 0.0
    %1302 = vmatpush2.msra.mxu0 0.0
    %1303 = vmatprep.subr.mxu0 0.0
    %1304 = vmatpush2.msra.mxu0 0.0
    %1305 = vmatprep.subr.mxu0 0.0
    %1306 = vmatpush2.msra.mxu0 0.0
    %1307 = vmatprep.subr.mxu0 0.0
    %1308 = vmatpush2.msra.mxu0 0.0
    %1309 = vmatprep.subr.mxu0 0.0
    %1310 = vmatpush2.msra.mxu0 0.0
    %1311 = vmatprep.subr.mxu0 0.0
    %1312 = vmatpush2.msra.mxu0 0.0
    %1313 = vmatprep.subr.mxu0 0.0
    %1314 = vmatpush2.msra.mxu0 0.0
    %1315 = vmatprep.subr.mxu0 0.0
    %1316 = vmatpush2.msra.mxu0 0.0
    %1317 = vmatprep.subr.mxu0 0.0
    %1318 = vmatpush2.msra.mxu0 0.0
    %1319 = vmatprep.subr.mxu0 0.0
    %1320 = vmatpush2.msra.mxu0 0.0
    %1321 = vmatprep.subr.mxu0 0.0
    %1322 = vmatpush2.msra.mxu0 0.0
    %1323 = vmatprep.subr.mxu0 0.0
    %1324 = vmatpush2.msra.mxu0 0.0
    %1325 = vmatprep.subr.mxu0 0.0
    %1326 = vmatpush2.msra.mxu0 0.0
    %1327 = vmatprep.subr.mxu0 0.0
    %1328 = vmatpush2.msra.mxu0 0.0
    %1329 = vmatprep.subr.mxu0 0.0
    %1330 = vmatpush2.msra.mxu0 0.0
    %1331 = vmatprep.subr.mxu0 0.0
    %1332 = vmatpush2.msra.mxu0 0.0
    %1333 = vmatprep.mubr.f32.mxu0 0.0
    %1334 = vmatmul.mubr.f32.gmra.mxu0 %v1267
    %v1335 = vpop.f32.mrf.mxu0
    %v1336 = vadd.f32 0.0, %v1335
    %v1337 = vpop.f32.mrf.mxu0
    %1338 = vdwg.mxu0
    %1339 = vrot.lane.b32.xlu0 %v427, 112
    %v1340 = vpop.permute.xlu0 %1339
    %v1343 = vsel %vm432, %v1262, 0
    %1345 = vmatprep.subr.mxu0 0.0
    %1346 = vmatpush1.msra.mxu0 0.0
    %1347 = vmatprep.subr.mxu0 0.0
    %1348 = vmatpush1.msra.mxu0 0.0
    %1349 = vmatprep.subr.mxu0 0.0
    %1350 = vmatpush1.msra.mxu0 0.0
    %1351 = vmatprep.subr.mxu0 0.0
    %1352 = vmatpush1.msra.mxu0 0.0
    %1353 = vmatprep.subr.mxu0 0.0
    %1354 = vmatpush1.msra.mxu0 0.0
    %1355 = vmatprep.subr.mxu0 0.0
    %1356 = vmatpush1.msra.mxu0 0.0
    %1357 = vmatprep.subr.mxu0 0.0
    %1358 = vmatpush1.msra.mxu0 0.0
    %1359 = vmatprep.subr.mxu0 0.0
    %1360 = vmatpush1.msra.mxu0 0.0
    %1361 = vmatprep.subr.mxu0 0.0
    %1362 = vmatpush1.msra.mxu0 0.0
    %1363 = vmatprep.subr.mxu0 0.0
    %1364 = vmatpush1.msra.mxu0 0.0
    %1365 = vmatprep.subr.mxu0 0.0
    %1366 = vmatpush1.msra.mxu0 0.0
    %1367 = vmatprep.subr.mxu0 0.0
    %1368 = vmatpush1.msra.mxu0 0.0
    %1369 = vmatprep.subr.mxu0 0.0
    %1370 = vmatpush1.msra.mxu0 0.0
    %1371 = vmatprep.subr.mxu0 0.0
    %1372 = vmatpush1.msra.mxu0 0.0
    %1373 = vmatprep.subr.mxu0 0.0
    %1374 = vmatpush1.msra.mxu0 0.0
    %1375 = vmatprep.subr.mxu0 0.0
    %1376 = vmatpush1.msra.mxu0 %v1340
    %1377 = vmatprep.subr.mxu0 0.0
    %1378 = vmatpush2.msra.mxu0 0.0
    %1379 = vmatprep.subr.mxu0 0.0
    %1380 = vmatpush2.msra.mxu0 0.0
    %1381 = vmatprep.subr.mxu0 0.0
    %1382 = vmatpush2.msra.mxu0 0.0
    %1383 = vmatprep.subr.mxu0 0.0
    %1384 = vmatpush2.msra.mxu0 0.0
    %1385 = vmatprep.subr.mxu0 0.0
    %1386 = vmatpush2.msra.mxu0 0.0
    %1387 = vmatprep.subr.mxu0 0.0
    %1388 = vmatpush2.msra.mxu0 0.0
    %1389 = vmatprep.subr.mxu0 0.0
    %1390 = vmatpush2.msra.mxu0 0.0
    %1391 = vmatprep.subr.mxu0 0.0
    %1392 = vmatpush2.msra.mxu0 0.0
    %1393 = vmatprep.subr.mxu0 0.0
    %1394 = vmatpush2.msra.mxu0 0.0
    %1395 = vmatprep.subr.mxu0 0.0
    %1396 = vmatpush2.msra.mxu0 0.0
    %1397 = vmatprep.subr.mxu0 0.0
    %1398 = vmatpush2.msra.mxu0 0.0
    %1399 = vmatprep.subr.mxu0 0.0
    %1400 = vmatpush2.msra.mxu0 0.0
    %1401 = vmatprep.subr.mxu0 0.0
    %1402 = vmatpush2.msra.mxu0 0.0
    %1403 = vmatprep.subr.mxu0 0.0
    %1404 = vmatpush2.msra.mxu0 0.0
    %1405 = vmatprep.subr.mxu0 0.0
    %1406 = vmatpush2.msra.mxu0 0.0
    %1407 = vmatprep.subr.mxu0 0.0
    %1408 = vmatpush2.msra.mxu0 0.0
    %1409 = vmatprep.mubr.f32.mxu0 0.0
    %1410 = vmatmul.mubr.f32.gmra.mxu0 %v1343
    %v1411 = vpop.f32.mrf.mxu0
    %v1412 = vadd.f32 0.0, %v1411
    %v1413 = vpop.f32.mrf.mxu0
    %1414 = vdwg.mxu0
    %1415 = vrot.lane.b32.xlu0 %v430, 104
    %v1416 = vpop.permute.xlu0 %1415
    %1417 = vrot.lane.b32.xlu0 %v336, 104
    %v1418 = vpop.permute.xlu0 %1417
    %v1419 = vsel %vm432, %v1416, 0
    %v1421 = vsel %vm432, %v1418, 0
    %1423 = vmatprep.subr.mxu0 0.0
    %1424 = vmatpush1.xpose.msra.mxu0 0.0
    %1425 = vmatprep.subr.mxu0 0.0
    %1426 = vmatpush1.xpose.msra.mxu0 0.0
    %1427 = vmatprep.subr.mxu0 0.0
    %1428 = vmatpush1.xpose.msra.mxu0 0.0
    %1429 = vmatprep.subr.mxu0 0.0
    %1430 = vmatpush1.xpose.msra.mxu0 0.0
    %1431 = vmatprep.subr.mxu0 0.0
    %1432 = vmatpush1.xpose.msra.mxu0 0.0
    %1433 = vmatprep.subr.mxu0 0.0
    %1434 = vmatpush1.xpose.msra.mxu0 0.0
    %1435 = vmatprep.subr.mxu0 0.0
    %1436 = vmatpush1.xpose.msra.mxu0 0.0
    %1437 = vmatprep.subr.mxu0 0.0
    %1438 = vmatpush1.xpose.msra.mxu0 0.0
    %1439 = vmatprep.subr.mxu0 0.0
    %1440 = vmatpush1.xpose.msra.mxu0 0.0
    %1441 = vmatprep.subr.mxu0 0.0
    %1442 = vmatpush1.xpose.msra.mxu0 0.0
    %1443 = vmatprep.subr.mxu0 0.0
    %1444 = vmatpush1.xpose.msra.mxu0 0.0
    %1445 = vmatprep.subr.mxu0 0.0
    %1446 = vmatpush1.xpose.msra.mxu0 0.0
    %1447 = vmatprep.subr.mxu0 0.0
    %1448 = vmatpush1.xpose.msra.mxu0 0.0
    %1449 = vmatprep.subr.mxu0 0.0
    %1450 = vmatpush1.xpose.msra.mxu0 0.0
    %1451 = vmatprep.subr.mxu0 0.0
    %1452 = vmatpush1.xpose.msra.mxu0 0.0
    %1453 = vmatprep.subr.mxu0 0.0
    %1454 = vmatpush1.xpose.msra.mxu0 %v1421
    %1455 = vmatprep.subr.mxu0 0.0
    %1456 = vmatpush2.xpose.msra.mxu0 0.0
    %1457 = vmatprep.subr.mxu0 0.0
    %1458 = vmatpush2.xpose.msra.mxu0 0.0
    %1459 = vmatprep.subr.mxu0 0.0
    %1460 = vmatpush2.xpose.msra.mxu0 0.0
    %1461 = vmatprep.subr.mxu0 0.0
    %1462 = vmatpush2.xpose.msra.mxu0 0.0
    %1463 = vmatprep.subr.mxu0 0.0
    %1464 = vmatpush2.xpose.msra.mxu0 0.0
    %1465 = vmatprep.subr.mxu0 0.0
    %1466 = vmatpush2.xpose.msra.mxu0 0.0
    %1467 = vmatprep.subr.mxu0 0.0
    %1468 = vmatpush2.xpose.msra.mxu0 0.0
    %1469 = vmatprep.subr.mxu0 0.0
    %1470 = vmatpush2.xpose.msra.mxu0 0.0
    %1471 = vmatprep.subr.mxu0 0.0
    %1472 = vmatpush2.xpose.msra.mxu0 0.0
    %1473 = vmatprep.subr.mxu0 0.0
    %1474 = vmatpush2.xpose.msra.mxu0 0.0
    %1475 = vmatprep.subr.mxu0 0.0
    %1476 = vmatpush2.xpose.msra.mxu0 0.0
    %1477 = vmatprep.subr.mxu0 0.0
    %1478 = vmatpush2.xpose.msra.mxu0 0.0
    %1479 = vmatprep.subr.mxu0 0.0
    %1480 = vmatpush2.xpose.msra.mxu0 0.0
    %1481 = vmatprep.subr.mxu0 0.0
    %1482 = vmatpush2.xpose.msra.mxu0 0.0
    %1483 = vmatprep.subr.mxu0 0.0
    %1484 = vmatpush2.xpose.msra.mxu0 0.0
    %1485 = vmatprep.subr.mxu0 0.0
    %1486 = vmatpush2.xpose.msra.mxu0 0.0
    %1487 = vmatprep.mubr.f32.mxu0 0.0
    %1488 = vmatmul.mubr.f32.gmra.mxu0 %v1419
    %v1489 = vpop.f32.mrf.mxu0
    %v1490 = vadd.f32 0.0, %v1489
    %v1491 = vpop.f32.mrf.mxu0
    %1492 = vdwg.mxu0
    %1493 = vrot.lane.b32.xlu0 %v431, 104
    %v1494 = vpop.permute.xlu0 %1493
    %1495 = vrot.lane.b32.xlu0 %v341, 104
    %v1496 = vpop.permute.xlu0 %1495
    %v1497 = vsel %vm432, %v1494, 0
    %v1499 = vsel %vm432, %v1496, 0
    %1501 = vmatprep.subr.mxu0 0.0
    %1502 = vmatpush1.xpose.msra.mxu0 0.0
    %1503 = vmatprep.subr.mxu0 0.0
    %1504 = vmatpush1.xpose.msra.mxu0 0.0
    %1505 = vmatprep.subr.mxu0 0.0
    %1506 = vmatpush1.xpose.msra.mxu0 0.0
    %1507 = vmatprep.subr.mxu0 0.0
    %1508 = vmatpush1.xpose.msra.mxu0 0.0
    %1509 = vmatprep.subr.mxu0 0.0
    %1510 = vmatpush1.xpose.msra.mxu0 0.0
    %1511 = vmatprep.subr.mxu0 0.0
    %1512 = vmatpush1.xpose.msra.mxu0 0.0
    %1513 = vmatprep.subr.mxu0 0.0
    %1514 = vmatpush1.xpose.msra.mxu0 0.0
    %1515 = vmatprep.subr.mxu0 0.0
    %1516 = vmatpush1.xpose.msra.mxu0 0.0
    %1517 = vmatprep.subr.mxu0 0.0
    %1518 = vmatpush1.xpose.msra.mxu0 0.0
    %1519 = vmatprep.subr.mxu0 0.0
    %1520 = vmatpush1.xpose.msra.mxu0 0.0
    %1521 = vmatprep.subr.mxu0 0.0
    %1522 = vmatpush1.xpose.msra.mxu0 0.0
    %1523 = vmatprep.subr.mxu0 0.0
    %1524 = vmatpush1.xpose.msra.mxu0 0.0
    %1525 = vmatprep.subr.mxu0 0.0
    %1526 = vmatpush1.xpose.msra.mxu0 0.0
    %1527 = vmatprep.subr.mxu0 0.0
    %1528 = vmatpush1.xpose.msra.mxu0 0.0
    %1529 = vmatprep.subr.mxu0 0.0
    %1530 = vmatpush1.xpose.msra.mxu0 0.0
    %1531 = vmatprep.subr.mxu0 0.0
    %1532 = vmatpush1.xpose.msra.mxu0 %v1499
    %1533 = vmatprep.subr.mxu0 0.0
    %1534 = vmatpush2.xpose.msra.mxu0 0.0
    %1535 = vmatprep.subr.mxu0 0.0
    %1536 = vmatpush2.xpose.msra.mxu0 0.0
    %1537 = vmatprep.subr.mxu0 0.0
    %1538 = vmatpush2.xpose.msra.mxu0 0.0
    %1539 = vmatprep.subr.mxu0 0.0
    %1540 = vmatpush2.xpose.msra.mxu0 0.0
    %1541 = vmatprep.subr.mxu0 0.0
    %1542 = vmatpush2.xpose.msra.mxu0 0.0
    %1543 = vmatprep.subr.mxu0 0.0
    %1544 = vmatpush2.xpose.msra.mxu0 0.0
    %1545 = vmatprep.subr.mxu0 0.0
    %1546 = vmatpush2.xpose.msra.mxu0 0.0
    %1547 = vmatprep.subr.mxu0 0.0
    %1548 = vmatpush2.xpose.msra.mxu0 0.0
    %1549 = vmatprep.subr.mxu0 0.0
    %1550 = vmatpush2.xpose.msra.mxu0 0.0
    %1551 = vmatprep.subr.mxu0 0.0
    %1552 = vmatpush2.xpose.msra.mxu0 0.0
    %1553 = vmatprep.subr.mxu0 0.0
    %1554 = vmatpush2.xpose.msra.mxu0 0.0
    %1555 = vmatprep.subr.mxu0 0.0
    %1556 = vmatpush2.xpose.msra.mxu0 0.0
    %1557 = vmatprep.subr.mxu0 0.0
    %1558 = vmatpush2.xpose.msra.mxu0 0.0
    %1559 = vmatprep.subr.mxu0 0.0
    %1560 = vmatpush2.xpose.msra.mxu0 0.0
    %1561 = vmatprep.subr.mxu0 0.0
    %1562 = vmatpush2.xpose.msra.mxu0 0.0
    %1563 = vmatprep.subr.mxu0 0.0
    %1564 = vmatpush2.xpose.msra.mxu0 0.0
    %1565 = vmatprep.mubr.f32.mxu0 0.0
    %1566 = vmatmul.mubr.f32.gmra.mxu0 %v1497
    %v1567 = vpop.f32.mrf.mxu0
    %v1568 = vadd.f32 0.0, %v1567
    %v1569 = vpop.f32.mrf.mxu0
    %1570 = vdwg.mxu0
    %v1571 = vsel %vm432, %v1490, -inf
    %1572 = vmax.xlane.f32.xlu0 %v1571
    %v1573 = vpop.xlane.xlu0 %1572
    %v1574 = vsel %vm432, %v1568, -inf
    %1575 = vmax.xlane.f32.xlu0 %v1574
    %v1576 = vpop.xlane.xlu0 %1575
    %v1577 = vsub.f32 %v1490, %v1573
    %v1578 = vsub.f32 %v1568, %v1576
    %v1579 = vmul.f32 %v1577, 1.442695
    %v1580 = vpow.pop %v1579
    %v1581 = vmul.f32 %v1578, 1.442695
    %v1582 = vpow.pop %v1581
    %v1583 = vsel %vm432, %v1580, 0.0
    %1584 = vadd.xlane.f32.xlu0 %v1583
    %v1585 = vpop.xlane.xlu0 %1584
    %v1586 = vsel %vm432, %v1582, 0.0
    %1587 = vadd.xlane.f32.xlu0 %v1586
    %v1588 = vpop.xlane.xlu0 %1587
    %v1589 = vrcp.pop %v1585
    %v1590 = vrcp.pop %v1588
    %v1591 = vmul.f32 %v1580, %v1589
    %v1592 = vmul.f32 %v1582, %v1590
    %1593 = vrot.lane.b32.xlu0 %v422, 104
    %v1594 = vpop.permute.xlu0 %1593
    %v1597 = vsel %vm432, %v1591, 0
    %1599 = vmatprep.subr.mxu0 0.0
    %1600 = vmatpush1.msra.mxu0 0.0
    %1601 = vmatprep.subr.mxu0 0.0
    %1602 = vmatpush1.msra.mxu0 0.0
    %1603 = vmatprep.subr.mxu0 0.0
    %1604 = vmatpush1.msra.mxu0 0.0
    %1605 = vmatprep.subr.mxu0 0.0
    %1606 = vmatpush1.msra.mxu0 0.0
    %1607 = vmatprep.subr.mxu0 0.0
    %1608 = vmatpush1.msra.mxu0 0.0
    %1609 = vmatprep.subr.mxu0 0.0
    %1610 = vmatpush1.msra.mxu0 0.0
    %1611 = vmatprep.subr.mxu0 0.0
    %1612 = vmatpush1.msra.mxu0 0.0
    %1613 = vmatprep.subr.mxu0 0.0
    %1614 = vmatpush1.msra.mxu0 0.0
    %1615 = vmatprep.subr.mxu0 0.0
    %1616 = vmatpush1.msra.mxu0 0.0
    %1617 = vmatprep.subr.mxu0 0.0
    %1618 = vmatpush1.msra.mxu0 0.0
    %1619 = vmatprep.subr.mxu0 0.0
    %1620 = vmatpush1.msra.mxu0 0.0
    %1621 = vmatprep.subr.mxu0 0.0
    %1622 = vmatpush1.msra.mxu0 0.0
    %1623 = vmatprep.subr.mxu0 0.0
    %1624 = vmatpush1.msra.mxu0 0.0
    %1625 = vmatprep.subr.mxu0 0.0
    %1626 = vmatpush1.msra.mxu0 0.0
    %1627 = vmatprep.subr.mxu0 0.0
    %1628 = vmatpush1.msra.mxu0 0.0
    %1629 = vmatprep.subr.mxu0 0.0
    %1630 = vmatpush1.msra.mxu0 %v1594
    %1631 = vmatprep.subr.mxu0 0.0
    %1632 = vmatpush2.msra.mxu0 0.0
    %1633 = vmatprep.subr.mxu0 0.0
    %1634 = vmatpush2.msra.mxu0 0.0
    %1635 = vmatprep.subr.mxu0 0.0
    %1636 = vmatpush2.msra.mxu0 0.0
    %1637 = vmatprep.subr.mxu0 0.0
    %1638 = vmatpush2.msra.mxu0 0.0
    %1639 = vmatprep.subr.mxu0 0.0
    %1640 = vmatpush2.msra.mxu0 0.0
    %1641 = vmatprep.subr.mxu0 0.0
    %1642 = vmatpush2.msra.mxu0 0.0
    %1643 = vmatprep.subr.mxu0 0.0
    %1644 = vmatpush2.msra.mxu0 0.0
    %1645 = vmatprep.subr.mxu0 0.0
    %1646 = vmatpush2.msra.mxu0 0.0
    %1647 = vmatprep.subr.mxu0 0.0
    %1648 = vmatpush2.msra.mxu0 0.0
    %1649 = vmatprep.subr.mxu0 0.0
    %1650 = vmatpush2.msra.mxu0 0.0
    %1651 = vmatprep.subr.mxu0 0.0
    %1652 = vmatpush2.msra.mxu0 0.0
    %1653 = vmatprep.subr.mxu0 0.0
    %1654 = vmatpush2.msra.mxu0 0.0
    %1655 = vmatprep.subr.mxu0 0.0
    %1656 = vmatpush2.msra.mxu0 0.0
    %1657 = vmatprep.subr.mxu0 0.0
    %1658 = vmatpush2.msra.mxu0 0.0
    %1659 = vmatprep.subr.mxu0 0.0
    %1660 = vmatpush2.msra.mxu0 0.0
    %1661 = vmatprep.subr.mxu0 0.0
    %1662 = vmatpush2.msra.mxu0 0.0
    %1663 = vmatprep.mubr.f32.mxu0 0.0
    %1664 = vmatmul.mubr.f32.gmra.mxu0 %v1597
    %v1665 = vpop.f32.mrf.mxu0
    %v1666 = vadd.f32 0.0, %v1665
    %v1667 = vpop.f32.mrf.mxu0
    %1668 = vdwg.mxu0
    %1669 = vrot.lane.b32.xlu0 %v427, 104
    %v1670 = vpop.permute.xlu0 %1669
    %v1673 = vsel %vm432, %v1592, 0
    %1675 = vmatprep.subr.mxu0 0.0
    %1676 = vmatpush1.msra.mxu0 0.0
    %1677 = vmatprep.subr.mxu0 0.0
    %1678 = vmatpush1.msra.mxu0 0.0
    %1679 = vmatprep.subr.mxu0 0.0
    %1680 = vmatpush1.msra.mxu0 0.0
    %1681 = vmatprep.subr.mxu0 0.0
    %1682 = vmatpush1.msra.mxu0 0.0
    %1683 = vmatprep.subr.mxu0 0.0
    %1684 = vmatpush1.msra.mxu0 0.0
    %1685 = vmatprep.subr.mxu0 0.0
    %1686 = vmatpush1.msra.mxu0 0.0
    %1687 = vmatprep.subr.mxu0 0.0
    %1688 = vmatpush1.msra.mxu0 0.0
    %1689 = vmatprep.subr.mxu0 0.0
    %1690 = vmatpush1.msra.mxu0 0.0
    %1691 = vmatprep.subr.mxu0 0.0
    %1692 = vmatpush1.msra.mxu0 0.0
    %1693 = vmatprep.subr.mxu0 0.0
    %1694 = vmatpush1.msra.mxu0 0.0
    %1695 = vmatprep.subr.mxu0 0.0
    %1696 = vmatpush1.msra.mxu0 0.0
    %1697 = vmatprep.subr.mxu0 0.0
    %1698 = vmatpush1.msra.mxu0 0.0
    %1699 = vmatprep.subr.mxu0 0.0
    %1700 = vmatpush1.msra.mxu0 0.0
    %1701 = vmatprep.subr.mxu0 0.0
    %1702 = vmatpush1.msra.mxu0 0.0
    %1703 = vmatprep.subr.mxu0 0.0
    %1704 = vmatpush1.msra.mxu0 0.0
    %1705 = vmatprep.subr.mxu0 0.0
    %1706 = vmatpush1.msra.mxu0 %v1670
    %1707 = vmatprep.subr.mxu0 0.0
    %1708 = vmatpush2.msra.mxu0 0.0
    %1709 = vmatprep.subr.mxu0 0.0
    %1710 = vmatpush2.msra.mxu0 0.0
    %1711 = vmatprep.subr.mxu0 0.0
    %1712 = vmatpush2.msra.mxu0 0.0
    %1713 = vmatprep.subr.mxu0 0.0
    %1714 = vmatpush2.msra.mxu0 0.0
    %1715 = vmatprep.subr.mxu0 0.0
    %1716 = vmatpush2.msra.mxu0 0.0
    %1717 = vmatprep.subr.mxu0 0.0
    %1718 = vmatpush2.msra.mxu0 0.0
    %1719 = vmatprep.subr.mxu0 0.0
    %1720 = vmatpush2.msra.mxu0 0.0
    %1721 = vmatprep.subr.mxu0 0.0
    %1722 = vmatpush2.msra.mxu0 0.0
    %1723 = vmatprep.subr.mxu0 0.0
    %1724 = vmatpush2.msra.mxu0 0.0
    %1725 = vmatprep.subr.mxu0 0.0
    %1726 = vmatpush2.msra.mxu0 0.0
    %1727 = vmatprep.subr.mxu0 0.0
    %1728 = vmatpush2.msra.mxu0 0.0
    %1729 = vmatprep.subr.mxu0 0.0
    %1730 = vmatpush2.msra.mxu0 0.0
    %1731 = vmatprep.subr.mxu0 0.0
    %1732 = vmatpush2.msra.mxu0 0.0
    %1733 = vmatprep.subr.mxu0 0.0
    %1734 = vmatpush2.msra.mxu0 0.0
    %1735 = vmatprep.subr.mxu0 0.0
    %1736 = vmatpush2.msra.mxu0 0.0
    %1737 = vmatprep.subr.mxu0 0.0
    %1738 = vmatpush2.msra.mxu0 0.0
    %1739 = vmatprep.mubr.f32.mxu0 0.0
    %1740 = vmatmul.mubr.f32.gmra.mxu0 %v1673
    %v1741 = vpop.f32.mrf.mxu0
    %v1742 = vadd.f32 0.0, %v1741
    %v1743 = vpop.f32.mrf.mxu0
    %1744 = vdwg.mxu0
    %1747 = vrot.lane.b32.xlu0 %v1005, 8
    %v1748 = vpop.permute.xlu0 %1747
    %1749 = vrot.lane.b32.xlu0 %v1082, 8
    %v1750 = vpop.permute.xlu0 %1749
    %1755 = vrot.lane.b32.xlu0 %v1336, 16
    %v1756 = vpop.permute.xlu0 %1755
    %1757 = vrot.lane.b32.xlu0 %v1412, 16
    %v1758 = vpop.permute.xlu0 %1757
    %1763 = vrot.lane.b32.xlu0 %v1666, 24
    %v1764 = vpop.permute.xlu0 %1763
    %1765 = vrot.lane.b32.xlu0 %v1742, 24
    %v1766 = vpop.permute.xlu0 %1765
    %v1769 = vsel %vm432, %v677, %v1748
    %v1770 = vsel %vm432, %v750, %v1750
    %vm1771 = vcmask 130048
    %v1772 = vsel %vm1771, %v1769, %v1756
    %v1773 = vsel %vm1771, %v1770, %v1758
    %vm1774 = vcmask 195584
    %v1775 = vsel %vm1774, %v1772, %v1764
    %v1776 = vsel %vm1774, %v1773, %v1766
    %v1777 = vld [vmem:[#allocation5] sm:$0xff]
    %v1778 = vld [vmem:[#allocation5 + $0x8] sm:$0xff]
    %v1779 = vld [vmem:[#allocation5 + $0x10] sm:$0xff]
    %v1780 = vld [vmem:[#allocation5 + $0x18] sm:$0xff]
    %v1781 = vld [vmem:[%s8] sm:$0x1]
    %v1783 = vlaneseq
    %v1784 = vshrl.u32 %v1783, 7
    %v1785 = vsub.s32 0, %v1784
    %v1786 = vrot.slane %v1781, %v1785
    %v1789 = vsel %vm122, %v1775, 0
    %v1792 = vsel %vm122, %v1776, 0
    %1794 = vmatprep.subr.mxu0 0.0
    %1795 = vmatpush1.msra.mxu0 0.0
    %1796 = vmatprep.subr.mxu0 0.0
    %1797 = vmatpush1.msra.mxu0 0.0
    %1798 = vmatprep.subr.mxu0 0.0
    %1799 = vmatpush1.msra.mxu0 0.0
    %1800 = vmatprep.subr.mxu0 0.0
    %1801 = vmatpush1.msra.mxu0 0.0
    %1802 = vmatprep.subr.mxu0 0.0
    %1803 = vmatpush1.msra.mxu0 0.0
    %1804 = vmatprep.subr.mxu0 0.0
    %1805 = vmatpush1.msra.mxu0 0.0
    %1806 = vmatprep.subr.mxu0 0.0
    %1807 = vmatpush1.msra.mxu0 0.0
    %1808 = vmatprep.subr.mxu0 0.0
    %1809 = vmatpush1.msra.mxu0 0.0
    %1810 = vmatprep.subr.mxu0 0.0
    %1811 = vmatpush1.msra.mxu0 0.0
    %1812 = vmatprep.subr.mxu0 0.0
    %1813 = vmatpush1.msra.mxu0 0.0
    %1814 = vmatprep.subr.mxu0 0.0
    %1815 = vmatpush1.msra.mxu0 0.0
    %1816 = vmatprep.subr.mxu0 0.0
    %1817 = vmatpush1.msra.mxu0 0.0
    %1818 = vmatprep.subr.mxu0 0.0
    %1819 = vmatpush1.msra.mxu0 %v1780
    %1820 = vmatprep.subr.mxu0 0.0
    %1821 = vmatpush1.msra.mxu0 %v1779
    %1822 = vmatprep.subr.mxu0 0.0
    %1823 = vmatpush1.msra.mxu0 %v1778
    %1824 = vmatprep.subr.mxu0 0.0
    %1825 = vmatpush1.msra.mxu0 %v1777
    %1826 = vmatprep.subr.mxu0 0.0
    %1827 = vmatpush2.msra.mxu0 0.0
    %1828 = vmatprep.subr.mxu0 0.0
    %1829 = vmatpush2.msra.mxu0 0.0
    %1830 = vmatprep.subr.mxu0 0.0
    %1831 = vmatpush2.msra.mxu0 0.0
    %1832 = vmatprep.subr.mxu0 0.0
    %1833 = vmatpush2.msra.mxu0 0.0
    %1834 = vmatprep.subr.mxu0 0.0
    %1835 = vmatpush2.msra.mxu0 0.0
    %1836 = vmatprep.subr.mxu0 0.0
    %1837 = vmatpush2.msra.mxu0 0.0
    %1838 = vmatprep.subr.mxu0 0.0
    %1839 = vmatpush2.msra.mxu0 0.0
    %1840 = vmatprep.subr.mxu0 0.0
    %1841 = vmatpush2.msra.mxu0 0.0
    %1842 = vmatprep.subr.mxu0 0.0
    %1843 = vmatpush2.msra.mxu0 0.0
    %1844 = vmatprep.subr.mxu0 0.0
    %1845 = vmatpush2.msra.mxu0 0.0
    %1846 = vmatprep.subr.mxu0 0.0
    %1847 = vmatpush2.msra.mxu0 0.0
    %1848 = vmatprep.subr.mxu0 0.0
    %1849 = vmatpush2.msra.mxu0 0.0
    %1850 = vmatprep.subr.mxu0 0.0
    %1851 = vmatpush2.msra.mxu0 0.0
    %1852 = vmatprep.subr.mxu0 0.0
    %1853 = vmatpush2.msra.mxu0 0.0
    %1854 = vmatprep.subr.mxu0 0.0
    %1855 = vmatpush2.msra.mxu0 0.0
    %1856 = vmatprep.subr.mxu0 0.0
    %1857 = vmatpush2.msra.mxu0 0.0
    %1858 = vmatprep.mubr.f32.mxu0 0.0
    %1859 = vmatmul.mubr.f32.gmra.mxu0 %v1789
    %v1860 = vpop.f32.mrf.mxu0
    %v1861 = vadd.f32 %v1786, %v1860
    %v1862 = vpop.f32.mrf.mxu0
    %1863 = vmatprep.mubr.f32.mxu0 0.0
    %1864 = vmatmul.mubr.f32.gmra.mxu0 %v1792
    %v1865 = vpop.f32.mrf.mxu0
    %v1866 = vadd.f32 %v1786, %v1865
    %v1867 = vpop.f32.mrf.mxu0
    %1868 = vdwg.mxu0
    %v1869 = vadd.f32 %v118, %v1861
    %v1870 = vadd.f32 %v119, %v1866
    %v1871 = vld [vmem:[%s11] sm:$0x1]
    %v1872 = vld [vmem:[%s12] sm:$0x1]
    %v1873 = vsel %vm122, %v1869, 0.0
    %1874 = vadd.xlane.f32.xlu0 %v1873
    %v1875 = vpop.xlane.xlu0 %1874
    %v1876 = vsel %vm122, %v1870, 0.0
    %1877 = vadd.xlane.f32.xlu0 %v1876
    %v1878 = vpop.xlane.xlu0 %1877
    %v1879 = vmul.f32 %v1875, %v129
    %v1880 = vmul.f32 %v1878, %v129
    %v1881 = vsub.f32 %v1869, %v1879
    %v1882 = vsub.f32 %v1870, %v1880
    %v1883 = vmul.f32 %v1881, %v1881
    %v1884 = vmul.f32 %v1882, %v1882
    %v1885 = vsel %vm122, %v1883, 0.0
    %1886 = vadd.xlane.f32.xlu0 %v1885
    %v1887 = vpop.xlane.xlu0 %1886
    %v1888 = vsel %vm122, %v1884, 0.0
    %1889 = vadd.xlane.f32.xlu0 %v1888
    %v1890 = vpop.xlane.xlu0 %1889
    %v1891 = vmul.f32 %v1887, %v129
    %v1892 = vmul.f32 %v1890, %v129
    %v1893 = vadd.f32 %v1891, 1e-05
    %v1894 = vadd.f32 %v1892, 1e-05
    %v1895 = vrsqrt.pop %v1893
    %v1896 = vrsqrt.pop %v1894
    %v1897 = vmul.f32 %v1881, %v1895
    %v1898 = vmul.f32 %v1882, %v1896
    %v1900 = vlaneseq
    %v1901 = vshrl.u32 %v1900, 7
    %v1902 = vsub.s32 0, %v1901
    %v1903 = vrot.slane %v1871, %v1902
    %v1905 = vmul.f32 %v1897, %v1903
    %v1906 = vmul.f32 %v1898, %v1903
    %v1908 = vlaneseq
    %v1909 = vshrl.u32 %v1908, 7
    %v1910 = vsub.s32 0, %v1909
    %v1911 = vrot.slane %v1872, %v1910
    %v1913 = vadd.f32 %v1905, %v1911
    %v1914 = vadd.f32 %v1906, %v1911
    %v1915 = vld [vmem:[#allocation7] sm:$0xff]
    %v1916 = vld [vmem:[#allocation7 + $0x8] sm:$0xff]
    %v1917 = vld [vmem:[#allocation7 + $0x10] sm:$0xff]
    %v1918 = vld [vmem:[#allocation7 + $0x18] sm:$0xff]
    %v1919 = vld [vmem:[%s14] sm:$0x1]
    %v1921 = vlaneseq
    %v1922 = vshrl.u32 %v1921, 7
    %v1923 = vsub.s32 0, %v1922
    %v1924 = vrot.slane %v1919, %v1923
    %v1927 = vsel %vm122, %v1913, 0
    %v1930 = vsel %vm122, %v1914, 0
    %1932 = vmatprep.subr.mxu0 0.0
    %1933 = vmatpush1.msra.mxu0 0.0
    %1934 = vmatprep.subr.mxu0 0.0
    %1935 = vmatpush1.msra.mxu0 0.0
    %1936 = vmatprep.subr.mxu0 0.0
    %1937 = vmatpush1.msra.mxu0 0.0
    %1938 = vmatprep.subr.mxu0 0.0
    %1939 = vmatpush1.msra.mxu0 0.0
    %1940 = vmatprep.subr.mxu0 0.0
    %1941 = vmatpush1.msra.mxu0 0.0
    %1942 = vmatprep.subr.mxu0 0.0
    %1943 = vmatpush1.msra.mxu0 0.0
    %1944 = vmatprep.subr.mxu0 0.0
    %1945 = vmatpush1.msra.mxu0 0.0
    %1946 = vmatprep.subr.mxu0 0.0
    %1947 = vmatpush1.msra.mxu0 0.0
    %1948 = vmatprep.subr.mxu0 0.0
    %1949 = vmatpush1.msra.mxu0 0.0
    %1950 = vmatprep.subr.mxu0 0.0
    %1951 = vmatpush1.msra.mxu0 0.0
    %1952 = vmatprep.subr.mxu0 0.0
    %1953 = vmatpush1.msra.mxu0 0.0
    %1954 = vmatprep.subr.mxu0 0.0
    %1955 = vmatpush1.msra.mxu0 0.0
    %1956 = vmatprep.subr.mxu0 0.0
    %1957 = vmatpush1.msra.mxu0 %v1918
    %1958 = vmatprep.subr.mxu0 0.0
    %1959 = vmatpush1.msra.mxu0 %v1917
    %1960 = vmatprep.subr.mxu0 0.0
    %1961 = vmatpush1.msra.mxu0 %v1916
    %1962 = vmatprep.subr.mxu0 0.0
    %1963 = vmatpush1.msra.mxu0 %v1915
    %1964 = vmatprep.subr.mxu0 0.0
    %1965 = vmatpush2.msra.mxu0 0.0
    %1966 = vmatprep.subr.mxu0 0.0
    %1967 = vmatpush2.msra.mxu0 0.0
    %1968 = vmatprep.subr.mxu0 0.0
    %1969 = vmatpush2.msra.mxu0 0.0
    %1970 = vmatprep.subr.mxu0 0.0
    %1971 = vmatpush2.msra.mxu0 0.0
    %1972 = vmatprep.subr.mxu0 0.0
    %1973 = vmatpush2.msra.mxu0 0.0
    %1974 = vmatprep.subr.mxu0 0.0
    %1975 = vmatpush2.msra.mxu0 0.0
    %1976 = vmatprep.subr.mxu0 0.0
    %1977 = vmatpush2.msra.mxu0 0.0
    %1978 = vmatprep.subr.mxu0 0.0
    %1979 = vmatpush2.msra.mxu0 0.0
    %1980 = vmatprep.subr.mxu0 0.0
    %1981 = vmatpush2.msra.mxu0 0.0
    %1982 = vmatprep.subr.mxu0 0.0
    %1983 = vmatpush2.msra.mxu0 0.0
    %1984 = vmatprep.subr.mxu0 0.0
    %1985 = vmatpush2.msra.mxu0 0.0
    %1986 = vmatprep.subr.mxu0 0.0
    %1987 = vmatpush2.msra.mxu0 0.0
    %1988 = vmatprep.subr.mxu0 0.0
    %1989 = vmatpush2.msra.mxu0 0.0
    %1990 = vmatprep.subr.mxu0 0.0
    %1991 = vmatpush2.msra.mxu0 0.0
    %1992 = vmatprep.subr.mxu0 0.0
    %1993 = vmatpush2.msra.mxu0 0.0
    %1994 = vmatprep.subr.mxu0 0.0
    %1995 = vmatpush2.msra.mxu0 0.0
    %1996 = vmatprep.mubr.f32.mxu0 0.0
    %1997 = vmatmul.mubr.f32.gmra.mxu0 %v1927
    %v1998 = vpop.f32.mrf.mxu0
    %v1999 = vadd.f32 %v1924, %v1998
    %v2000 = vpop.f32.mrf.mxu0
    %2001 = vmatprep.mubr.f32.mxu0 0.0
    %2002 = vmatmul.mubr.f32.gmra.mxu0 %v1930
    %v2003 = vpop.f32.mrf.mxu0
    %v2004 = vadd.f32 %v1924, %v2003
    %v2005 = vpop.f32.mrf.mxu0
    %2006 = vdwg.mxu0
    %v2007 = vld [vmem:[#allocation8] sm:$0xff]
    %v2008 = vld [vmem:[#allocation8 + $0x8] sm:$0xff]
    %v2009 = vld [vmem:[#allocation8 + $0x10] sm:$0xff]
    %v2010 = vld [vmem:[#allocation8 + $0x18] sm:$0xff]
    %v2011 = vld [vmem:[%s16] sm:$0x1]
    %v2013 = vlaneseq
    %v2014 = vshrl.u32 %v2013, 7
    %v2015 = vsub.s32 0, %v2014
    %v2016 = vrot.slane %v2011, %v2015
    %2018 = vmatprep.subr.mxu0 0.0
    %2019 = vmatpush1.msra.mxu0 0.0
    %2020 = vmatprep.subr.mxu0 0.0
    %2021 = vmatpush1.msra.mxu0 0.0
    %2022 = vmatprep.subr.mxu0 0.0
    %2023 = vmatpush1.msra.mxu0 0.0
    %2024 = vmatprep.subr.mxu0 0.0
    %2025 = vmatpush1.msra.mxu0 0.0
    %2026 = vmatprep.subr.mxu0 0.0
    %2027 = vmatpush1.msra.mxu0 0.0
    %2028 = vmatprep.subr.mxu0 0.0
    %2029 = vmatpush1.msra.mxu0 0.0
    %2030 = vmatprep.subr.mxu0 0.0
    %2031 = vmatpush1.msra.mxu0 0.0
    %2032 = vmatprep.subr.mxu0 0.0
    %2033 = vmatpush1.msra.mxu0 0.0
    %2034 = vmatprep.subr.mxu0 0.0
    %2035 = vmatpush1.msra.mxu0 0.0
    %2036 = vmatprep.subr.mxu0 0.0
    %2037 = vmatpush1.msra.mxu0 0.0
    %2038 = vmatprep.subr.mxu0 0.0
    %2039 = vmatpush1.msra.mxu0 0.0
    %2040 = vmatprep.subr.mxu0 0.0
    %2041 = vmatpush1.msra.mxu0 0.0
    %2042 = vmatprep.subr.mxu0 0.0
    %2043 = vmatpush1.msra.mxu0 %v2010
    %2044 = vmatprep.subr.mxu0 0.0
    %2045 = vmatpush1.msra.mxu0 %v2009
    %2046 = vmatprep.subr.mxu0 0.0
    %2047 = vmatpush1.msra.mxu0 %v2008
    %2048 = vmatprep.subr.mxu0 0.0
    %2049 = vmatpush1.msra.mxu0 %v2007
    %2050 = vmatprep.subr.mxu0 0.0
    %2051 = vmatpush2.msra.mxu0 0.0
    %2052 = vmatprep.subr.mxu0 0.0
    %2053 = vmatpush2.msra.mxu0 0.0
    %2054 = vmatprep.subr.mxu0 0.0
    %2055 = vmatpush2.msra.mxu0 0.0
    %2056 = vmatprep.subr.mxu0 0.0
    %2057 = vmatpush2.msra.mxu0 0.0
    %2058 = vmatprep.subr.mxu0 0.0
    %2059 = vmatpush2.msra.mxu0 0.0
    %2060 = vmatprep.subr.mxu0 0.0
    %2061 = vmatpush2.msra.mxu0 0.0
    %2062 = vmatprep.subr.mxu0 0.0
    %2063 = vmatpush2.msra.mxu0 0.0
    %2064 = vmatprep.subr.mxu0 0.0
    %2065 = vmatpush2.msra.mxu0 0.0
    %2066 = vmatprep.subr.mxu0 0.0
    %2067 = vmatpush2.msra.mxu0 0.0
    %2068 = vmatprep.subr.mxu0 0.0
    %2069 = vmatpush2.msra.mxu0 0.0
    %2070 = vmatprep.subr.mxu0 0.0
    %2071 = vmatpush2.msra.mxu0 0.0
    %2072 = vmatprep.subr.mxu0 0.0
    %2073 = vmatpush2.msra.mxu0 0.0
    %2074 = vmatprep.subr.mxu0 0.0
    %2075 = vmatpush2.msra.mxu0 0.0
    %2076 = vmatprep.subr.mxu0 0.0
    %2077 = vmatpush2.msra.mxu0 0.0
    %2078 = vmatprep.subr.mxu0 0.0
    %2079 = vmatpush2.msra.mxu0 0.0
    %2080 = vmatprep.subr.mxu0 0.0
    %2081 = vmatpush2.msra.mxu0 0.0
    %2082 = vmatprep.mubr.f32.mxu0 0.0
    %2083 = vmatmul.mubr.f32.gmra.mxu0 %v1927
    %v2084 = vpop.f32.mrf.mxu0
    %v2085 = vadd.f32 %v2016, %v2084
    %v2086 = vpop.f32.mrf.mxu0
    %2087 = vmatprep.mubr.f32.mxu0 0.0
    %2088 = vmatmul.mubr.f32.gmra.mxu0 %v1930
    %v2089 = vpop.f32.mrf.mxu0
    %v2090 = vadd.f32 %v2016, %v2089
    %v2091 = vpop.f32.mrf.mxu0
    %2092 = vdwg.mxu0
    %v2093 = vmax.f32 %v1999, 0.0
    %v2094 = vmax.f32 %v2004, 0.0
    %v2095 = vmul.f32 %v2093, %v2085
    %v2096 = vmul.f32 %v2094, %v2090
    %v2097 = vld [vmem:[%s17] sm:$0xff]
    %v2098 = vld [vmem:[%s17 + $0x8] sm:$0xff]
    %v2099 = vld [vmem:[%s17 + $0x10] sm:$0xff]
    %v2100 = vld [vmem:[%s17 + $0x18] sm:$0xff]
    %v2101 = vld [vmem:[%s17 + $0x20] sm:$0xff]
    %v2102 = vld [vmem:[%s17 + $0x28] sm:$0xff]
    %v2103 = vld [vmem:[%s17 + $0x30] sm:$0xff]
    %v2104 = vld [vmem:[%s17 + $0x38] sm:$0xff]
    %v2105 = vld [vmem:[%s18] sm:$0x1]
    %v2107 = vlaneseq
    %v2108 = vshrl.u32 %v2107, 7
    %v2109 = vsub.s32 0, %v2108
    %v2110 = vrot.slane %v2105, %v2109
    %vm2112 = vcmask 523264
    %v2114 = vsel %vm2112, %v2095, 0
    %v2117 = vsel %vm2112, %v2096, 0
    %2119 = vmatprep.subr.mxu0 0.0
    %2120 = vmatpush1.msra.mxu0 0.0
    %2121 = vmatprep.subr.mxu0 0.0
    %2122 = vmatpush1.msra.mxu0 0.0
    %2123 = vmatprep.subr.mxu0 0.0
    %2124 = vmatpush1.msra.mxu0 0.0
    %2125 = vmatprep.subr.mxu0 0.0
    %2126 = vmatpush1.msra.mxu0 0.0
    %2127 = vmatprep.subr.mxu0 0.0
    %2128 = vmatpush1.msra.mxu0 0.0
    %2129 = vmatprep.subr.mxu0 0.0
    %2130 = vmatpush1.msra.mxu0 0.0
    %2131 = vmatprep.subr.mxu0 0.0
    %2132 = vmatpush1.msra.mxu0 0.0
    %2133 = vmatprep.subr.mxu0 0.0
    %2134 = vmatpush1.msra.mxu0 0.0
    %2135 = vmatprep.subr.mxu0 0.0
    %2136 = vmatpush1.msra.mxu0 %v2104
    %2137 = vmatprep.subr.mxu0 0.0
    %2138 = vmatpush1.msra.mxu0 %v2103
    %2139 = vmatprep.subr.mxu0 0.0
    %2140 = vmatpush1.msra.mxu0 %v2102
    %2141 = vmatprep.subr.mxu0 0.0
    %2142 = vmatpush1.msra.mxu0 %v2101
    %2143 = vmatprep.subr.mxu0 0.0
    %2144 = vmatpush1.msra.mxu0 %v2100
    %2145 = vmatprep.subr.mxu0 0.0
    %2146 = vmatpush1.msra.mxu0 %v2099
    %2147 = vmatprep.subr.mxu0 0.0
    %2148 = vmatpush1.msra.mxu0 %v2098
    %2149 = vmatprep.subr.mxu0 0.0
    %2150 = vmatpush1.msra.mxu0 %v2097
    %2151 = vmatprep.subr.mxu0 0.0
    %2152 = vmatpush2.msra.mxu0 0.0
    %2153 = vmatprep.subr.mxu0 0.0
    %2154 = vmatpush2.msra.mxu0 0.0
    %2155 = vmatprep.subr.mxu0 0.0
    %2156 = vmatpush2.msra.mxu0 0.0
    %2157 = vmatprep.subr.mxu0 0.0
    %2158 = vmatpush2.msra.mxu0 0.0
    %2159 = vmatprep.subr.mxu0 0.0
    %2160 = vmatpush2.msra.mxu0 0.0
    %2161 = vmatprep.subr.mxu0 0.0
    %2162 = vmatpush2.msra.mxu0 0.0
    %2163 = vmatprep.subr.mxu0 0.0
    %2164 = vmatpush2.msra.mxu0 0.0
    %2165 = vmatprep.subr.mxu0 0.0
    %2166 = vmatpush2.msra.mxu0 0.0
    %2167 = vmatprep.subr.mxu0 0.0
    %2168 = vmatpush2.msra.mxu0 0.0
    %2169 = vmatprep.subr.mxu0 0.0
    %2170 = vmatpush2.msra.mxu0 0.0
    %2171 = vmatprep.subr.mxu0 0.0
    %2172 = vmatpush2.msra.mxu0 0.0
    %2173 = vmatprep.subr.mxu0 0.0
    %2174 = vmatpush2.msra.mxu0 0.0
    %2175 = vmatprep.subr.mxu0 0.0
    %2176 = vmatpush2.msra.mxu0 0.0
    %2177 = vmatprep.subr.mxu0 0.0
    %2178 = vmatpush2.msra.mxu0 0.0
    %2179 = vmatprep.subr.mxu0 0.0
    %2180 = vmatpush2.msra.mxu0 0.0
    %2181 = vmatprep.subr.mxu0 0.0
    %2182 = vmatpush2.msra.mxu0 0.0
    %2183 = vmatprep.mubr.f32.mxu0 0.0
    %2184 = vmatmul.mubr.f32.gmra.mxu0 %v2114
    %v2185 = vpop.f32.mrf.mxu0
    %v2186 = vadd.f32 %v2110, %v2185
    %v2187 = vpop.f32.mrf.mxu0
    %2188 = vmatprep.mubr.f32.mxu0 0.0
    %2189 = vmatmul.mubr.f32.gmra.mxu0 %v2117
    %v2190 = vpop.f32.mrf.mxu0
    %v2191 = vadd.f32 %v2110, %v2190
    %v2192 = vpop.f32.mrf.mxu0
    %2193 = vdwg.mxu0
    %v2194 = vadd.f32 %v1869, %v2186
    %v2195 = vadd.f32 %v1870, %v2191
    %2196 = vst.msk [vmem:[#allocation10] sm:$0xff] %vm122, %v2194
    %2197 = vst.msk [vmem:[#allocation10 + $0x8] sm:$0xff] %vm122, %v2195
    // Predicated region
    $region94: #{tpu_custom_call.1} parent=1 // pred_check
      _
    $region95: #{tpu_custom_call.1} parent=1 // pred_check_branch
      %2199 = sbr.rel (0) target = $region97
    $region96: #{tpu_custom_call.1} parent=1 // pred_region
      %s2201 = ssub.s32 256, 256
      %2202 = vsyncadd [#allocation4], %s2201
      %s2203 = sshll.u32 [#allocation10], 4
      %s2204 = int_to_ptr.vmem [resolvable:$true] %s2203
      %2209 = dma.vmem_to_hbm [thread:$0]  %s2204, 256, %s19, [#allocation4], 128, 128, 8
    $region97: #{tpu_custom_call.1} parent=1 // pred_fallthru
      _
    // Predicated region
    $region98: #{tpu_custom_call.1} parent=1 // pred_check
      _
    $region99: #{tpu_custom_call.1} parent=1 // pred_check_branch
      %2211 = sbr.rel (0) target = $region101
    $region100: #{tpu_custom_call.1} parent=1 // pred_region
      %2212 = dma.done [#allocation4], 256
    $region101: #{tpu_custom_call.1} parent=1 // pred_fallthru
      _
    %2213 = vsyncpa [#allocation3], 1
    %2214 = vsyncpa [#allocation6], 1
    %2215 = vsyncpa [#allocation9], 1
    %2216 = vsyncpa [#allocation4], 1

// kernel: tpu_custom_call.1
$region0: #{tpu_custom_call.1}
  #allocation0 [shape = 'u32[]', space=smem, size = 0x4, offset = 0x4, fixed_abs, tag = 'smem constant byte address 0x4 - core index']
  #allocation1 [shape = 'u32[144,128]{1,0:T(1,128)}', space=vmem, size = 0x12000, scoped, tag = 'internal scratch']
  %s0 = inlined_call_operand.hbm [shape: f32[2,8,32], index: 0, kind: input, shape index: {}]
  %s1 = inlined_call_operand.vmem [shape: f32[32,32], index: 1, kind: input, shape index: {}]
  %s2 = inlined_call_operand.vmem [shape: f32[1,32], index: 2, kind: input, shape index: {}]
  %s3 = inlined_call_operand.vmem [shape: f32[32,32], index: 3, kind: input, shape index: {}]
  %s4 = inlined_call_operand.vmem [shape: f32[1,32], index: 4, kind: input, shape index: {}]
  %s5 = inlined_call_operand.vmem [shape: f32[32,32], index: 5, kind: input, shape index: {}]
  %s6 = inlined_call_operand.vmem [shape: f32[1,32], index: 6, kind: input, shape index: {}]
  %s7 = inlined_call_operand.hbm [shape: f32[32,32], index: 7, kind: input, shape index: {}]
  %s8 = inlined_call_operand.vmem [shape: f32[1,32], index: 8, kind: input, shape index: {}]
  %s9 = inlined_call_operand.vmem [shape: f32[1,32], index: 9, kind: input, shape index: {}]
  %s10 = inlined_call_operand.vmem [shape: f32[1,32], index: 10, kind: input, shape index: {}]
  %s11 = inlined_call_operand.vmem [shape: f32[1,32], index: 11, kind: input, shape index: {}]
  %s12 = inlined_call_operand.vmem [shape: f32[1,32], index: 12, kind: input, shape index: {}]
  %s13 = inlined_call_operand.hbm [shape: f32[32,64], index: 13, kind: input, shape index: {}]
  %s14 = inlined_call_operand.vmem [shape: f32[1,64], index: 14, kind: input, shape index: {}]
  %s15 = inlined_call_operand.hbm [shape: f32[32,64], index: 15, kind: input, shape index: {}]
  %s16 = inlined_call_operand.vmem [shape: f32[1,64], index: 16, kind: input, shape index: {}]
  %s17 = inlined_call_operand.vmem [shape: f32[64,32], index: 17, kind: input, shape index: {}]
  %s18 = inlined_call_operand.vmem [shape: f32[1,32], index: 18, kind: input, shape index: {}]
  %s19 = inlined_call_operand.hbm [shape: f32[2,8,32], index: 19, kind: output, shape index: {}]
  %s20 = sld [smem:[#allocation0]]
  $region102: #{tpu_custom_call.1} parent=0
    _
  %s22 = ssub.s32 1, %s20
  %s23 = scalar_select 0, %s22, %s20
  $region1: #{tpu_custom_call.1} parent=0
    #allocation2 [shape = 'u8[8192]{0}', space=vmem, size = 0x2000, scoped, tag = 'input window, operand 0, single buffered']
    #allocation3 [shape = 's32[1]{0}', space=sflag, size = 0x4, scoped, tag = 'scoped memory for tpu_custom_call.1']
    #allocation4 [shape = 's32[1]{0}', space=sflag, size = 0x4, scoped, tag = 'scoped memory for tpu_custom_call.1']
    #allocation5 [shape = 'u8[16384]{0}', space=vmem, size = 0x4000, scoped, tag = 'input window, operand 7, single buffered']
    #allocation6 [shape = 's32[1]{0}', space=sflag, size = 0x4, scoped, tag = 'scoped memory for tpu_custom_call.1']
    #allocation7 [shape = 'u8[16384]{0}', space=vmem, size = 0x4000, scoped, tag = 'input window, operand 13, single buffered']
    #allocation8 [shape = 'u8[16384]{0}', space=vmem, size = 0x4000, scoped, tag = 'input window, operand 15, single buffered']
    #allocation9 [shape = 's32[1]{0}', space=sflag, size = 0x4, scoped, tag = 'scoped memory for tpu_custom_call.1']
    #allocation10 [shape = 'u8[8192]{0}', space=vmem, size = 0x2000, scoped, tag = 'output window, operand 0, single buffered']
    %24 = vsyncpa [#allocation3], 0
    %25 = vsyncpa [#allocation6], 0
    %26 = vsyncpa [#allocation9], 0
    %27 = vsyncpa [#allocation4], 0
    // Predicated region
    $region2: #{tpu_custom_call.1} parent=1 // pred_check
      _
    $region3: #{tpu_custom_call.1} parent=1 // pred_check_branch
      %29 = sbr.rel (0) target = $region5
    $region4: #{tpu_custom_call.1} parent=1 // pred_region
      %s31 = ssub.s32 256, 256
      %32 = vsyncadd [#allocation3], %s31
      %s33 = sshll.u32 [#allocation2], 4
      %s34 = int_to_ptr.vmem [resolvable:$true] %s33
      %39 = dma.hbm_to_vmem [thread:$0]  %s0, 256, %s34, [#allocation3], 128, 128, 8
    $region5: #{tpu_custom_call.1} parent=1 // pred_fallthru
      _
    // Predicated region
    $region6: #{tpu_custom_call.1} parent=1 // pred_check
      _
    $region7: #{tpu_custom_call.1} parent=1 // pred_check_branch
      %41 = sbr.rel (0) target = $region9
    $region8: #{tpu_custom_call.1} parent=1 // pred_region
      _
    $region9: #{tpu_custom_call.1} parent=1 // pred_fallthru
      _
    // Predicated region
    $region10: #{tpu_custom_call.1} parent=1 // pred_check
      _
    $region11: #{tpu_custom_call.1} parent=1 // pred_check_branch
      %43 = sbr.rel (0) target = $region13
    $region12: #{tpu_custom_call.1} parent=1 // pred_region
      _
    $region13: #{tpu_custom_call.1} parent=1 // pred_fallthru
      _
    // Predicated region
    $region14: #{tpu_custom_call.1} parent=1 // pred_check
      _
    $region15: #{tpu_custom_call.1} parent=1 // pred_check_branch
      %45 = sbr.rel (0) target = $region17
    $region16: #{tpu_custom_call.1} parent=1 // pred_region
      _
    $region17: #{tpu_custom_call.1} parent=1 // pred_fallthru
      _
    // Predicated region
    $region18: #{tpu_custom_call.1} parent=1 // pred_check
      _
    $region19: #{tpu_custom_call.1} parent=1 // pred_check_branch
      %47 = sbr.rel (0) target = $region21
    $region20: #{tpu_custom_call.1} parent=1 // pred_region
      _
    $region21: #{tpu_custom_call.1} parent=1 // pred_fallthru
      _
    // Predicated region
    $region22: #{tpu_custom_call.1} parent=1 // pred_check
      _
    $region23: #{tpu_custom_call.1} parent=1 // pred_check_branch
      %49 = sbr.rel (0) target = $region25
    $region24: #{tpu_custom_call.1} parent=1 // pred_region
      _
    $region25: #{tpu_custom_call.1} parent=1 // pred_fallthru
      _
    // Predicated region
    $region26: #{tpu_custom_call.1} parent=1 // pred_check
      _
    $region27: #{tpu_custom_call.1} parent=1 // pred_check_branch
      %51 = sbr.rel (0) target = $region29
    $region28: #{tpu_custom_call.1} parent=1 // pred_region
      _
    $region29: #{tpu_custom_call.1} parent=1 // pred_fallthru
      _
    // Predicated region
    $region30: #{tpu_custom_call.1} parent=1 // pred_check
      _
    $region31: #{tpu_custom_call.1} parent=1 // pred_check_branch
      %53 = sbr.rel (0) target = $region33
    $region32: #{tpu_custom_call.1} parent=1 // pred_region
      %s55 = ssub.s32 512, 512
      %56 = vsyncadd [#allocation6], %s55
      %s57 = sshll.u32 [#allocation5], 4
      %s58 = int_to_ptr.vmem [resolvable:$true] %s57
      %63 = dma.hbm_to_vmem [thread:$0]  %s7, 512, %s58, [#allocation6], 128, 128, 8
    $region33: #{tpu_custom_call.1} parent=1 // pred_fallthru
      _
    // Predicated region
    $region34: #{tpu_custom_call.1} parent=1 // pred_check
      _
    $region35: #{tpu_custom_call.1} parent=1 // pred_check_branch
      %65 = sbr.rel (0) target = $region37
    $region36: #{tpu_custom_call.1} parent=1 // pred_region
      _
    $region37: #{tpu_custom_call.1} parent=1 // pred_fallthru
      _
    // Predicated region
    $region38: #{tpu_custom_call.1} parent=1 // pred_check
      _
    $region39: #{tpu_custom_call.1} parent=1 // pred_check_branch
      %67 = sbr.rel (0) target = $region41
    $region40: #{tpu_custom_call.1} parent=1 // pred_region
      _
    $region41: #{tpu_custom_call.1} parent=1 // pred_fallthru
      _
    // Predicated region
    $region42: #{tpu_custom_call.1} parent=1 // pred_check
      _
    $region43: #{tpu_custom_call.1} parent=1 // pred_check_branch
      %69 = sbr.rel (0) target = $region45
    $region44: #{tpu_custom_call.1} parent=1 // pred_region
      _
    $region45: #{tpu_custom_call.1} parent=1 // pred_fallthru
      _
    // Predicated region
    $region46: #{tpu_custom_call.1} parent=1 // pred_check
      _
    $region47: #{tpu_custom_call.1} parent=1 // pred_check_branch
      %71 = sbr.rel (0) target = $region49
    $region48: #{tpu_custom_call.1} parent=1 // pred_region
      _
    $region49: #{tpu_custom_call.1} parent=1 // pred_fallthru
      _
    // Predicated region
    $region50: #{tpu_custom_call.1} parent=1 // pred_check
      _
    $region51: #{tpu_custom_call.1} parent=1 // pred_check_branch
      %73 = sbr.rel (0) target = $region53
    $region52: #{tpu_custom_call.1} parent=1 // pred_region
      _
    $region53: #{tpu_custom_call.1} parent=1 // pred_fallthru
      _
    // Predicated region
    $region54: #{tpu_custom_call.1} parent=1 // pred_check
      _
    $region55: #{tpu_custom_call.1} parent=1 // pred_check_branch
      %75 = sbr.rel (0) target = $region57
    $region56: #{tpu_custom_call.1} parent=1 // pred_region
      %s77 = ssub.s32 512, 512
      %78 = vsyncadd [#allocation6], %s77
      %s79 = sshll.u32 [#allocation7], 4
      %s80 = int_to_ptr.vmem [resolvable:$true] %s79
      %85 = dma.hbm_to_vmem [thread:$0]  %s13, 512, %s80, [#allocation6], 128, 128, 8
    $region57: #{tpu_custom_call.1} parent=1 // pred_fallthru
      _
    // Predicated region
    $region58: #{tpu_custom_call.1} parent=1 // pred_check
      _
    $region59: #{tpu_custom_call.1} parent=1 // pred_check_branch
      %87 = sbr.rel (0) target = $region61
    $region60: #{tpu_custom_call.1} parent=1 // pred_region
      _
    $region61: #{tpu_custom_call.1} parent=1 // pred_fallthru
      _
    // Predicated region
    $region62: #{tpu_custom_call.1} parent=1 // pred_check
      _
    $region63: #{tpu_custom_call.1} parent=1 // pred_check_branch
      %89 = sbr.rel (0) target = $region65
    $region64: #{tpu_custom_call.1} parent=1 // pred_region
      %s91 = ssub.s32 512, 512
      %92 = vsyncadd [#allocation9], %s91
      %s93 = sshll.u32 [#allocation8], 4
      %s94 = int_to_ptr.vmem [resolvable:$true] %s93
      %99 = dma.hbm_to_vmem [thread:$0]  %s15, 512, %s94, [#allocation9], 128, 128, 8
    $region65: #{tpu_custom_call.1} parent=1 // pred_fallthru
      _
    // Predicated region
    $region66: #{tpu_custom_call.1} parent=1 // pred_check
      _
    $region67: #{tpu_custom_call.1} parent=1 // pred_check_branch
      %101 = sbr.rel (0) target = $region69
    $region68: #{tpu_custom_call.1} parent=1 // pred_region
      _
    $region69: #{tpu_custom_call.1} parent=1 // pred_fallthru
      _
    // Predicated region
    $region70: #{tpu_custom_call.1} parent=1 // pred_check
      _
    $region71: #{tpu_custom_call.1} parent=1 // pred_check_branch
      %103 = sbr.rel (0) target = $region73
    $region72: #{tpu_custom_call.1} parent=1 // pred_region
      _
    $region73: #{tpu_custom_call.1} parent=1 // pred_fallthru
      _
    // Predicated region
    $region74: #{tpu_custom_call.1} parent=1 // pred_check
      _
    $region75: #{tpu_custom_call.1} parent=1 // pred_check_branch
      %105 = sbr.rel (0) target = $region77
    $region76: #{tpu_custom_call.1} parent=1 // pred_region
      _
    $region77: #{tpu_custom_call.1} parent=1 // pred_fallthru
      _
    // Predicated region
    $region78: #{tpu_custom_call.1} parent=1 // pred_check
      _
    $region79: #{tpu_custom_call.1} parent=1 // pred_check_branch
      %107 = sbr.rel (0) target = $region81
    $region80: #{tpu_custom_call.1} parent=1 // pred_region
      %108 = dma.done [#allocation3], 256
    $region81: #{tpu_custom_call.1} parent=1 // pred_fallthru
      _
    // Predicated region
    $region82: #{tpu_custom_call.1} parent=1 // pred_check
      _
    $region83: #{tpu_custom_call.1} parent=1 // pred_check_branch
      %110 = sbr.rel (0) target = $region85
    $region84: #{tpu_custom_call.1} parent=1 // pred_region
      %111 = dma.done [#allocation6], 512
    $region85: #{tpu_custom_call.1} parent=1 // pred_fallthru
      _
    // Predicated region
    $region86: #{tpu_custom_call.1} parent=1 // pred_check
      _
    $region87: #{tpu_custom_call.1} parent=1 // pred_check_branch
      %113 = sbr.rel (0) target = $region89
    $region88: #{tpu_custom_call.1} parent=1 // pred_region
      %114 = dma.done [#allocation6], 512
    $region89: #{tpu_custom_call.1} parent=1 // pred_fallthru
      _
    // Predicated region
    $region90: #{tpu_custom_call.1} parent=1 // pred_check
      _
    $region91: #{tpu_custom_call.1} parent=1 // pred_check_branch
      %116 = sbr.rel (0) target = $region93
    $region92: #{tpu_custom_call.1} parent=1 // pred_region
      %117 = dma.done [#allocation9], 512
    $region93: #{tpu_custom_call.1} parent=1 // pred_fallthru
      _
    %v118 = vld [vmem:[#allocation2] sm:$0xff]
    %v119 = vld [vmem:[#allocation2 + $0x8] sm:$0xff]
    %v120 = vld [vmem:[%s9] sm:$0x1]
    %v121 = vld [vmem:[%s10] sm:$0x1]
    %vm122 = vcmask 261120
    %v123 = vsel %vm122, %v118, 0.0
    %124 = vadd.xlane.f32.xlu0 %v123
    %v125 = vpop.xlane.xlu0 %124
    %v126 = vsel %vm122, %v119, 0.0
    %127 = vadd.xlane.f32.xlu0 %v126
    %v128 = vpop.xlane.xlu0 %127
    %v129 = vrcp.pop 32.0
    %v130 = vmul.f32 %v125, %v129
    %v131 = vmul.f32 %v128, %v129
    %v132 = vsub.f32 %v118, %v130
    %v133 = vsub.f32 %v119, %v131
    %v134 = vmul.f32 %v132, %v132
    %v135 = vmul.f32 %v133, %v133
    %v136 = vsel %vm122, %v134, 0.0
    %137 = vadd.xlane.f32.xlu0 %v136
    %v138 = vpop.xlane.xlu0 %137
    %v139 = vsel %vm122, %v135, 0.0
    %140 = vadd.xlane.f32.xlu0 %v139
    %v141 = vpop.xlane.xlu0 %140
    %v142 = vmul.f32 %v138, %v129
    %v143 = vmul.f32 %v141, %v129
    %v144 = vadd.f32 %v142, 1e-05
    %v145 = vadd.f32 %v143, 1e-05
    %v146 = vrsqrt.pop %v144
    %v147 = vrsqrt.pop %v145
    %v148 = vmul.f32 %v132, %v146
    %v149 = vmul.f32 %v133, %v147
    %v151 = vlaneseq
    %v152 = vshrl.u32 %v151, 7
    %v153 = vsub.s32 0, %v152
    %v154 = vrot.slane %v120, %v153
    %v156 = vmul.f32 %v148, %v154
    %v157 = vmul.f32 %v149, %v154
    %v159 = vlaneseq
    %v160 = vshrl.u32 %v159, 7
    %v161 = vsub.s32 0, %v160
    %v162 = vrot.slane %v121, %v161
    %v164 = vadd.f32 %v156, %v162
    %v165 = vadd.f32 %v157, %v162
    %v166 = vld [vmem:[%s1] sm:$0xff]
    %v167 = vld [vmem:[%s1 + $0x8] sm:$0xff]
    %v168 = vld [vmem:[%s1 + $0x10] sm:$0xff]
    %v169 = vld [vmem:[%s1 + $0x18] sm:$0xff]
    %v170 = vld [vmem:[%s2] sm:$0x1]
    %v172 = vlaneseq
    %v173 = vshrl.u32 %v172, 7
    %v174 = vsub.s32 0, %v173
    %v175 = vrot.slane %v170, %v174
    %v178 = vsel %vm122, %v164, 0
    %v181 = vsel %vm122, %v165, 0
    %183 = vmatprep.subr.mxu0 0.0
    %184 = vmatpush1.msra.mxu0 0.0
    %185 = vmatprep.subr.mxu0 0.0
    %186 = vmatpush1.msra.mxu0 0.0
    %187 = vmatprep.subr.mxu0 0.0
    %188 = vmatpush1.msra.mxu0 0.0
    %189 = vmatprep.subr.mxu0 0.0
    %190 = vmatpush1.msra.mxu0 0.0
    %191 = vmatprep.subr.mxu0 0.0
    %192 = vmatpush1.msra.mxu0 0.0
    %193 = vmatprep.subr.mxu0 0.0
    %194 = vmatpush1.msra.mxu0 0.0
    %195 = vmatprep.subr.mxu0 0.0
    %196 = vmatpush1.msra.mxu0 0.0
    %197 = vmatprep.subr.mxu0 0.0
    %198 = vmatpush1.msra.mxu0 0.0
    %199 = vmatprep.subr.mxu0 0.0
    %200 = vmatpush1.msra.mxu0 0.0
    %201 = vmatprep.subr.mxu0 0.0
    %202 = vmatpush1.msra.mxu0 0.0
    %203 = vmatprep.subr.mxu0 0.0
    %204 = vmatpush1.msra.mxu0 0.0
    %205 = vmatprep.subr.mxu0 0.0
    %206 = vmatpush1.msra.mxu0 0.0
    %207 = vmatprep.subr.mxu0 0.0
    %208 = vmatpush1.msra.mxu0 %v169
    %209 = vmatprep.subr.mxu0 0.0
    %210 = vmatpush1.msra.mxu0 %v168
    %211 = vmatprep.subr.mxu0 0.0
    %212 = vmatpush1.msra.mxu0 %v167
    %213 = vmatprep.subr.mxu0 0.0
    %214 = vmatpush1.msra.mxu0 %v166
    %215 = vmatprep.subr.mxu0 0.0
    %216 = vmatpush2.msra.mxu0 0.0
    %217 = vmatprep.subr.mxu0 0.0
    %218 = vmatpush2.msra.mxu0 0.0
    %219 = vmatprep.subr.mxu0 0.0
    %220 = vmatpush2.msra.mxu0 0.0
    %221 = vmatprep.subr.mxu0 0.0
    %222 = vmatpush2.msra.mxu0 0.0
    %223 = vmatprep.subr.mxu0 0.0
    %224 = vmatpush2.msra.mxu0 0.0
    %225 = vmatprep.subr.mxu0 0.0
    %226 = vmatpush2.msra.mxu0 0.0
    %227 = vmatprep.subr.mxu0 0.0
    %228 = vmatpush2.msra.mxu0 0.0
    %229 = vmatprep.subr.mxu0 0.0
    %230 = vmatpush2.msra.mxu0 0.0
    %231 = vmatprep.subr.mxu0 0.0
    %232 = vmatpush2.msra.mxu0 0.0
    %233 = vmatprep.subr.mxu0 0.0
    %234 = vmatpush2.msra.mxu0 0.0
    %235 = vmatprep.subr.mxu0 0.0
    %236 = vmatpush2.msra.mxu0 0.0
    %237 = vmatprep.subr.mxu0 0.0
    %238 = vmatpush2.msra.mxu0 0.0
    %239 = vmatprep.subr.mxu0 0.0
    %240 = vmatpush2.msra.mxu0 0.0
    %241 = vmatprep.subr.mxu0 0.0
    %242 = vmatpush2.msra.mxu0 0.0
    %243 = vmatprep.subr.mxu0 0.0
    %244 = vmatpush2.msra.mxu0 0.0
    %245 = vmatprep.subr.mxu0 0.0
    %246 = vmatpush2.msra.mxu0 0.0
    %247 = vmatprep.mubr.f32.mxu0 0.0
    %248 = vmatmul.mubr.f32.gmra.mxu0 %v178
    %v249 = vpop.f32.mrf.mxu0
    %v250 = vadd.f32 %v175, %v249
    %v251 = vpop.f32.mrf.mxu0
    %252 = vmatprep.mubr.f32.mxu0 0.0
    %253 = vmatmul.mubr.f32.gmra.mxu0 %v181
    %v254 = vpop.f32.mrf.mxu0
    %v255 = vadd.f32 %v175, %v254
    %v256 = vpop.f32.mrf.mxu0
    %257 = vdwg.mxu0
    %v258 = vld [vmem:[%s3] sm:$0xff]
    %v259 = vld [vmem:[%s3 + $0x8] sm:$0xff]
    %v260 = vld [vmem:[%s3 + $0x10] sm:$0xff]
    %v261 = vld [vmem:[%s3 + $0x18] sm:$0xff]
    %v262 = vld [vmem:[%s4] sm:$0x1]
    %v264 = vlaneseq
    %v265 = vshrl.u32 %v264, 7
    %v266 = vsub.s32 0, %v265
    %v267 = vrot.slane %v262, %v266
    %269 = vmatprep.subr.mxu0 0.0
    %270 = vmatpush1.msra.mxu0 0.0
    %271 = vmatprep.subr.mxu0 0.0
    %272 = vmatpush1.msra.mxu0 0.0
    %273 = vmatprep.subr.mxu0 0.0
    %274 = vmatpush1.msra.mxu0 0.0
    %275 = vmatprep.subr.mxu0 0.0
    %276 = vmatpush1.msra.mxu0 0.0
    %277 = vmatprep.subr.mxu0 0.0
    %278 = vmatpush1.msra.mxu0 0.0
    %279 = vmatprep.subr.mxu0 0.0
    %280 = vmatpush1.msra.mxu0 0.0
    %281 = vmatprep.subr.mxu0 0.0
    %282 = vmatpush1.msra.mxu0 0.0
    %283 = vmatprep.subr.mxu0 0.0
    %284 = vmatpush1.msra.mxu0 0.0
    %285 = vmatprep.subr.mxu0 0.0
    %286 = vmatpush1.msra.mxu0 0.0
    %287 = vmatprep.subr.mxu0 0.0
    %288 = vmatpush1.msra.mxu0 0.0
    %289 = vmatprep.subr.mxu0 0.0
    %290 = vmatpush1.msra.mxu0 0.0
    %291 = vmatprep.subr.mxu0 0.0
    %292 = vmatpush1.msra.mxu0 0.0
    %293 = vmatprep.subr.mxu0 0.0
    %294 = vmatpush1.msra.mxu0 %v261
    %295 = vmatprep.subr.mxu0 0.0
    %296 = vmatpush1.msra.mxu0 %v260
    %297 = vmatprep.subr.mxu0 0.0
    %298 = vmatpush1.msra.mxu0 %v259
    %299 = vmatprep.subr.mxu0 0.0
    %300 = vmatpush1.msra.mxu0 %v258
    %301 = vmatprep.subr.mxu0 0.0
    %302 = vmatpush2.msra.mxu0 0.0
    %303 = vmatprep.subr.mxu0 0.0
    %304 = vmatpush2.msra.mxu0 0.0
    %305 = vmatprep.subr.mxu0 0.0
    %306 = vmatpush2.msra.mxu0 0.0
    %307 = vmatprep.subr.mxu0 0.0
    %308 = vmatpush2.msra.mxu0 0.0
    %309 = vmatprep.subr.mxu0 0.0
    %310 = vmatpush2.msra.mxu0 0.0
    %311 = vmatprep.subr.mxu0 0.0
    %312 = vmatpush2.msra.mxu0 0.0
    %313 = vmatprep.subr.mxu0 0.0
    %314 = vmatpush2.msra.mxu0 0.0
    %315 = vmatprep.subr.mxu0 0.0
    %316 = vmatpush2.msra.mxu0 0.0
    %317 = vmatprep.subr.mxu0 0.0
    %318 = vmatpush2.msra.mxu0 0.0
    %319 = vmatprep.subr.mxu0 0.0
    %320 = vmatpush2.msra.mxu0 0.0
    %321 = vmatprep.subr.mxu0 0.0
    %322 = vmatpush2.msra.mxu0 0.0
    %323 = vmatprep.subr.mxu0 0.0
    %324 = vmatpush2.msra.mxu0 0.0
    %325 = vmatprep.subr.mxu0 0.0
    %326 = vmatpush2.msra.mxu0 0.0
    %327 = vmatprep.subr.mxu0 0.0
    %328 = vmatpush2.msra.mxu0 0.0
    %329 = vmatprep.subr.mxu0 0.0
    %330 = vmatpush2.msra.mxu0 0.0
    %331 = vmatprep.subr.mxu0 0.0
    %332 = vmatpush2.msra.mxu0 0.0
    %333 = vmatprep.mubr.f32.mxu0 0.0
    %334 = vmatmul.mubr.f32.gmra.mxu0 %v178
    %v335 = vpop.f32.mrf.mxu0
    %v336 = vadd.f32 %v267, %v335
    %v337 = vpop.f32.mrf.mxu0
    %338 = vmatprep.mubr.f32.mxu0 0.0
    %339 = vmatmul.mubr.f32.gmra.mxu0 %v181
    %v340 = vpop.f32.mrf.mxu0
    %v341 = vadd.f32 %v267, %v340
    %v342 = vpop.f32.mrf.mxu0
    %343 = vdwg.mxu0
    %v344 = vld [vmem:[%s5] sm:$0xff]
    %v345 = vld [vmem:[%s5 + $0x8] sm:$0xff]
    %v346 = vld [vmem:[%s5 + $0x10] sm:$0xff]
    %v347 = vld [vmem:[%s5 + $0x18] sm:$0xff]
    %v348 = vld [vmem:[%s6] sm:$0x1]
    %v350 = vlaneseq
    %v351 = vshrl.u32 %v350, 7
    %v352 = vsub.s32 0, %v351
    %v353 = vrot.slane %v348, %v352
    %355 = vmatprep.subr.mxu0 0.0
    %356 = vmatpush1.msra.mxu0 0.0
    %357 = vmatprep.subr.mxu0 0.0
    %358 = vmatpush1.msra.mxu0 0.0
    %359 = vmatprep.subr.mxu0 0.0
    %360 = vmatpush1.msra.mxu0 0.0
    %361 = vmatprep.subr.mxu0 0.0
    %362 = vmatpush1.msra.mxu0 0.0
    %363 = vmatprep.subr.mxu0 0.0
    %364 = vmatpush1.msra.mxu0 0.0
    %365 = vmatprep.subr.mxu0 0.0
    %366 = vmatpush1.msra.mxu0 0.0
    %367 = vmatprep.subr.mxu0 0.0
    %368 = vmatpush1.msra.mxu0 0.0
    %369 = vmatprep.subr.mxu0 0.0
    %370 = vmatpush1.msra.mxu0 0.0
    %371 = vmatprep.subr.mxu0 0.0
    %372 = vmatpush1.msra.mxu0 0.0
    %373 = vmatprep.subr.mxu0 0.0
    %374 = vmatpush1.msra.mxu0 0.0
    %375 = vmatprep.subr.mxu0 0.0
    %376 = vmatpush1.msra.mxu0 0.0
    %377 = vmatprep.subr.mxu0 0.0
    %378 = vmatpush1.msra.mxu0 0.0
    %379 = vmatprep.subr.mxu0 0.0
    %380 = vmatpush1.msra.mxu0 %v347
    %381 = vmatprep.subr.mxu0 0.0
    %382 = vmatpush1.msra.mxu0 %v346
    %383 = vmatprep.subr.mxu0 0.0
    %384 = vmatpush1.msra.mxu0 %v345
    %385 = vmatprep.subr.mxu0 0.0
    %386 = vmatpush1.msra.mxu0 %v344
    %387 = vmatprep.subr.mxu0 0.0
    %388 = vmatpush2.msra.mxu0 0.0
    %389 = vmatprep.subr.mxu0 0.0
    %390 = vmatpush2.msra.mxu0 0.0
    %391 = vmatprep.subr.mxu0 0.0
    %392 = vmatpush2.msra.mxu0 0.0
    %393 = vmatprep.subr.mxu0 0.0
    %394 = vmatpush2.msra.mxu0 0.0
    %395 = vmatprep.subr.mxu0 0.0
    %396 = vmatpush2.msra.mxu0 0.0
    %397 = vmatprep.subr.mxu0 0.0
    %398 = vmatpush2.msra.mxu0 0.0
    %399 = vmatprep.subr.mxu0 0.0
    %400 = vmatpush2.msra.mxu0 0.0
    %401 = vmatprep.subr.mxu0 0.0
    %402 = vmatpush2.msra.mxu0 0.0
    %403 = vmatprep.subr.mxu0 0.0
    %404 = vmatpush2.msra.mxu0 0.0
    %405 = vmatprep.subr.mxu0 0.0
    %406 = vmatpush2.msra.mxu0 0.0
    %407 = vmatprep.subr.mxu0 0.0
    %408 = vmatpush2.msra.mxu0 0.0
    %409 = vmatprep.subr.mxu0 0.0
    %410 = vmatpush2.msra.mxu0 0.0
    %411 = vmatprep.subr.mxu0 0.0
    %412 = vmatpush2.msra.mxu0 0.0
    %413 = vmatprep.subr.mxu0 0.0
    %414 = vmatpush2.msra.mxu0 0.0
    %415 = vmatprep.subr.mxu0 0.0
    %416 = vmatpush2.msra.mxu0 0.0
    %417 = vmatprep.subr.mxu0 0.0
    %418 = vmatpush2.msra.mxu0 0.0
    %419 = vmatprep.mubr.f32.mxu0 0.0
    %420 = vmatmul.mubr.f32.gmra.mxu0 %v178
    %v421 = vpop.f32.mrf.mxu0
    %v422 = vadd.f32 %v353, %v421
    %v423 = vpop.f32.mrf.mxu0
    %424 = vmatprep.mubr.f32.mxu0 0.0
    %425 = vmatmul.mubr.f32.gmra.mxu0 %v181
    %v426 = vpop.f32.mrf.mxu0
    %v427 = vadd.f32 %v353, %v426
    %v428 = vpop.f32.mrf.mxu0
    %429 = vdwg.mxu0
    %v430 = vmul.f32 %v250, 0.35355338
    %v431 = vmul.f32 %v255, 0.35355338
    %vm432 = vcmask 64512
    %v434 = vsel %vm432, %v430, 0
    %v437 = vsel %vm432, %v336, 0
    %439 = vmatprep.subr.mxu0 0.0
    %440 = vmatpush1.xpose.msra.mxu0 0.0
    %441 = vmatprep.subr.mxu0 0.0
    %442 = vmatpush1.xpose.msra.mxu0 0.0
    %443 = vmatprep.subr.mxu0 0.0
    %444 = vmatpush1.xpose.msra.mxu0 0.0
    %445 = vmatprep.subr.mxu0 0.0
    %446 = vmatpush1.xpose.msra.mxu0 0.0
    %447 = vmatprep.subr.mxu0 0.0
    %448 = vmatpush1.xpose.msra.mxu0 0.0
    %449 = vmatprep.subr.mxu0 0.0
    %450 = vmatpush1.xpose.msra.mxu0 0.0
    %451 = vmatprep.subr.mxu0 0.0
    %452 = vmatpush1.xpose.msra.mxu0 0.0
    %453 = vmatprep.subr.mxu0 0.0
    %454 = vmatpush1.xpose.msra.mxu0 0.0
    %455 = vmatprep.subr.mxu0 0.0
    %456 = vmatpush1.xpose.msra.mxu0 0.0
    %457 = vmatprep.subr.mxu0 0.0
    %458 = vmatpush1.xpose.msra.mxu0 0.0
    %459 = vmatprep.subr.mxu0 0.0
    %460 = vmatpush1.xpose.msra.mxu0 0.0
    %461 = vmatprep.subr.mxu0 0.0
    %462 = vmatpush1.xpose.msra.mxu0 0.0
    %463 = vmatprep.subr.mxu0 0.0
    %464 = vmatpush1.xpose.msra.mxu0 0.0
    %465 = vmatprep.subr.mxu0 0.0
    %466 = vmatpush1.xpose.msra.mxu0 0.0
    %467 = vmatprep.subr.mxu0 0.0
    %468 = vmatpush1.xpose.msra.mxu0 0.0
    %469 = vmatprep.subr.mxu0 0.0
    %470 = vmatpush1.xpose.msra.mxu0 %v437
    %471 = vmatprep.subr.mxu0 0.0
    %472 = vmatpush2.xpose.msra.mxu0 0.0
    %473 = vmatprep.subr.mxu0 0.0
    %474 = vmatpush2.xpose.msra.mxu0 0.0
    %475 = vmatprep.subr.mxu0 0.0
    %476 = vmatpush2.xpose.msra.mxu0 0.0
    %477 = vmatprep.subr.mxu0 0.0
    %478 = vmatpush2.xpose.msra.mxu0 0.0
    %479 = vmatprep.subr.mxu0 0.0
    %480 = vmatpush2.xpose.msra.mxu0 0.0
    %481 = vmatprep.subr.mxu0 0.0
    %482 = vmatpush2.xpose.msra.mxu0 0.0
    %483 = vmatprep.subr.mxu0 0.0
    %484 = vmatpush2.xpose.msra.mxu0 0.0
    %485 = vmatprep.subr.mxu0 0.0
    %486 = vmatpush2.xpose.msra.mxu0 0.0
    %487 = vmatprep.subr.mxu0 0.0
    %488 = vmatpush2.xpose.msra.mxu0 0.0
    %489 = vmatprep.subr.mxu0 0.0
    %490 = vmatpush2.xpose.msra.mxu0 0.0
    %491 = vmatprep.subr.mxu0 0.0
    %492 = vmatpush2.xpose.msra.mxu0 0.0
    %493 = vmatprep.subr.mxu0 0.0
    %494 = vmatpush2.xpose.msra.mxu0 0.0
    %495 = vmatprep.subr.mxu0 0.0
    %496 = vmatpush2.xpose.msra.mxu0 0.0
    %497 = vmatprep.subr.mxu0 0.0
    %498 = vmatpush2.xpose.msra.mxu0 0.0
    %499 = vmatprep.subr.mxu0 0.0
    %500 = vmatpush2.xpose.msra.mxu0 0.0
    %501 = vmatprep.subr.mxu0 0.0
    %502 = vmatpush2.xpose.msra.mxu0 0.0
    %503 = vmatprep.mubr.f32.mxu0 0.0
    %504 = vmatmul.mubr.f32.gmra.mxu0 %v434
    %v505 = vpop.f32.mrf.mxu0
    %v506 = vadd.f32 0.0, %v505
    %v507 = vpop.f32.mrf.mxu0
    %508 = vdwg.mxu0
    %v510 = vsel %vm432, %v431, 0
    %v513 = vsel %vm432, %v341, 0
    %515 = vmatprep.subr.mxu0 0.0
    %516 = vmatpush1.xpose.msra.mxu0 0.0
    %517 = vmatprep.subr.mxu0 0.0
    %518 = vmatpush1.xpose.msra.mxu0 0.0
    %519 = vmatprep.subr.mxu0 0.0
    %520 = vmatpush1.xpose.msra.mxu0 0.0
    %521 = vmatprep.subr.mxu0 0.0
    %522 = vmatpush1.xpose.msra.mxu0 0.0
    %523 = vmatprep.subr.mxu0 0.0
    %524 = vmatpush1.xpose.msra.mxu0 0.0
    %525 = vmatprep.subr.mxu0 0.0
    %526 = vmatpush1.xpose.msra.mxu0 0.0
    %527 = vmatprep.subr.mxu0 0.0
    %528 = vmatpush1.xpose.msra.mxu0 0.0
    %529 = vmatprep.subr.mxu0 0.0
    %530 = vmatpush1.xpose.msra.mxu0 0.0
    %531 = vmatprep.subr.mxu0 0.0
    %532 = vmatpush1.xpose.msra.mxu0 0.0
    %533 = vmatprep.subr.mxu0 0.0
    %534 = vmatpush1.xpose.msra.mxu0 0.0
    %535 = vmatprep.subr.mxu0 0.0
    %536 = vmatpush1.xpose.msra.mxu0 0.0
    %537 = vmatprep.subr.mxu0 0.0
    %538 = vmatpush1.xpose.msra.mxu0 0.0
    %539 = vmatprep.subr.mxu0 0.0
    %540 = vmatpush1.xpose.msra.mxu0 0.0
    %541 = vmatprep.subr.mxu0 0.0
    %542 = vmatpush1.xpose.msra.mxu0 0.0
    %543 = vmatprep.subr.mxu0 0.0
    %544 = vmatpush1.xpose.msra.mxu0 0.0
    %545 = vmatprep.subr.mxu0 0.0
    %546 = vmatpush1.xpose.msra.mxu0 %v513
    %547 = vmatprep.subr.mxu0 0.0
    %548 = vmatpush2.xpose.msra.mxu0 0.0
    %549 = vmatprep.subr.mxu0 0.0
    %550 = vmatpush2.xpose.msra.mxu0 0.0
    %551 = vmatprep.subr.mxu0 0.0
    %552 = vmatpush2.xpose.msra.mxu0 0.0
    %553 = vmatprep.subr.mxu0 0.0
    %554 = vmatpush2.xpose.msra.mxu0 0.0
    %555 = vmatprep.subr.mxu0 0.0
    %556 = vmatpush2.xpose.msra.mxu0 0.0
    %557 = vmatprep.subr.mxu0 0.0
    %558 = vmatpush2.xpose.msra.mxu0 0.0
    %559 = vmatprep.subr.mxu0 0.0
    %560 = vmatpush2.xpose.msra.mxu0 0.0
    %561 = vmatprep.subr.mxu0 0.0
    %562 = vmatpush2.xpose.msra.mxu0 0.0
    %563 = vmatprep.subr.mxu0 0.0
    %564 = vmatpush2.xpose.msra.mxu0 0.0
    %565 = vmatprep.subr.mxu0 0.0
    %566 = vmatpush2.xpose.msra.mxu0 0.0
    %567 = vmatprep.subr.mxu0 0.0
    %568 = vmatpush2.xpose.msra.mxu0 0.0
    %569 = vmatprep.subr.mxu0 0.0
    %570 = vmatpush2.xpose.msra.mxu0 0.0
    %571 = vmatprep.subr.mxu0 0.0
    %572 = vmatpush2.xpose.msra.mxu0 0.0
    %573 = vmatprep.subr.mxu0 0.0
    %574 = vmatpush2.xpose.msra.mxu0 0.0
    %575 = vmatprep.subr.mxu0 0.0
    %576 = vmatpush2.xpose.msra.mxu0 0.0
    %577 = vmatprep.subr.mxu0 0.0
    %578 = vmatpush2.xpose.msra.mxu0 0.0
    %579 = vmatprep.mubr.f32.mxu0 0.0
    %580 = vmatmul.mubr.f32.gmra.mxu0 %v510
    %v581 = vpop.f32.mrf.mxu0
    %v582 = vadd.f32 0.0, %v581
    %v583 = vpop.f32.mrf.mxu0
    %584 = vdwg.mxu0
    %v585 = vsel %vm432, %v506, -inf
    %586 = vmax.xlane.f32.xlu0 %v585
    %v587 = vpop.xlane.xlu0 %586
    %v588 = vsel %vm432, %v582, -inf
    %589 = vmax.xlane.f32.xlu0 %v588
    %v590 = vpop.xlane.xlu0 %589
    %v591 = vsub.f32 %v506, %v587
    %v592 = vsub.f32 %v582, %v590
    %v593 = vmul.f32 %v591, 1.442695
    %v594 = vpow.pop %v593
    %v595 = vmul.f32 %v592, 1.442695
    %v596 = vpow.pop %v595
    %v597 = vsel %vm432, %v594, 0.0
    %598 = vadd.xlane.f32.xlu0 %v597
    %v599 = vpop.xlane.xlu0 %598
    %v600 = vsel %vm432, %v596, 0.0
    %601 = vadd.xlane.f32.xlu0 %v600
    %v602 = vpop.xlane.xlu0 %601
    %v603 = vrcp.pop %v599
    %v604 = vrcp.pop %v602
    %v605 = vmul.f32 %v594, %v603
    %v606 = vmul.f32 %v596, %v604
    %v608 = vsel %vm432, %v605, 0
    %610 = vmatprep.subr.mxu0 0.0
    %611 = vmatpush1.msra.mxu0 0.0
    %612 = vmatprep.subr.mxu0 0.0
    %613 = vmatpush1.msra.mxu0 0.0
    %614 = vmatprep.subr.mxu0 0.0
    %615 = vmatpush1.msra.mxu0 0.0
    %616 = vmatprep.subr.mxu0 0.0
    %617 = vmatpush1.msra.mxu0 0.0
    %618 = vmatprep.subr.mxu0 0.0
    %619 = vmatpush1.msra.mxu0 0.0
    %620 = vmatprep.subr.mxu0 0.0
    %621 = vmatpush1.msra.mxu0 0.0
    %622 = vmatprep.subr.mxu0 0.0
    %623 = vmatpush1.msra.mxu0 0.0
    %624 = vmatprep.subr.mxu0 0.0
    %625 = vmatpush1.msra.mxu0 0.0
    %626 = vmatprep.subr.mxu0 0.0
    %627 = vmatpush1.msra.mxu0 0.0
    %628 = vmatprep.subr.mxu0 0.0
    %629 = vmatpush1.msra.mxu0 0.0
    %630 = vmatprep.subr.mxu0 0.0
    %631 = vmatpush1.msra.mxu0 0.0
    %632 = vmatprep.subr.mxu0 0.0
    %633 = vmatpush1.msra.mxu0 0.0
    %634 = vmatprep.subr.mxu0 0.0
    %635 = vmatpush1.msra.mxu0 0.0
    %636 = vmatprep.subr.mxu0 0.0
    %637 = vmatpush1.msra.mxu0 0.0
    %638 = vmatprep.subr.mxu0 0.0
    %639 = vmatpush1.msra.mxu0 0.0
    %640 = vmatprep.subr.mxu0 0.0
    %641 = vmatpush1.msra.mxu0 %v422
    %642 = vmatprep.subr.mxu0 0.0
    %643 = vmatpush2.msra.mxu0 0.0
    %644 = vmatprep.subr.mxu0 0.0
    %645 = vmatpush2.msra.mxu0 0.0
    %646 = vmatprep.subr.mxu0 0.0
    %647 = vmatpush2.msra.mxu0 0.0
    %648 = vmatprep.subr.mxu0 0.0
    %649 = vmatpush2.msra.mxu0 0.0
    %650 = vmatprep.subr.mxu0 0.0
    %651 = vmatpush2.msra.mxu0 0.0
    %652 = vmatprep.subr.mxu0 0.0
    %653 = vmatpush2.msra.mxu0 0.0
    %654 = vmatprep.subr.mxu0 0.0
    %655 = vmatpush2.msra.mxu0 0.0
    %656 = vmatprep.subr.mxu0 0.0
    %657 = vmatpush2.msra.mxu0 0.0
    %658 = vmatprep.subr.mxu0 0.0
    %659 = vmatpush2.msra.mxu0 0.0
    %660 = vmatprep.subr.mxu0 0.0
    %661 = vmatpush2.msra.mxu0 0.0
    %662 = vmatprep.subr.mxu0 0.0
    %663 = vmatpush2.msra.mxu0 0.0
    %664 = vmatprep.subr.mxu0 0.0
    %665 = vmatpush2.msra.mxu0 0.0
    %666 = vmatprep.subr.mxu0 0.0
    %667 = vmatpush2.msra.mxu0 0.0
    %668 = vmatprep.subr.mxu0 0.0
    %669 = vmatpush2.msra.mxu0 0.0
    %670 = vmatprep.subr.mxu0 0.0
    %671 = vmatpush2.msra.mxu0 0.0
    %672 = vmatprep.subr.mxu0 0.0
    %673 = vmatpush2.msra.mxu0 0.0
    %674 = vmatprep.mubr.f32.mxu0 0.0
    %675 = vmatmul.mubr.f32.gmra.mxu0 %v608
    %v676 = vpop.f32.mrf.mxu0
    %v677 = vadd.f32 0.0, %v676
    %v678 = vpop.f32.mrf.mxu0
    %679 = vdwg.mxu0
    %v681 = vsel %vm432, %v606, 0
    %683 = vmatprep.subr.mxu0 0.0
    %684 = vmatpush1.msra.mxu0 0.0
    %685 = vmatprep.subr.mxu0 0.0
    %686 = vmatpush1.msra.mxu0 0.0
    %687 = vmatprep.subr.mxu0 0.0
    %688 = vmatpush1.msra.mxu0 0.0
    %689 = vmatprep.subr.mxu0 0.0
    %690 = vmatpush1.msra.mxu0 0.0
    %691 = vmatprep.subr.mxu0 0.0
    %692 = vmatpush1.msra.mxu0 0.0
    %693 = vmatprep.subr.mxu0 0.0
    %694 = vmatpush1.msra.mxu0 0.0
    %695 = vmatprep.subr.mxu0 0.0
    %696 = vmatpush1.msra.mxu0 0.0
    %697 = vmatprep.subr.mxu0 0.0
    %698 = vmatpush1.msra.mxu0 0.0
    %699 = vmatprep.subr.mxu0 0.0
    %700 = vmatpush1.msra.mxu0 0.0
    %701 = vmatprep.subr.mxu0 0.0
    %702 = vmatpush1.msra.mxu0 0.0
    %703 = vmatprep.subr.mxu0 0.0
    %704 = vmatpush1.msra.mxu0 0.0
    %705 = vmatprep.subr.mxu0 0.0
    %706 = vmatpush1.msra.mxu0 0.0
    %707 = vmatprep.subr.mxu0 0.0
    %708 = vmatpush1.msra.mxu0 0.0
    %709 = vmatprep.subr.mxu0 0.0
    %710 = vmatpush1.msra.mxu0 0.0
    %711 = vmatprep.subr.mxu0 0.0
    %712 = vmatpush1.msra.mxu0 0.0
    %713 = vmatprep.subr.mxu0 0.0
    %714 = vmatpush1.msra.mxu0 %v427
    %715 = vmatprep.subr.mxu0 0.0
    %716 = vmatpush2.msra.mxu0 0.0
    %717 = vmatprep.subr.mxu0 0.0
    %718 = vmatpush2.msra.mxu0 0.0
    %719 = vmatprep.subr.mxu0 0.0
    %720 = vmatpush2.msra.mxu0 0.0
    %721 = vmatprep.subr.mxu0 0.0
    %722 = vmatpush2.msra.mxu0 0.0
    %723 = vmatprep.subr.mxu0 0.0
    %724 = vmatpush2.msra.mxu0 0.0
    %725 = vmatprep.subr.mxu0 0.0
    %726 = vmatpush2.msra.mxu0 0.0
    %727 = vmatprep.subr.mxu0 0.0
    %728 = vmatpush2.msra.mxu0 0.0
    %729 = vmatprep.subr.mxu0 0.0
    %730 = vmatpush2.msra.mxu0 0.0
    %731 = vmatprep.subr.mxu0 0.0
    %732 = vmatpush2.msra.mxu0 0.0
    %733 = vmatprep.subr.mxu0 0.0
    %734 = vmatpush2.msra.mxu0 0.0
    %735 = vmatprep.subr.mxu0 0.0
    %736 = vmatpush2.msra.mxu0 0.0
    %737 = vmatprep.subr.mxu0 0.0
    %738 = vmatpush2.msra.mxu0 0.0
    %739 = vmatprep.subr.mxu0 0.0
    %740 = vmatpush2.msra.mxu0 0.0
    %741 = vmatprep.subr.mxu0 0.0
    %742 = vmatpush2.msra.mxu0 0.0
    %743 = vmatprep.subr.mxu0 0.0
    %744 = vmatpush2.msra.mxu0 0.0
    %745 = vmatprep.subr.mxu0 0.0
    %746 = vmatpush2.msra.mxu0 0.0
    %747 = vmatprep.mubr.f32.mxu0 0.0
    %748 = vmatmul.mubr.f32.gmra.mxu0 %v681
    %v749 = vpop.f32.mrf.mxu0
    %v750 = vadd.f32 0.0, %v749
    %v751 = vpop.f32.mrf.mxu0
    %752 = vdwg.mxu0
    %753 = vrot.lane.b32.xlu0 %v430, 120
    %v754 = vpop.permute.xlu0 %753
    %755 = vrot.lane.b32.xlu0 %v336, 120
    %v756 = vpop.permute.xlu0 %755
    %v757 = vsel %vm432, %v754, 0
    %v759 = vsel %vm432, %v756, 0
    %761 = vmatprep.subr.mxu0 0.0
    %762 = vmatpush1.xpose.msra.mxu0 0.0
    %763 = vmatprep.subr.mxu0 0.0
    %764 = vmatpush1.xpose.msra.mxu0 0.0
    %765 = vmatprep.subr.mxu0 0.0
    %766 = vmatpush1.xpose.msra.mxu0 0.0
    %767 = vmatprep.subr.mxu0 0.0
    %768 = vmatpush1.xpose.msra.mxu0 0.0
    %769 = vmatprep.subr.mxu0 0.0
    %770 = vmatpush1.xpose.msra.mxu0 0.0
    %771 = vmatprep.subr.mxu0 0.0
    %772 = vmatpush1.xpose.msra.mxu0 0.0
    %773 = vmatprep.subr.mxu0 0.0
    %774 = vmatpush1.xpose.msra.mxu0 0.0
    %775 = vmatprep.subr.mxu0 0.0
    %776 = vmatpush1.xpose.msra.mxu0 0.0
    %777 = vmatprep.subr.mxu0 0.0
    %778 = vmatpush1.xpose.msra.mxu0 0.0
    %779 = vmatprep.subr.mxu0 0.0
    %780 = vmatpush1.xpose.msra.mxu0 0.0
    %781 = vmatprep.subr.mxu0 0.0
    %782 = vmatpush1.xpose.msra.mxu0 0.0
    %783 = vmatprep.subr.mxu0 0.0
    %784 = vmatpush1.xpose.msra.mxu0 0.0
    %785 = vmatprep.subr.mxu0 0.0
    %786 = vmatpush1.xpose.msra.mxu0 0.0
    %787 = vmatprep.subr.mxu0 0.0
    %788 = vmatpush1.xpose.msra.mxu0 0.0
    %789 = vmatprep.subr.mxu0 0.0
    %790 = vmatpush1.xpose.msra.mxu0 0.0
    %791 = vmatprep.subr.mxu0 0.0
    %792 = vmatpush1.xpose.msra.mxu0 %v759
    %793 = vmatprep.subr.mxu0 0.0
    %794 = vmatpush2.xpose.msra.mxu0 0.0
    %795 = vmatprep.subr.mxu0 0.0
    %796 = vmatpush2.xpose.msra.mxu0 0.0
    %797 = vmatprep.subr.mxu0 0.0
    %798 = vmatpush2.xpose.msra.mxu0 0.0
    %799 = vmatprep.subr.mxu0 0.0
    %800 = vmatpush2.xpose.msra.mxu0 0.0
    %801 = vmatprep.subr.mxu0 0.0
    %802 = vmatpush2.xpose.msra.mxu0 0.0
    %803 = vmatprep.subr.mxu0 0.0
    %804 = vmatpush2.xpose.msra.mxu0 0.0
    %805 = vmatprep.subr.mxu0 0.0
    %806 = vmatpush2.xpose.msra.mxu0 0.0
    %807 = vmatprep.subr.mxu0 0.0
    %808 = vmatpush2.xpose.msra.mxu0 0.0
    %809 = vmatprep.subr.mxu0 0.0
    %810 = vmatpush2.xpose.msra.mxu0 0.0
    %811 = vmatprep.subr.mxu0 0.0
    %812 = vmatpush2.xpose.msra.mxu0 0.0
    %813 = vmatprep.subr.mxu0 0.0
    %814 = vmatpush2.xpose.msra.mxu0 0.0
    %815 = vmatprep.subr.mxu0 0.0
    %816 = vmatpush2.xpose.msra.mxu0 0.0
    %817 = vmatprep.subr.mxu0 0.0
    %818 = vmatpush2.xpose.msra.mxu0 0.0
    %819 = vmatprep.subr.mxu0 0.0
    %820 = vmatpush2.xpose.msra.mxu0 0.0
    %821 = vmatprep.subr.mxu0 0.0
    %822 = vmatpush2.xpose.msra.mxu0 0.0
    %823 = vmatprep.subr.mxu0 0.0
    %824 = vmatpush2.xpose.msra.mxu0 0.0
    %825 = vmatprep.mubr.f32.mxu0 0.0
    %826 = vmatmul.mubr.f32.gmra.mxu0 %v757
    %v827 = vpop.f32.mrf.mxu0
    %v828 = vadd.f32 0.0, %v827
    %v829 = vpop.f32.mrf.mxu0
    %830 = vdwg.mxu0
    %831 = vrot.lane.b32.xlu0 %v431, 120
    %v832 = vpop.permute.xlu0 %831
    %833 = vrot.lane.b32.xlu0 %v341, 120
    %v834 = vpop.permute.xlu0 %833
    %v835 = vsel %vm432, %v832, 0
    %v837 = vsel %vm432, %v834, 0
    %839 = vmatprep.subr.mxu0 0.0
    %840 = vmatpush1.xpose.msra.mxu0 0.0
    %841 = vmatprep.subr.mxu0 0.0
    %842 = vmatpush1.xpose.msra.mxu0 0.0
    %843 = vmatprep.subr.mxu0 0.0
    %844 = vmatpush1.xpose.msra.mxu0 0.0
    %845 = vmatprep.subr.mxu0 0.0
    %846 = vmatpush1.xpose.msra.mxu0 0.0
    %847 = vmatprep.subr.mxu0 0.0
    %848 = vmatpush1.xpose.msra.mxu0 0.0
    %849 = vmatprep.subr.mxu0 0.0
    %850 = vmatpush1.xpose.msra.mxu0 0.0
    %851 = vmatprep.subr.mxu0 0.0
    %852 = vmatpush1.xpose.msra.mxu0 0.0
    %853 = vmatprep.subr.mxu0 0.0
    %854 = vmatpush1.xpose.msra.mxu0 0.0
    %855 = vmatprep.subr.mxu0 0.0
    %856 = vmatpush1.xpose.msra.mxu0 0.0
    %857 = vmatprep.subr.mxu0 0.0
    %858 = vmatpush1.xpose.msra.mxu0 0.0
    %859 = vmatprep.subr.mxu0 0.0
    %860 = vmatpush1.xpose.msra.mxu0 0.0
    %861 = vmatprep.subr.mxu0 0.0
    %862 = vmatpush1.xpose.msra.mxu0 0.0
    %863 = vmatprep.subr.mxu0 0.0
    %864 = vmatpush1.xpose.msra.mxu0 0.0
    %865 = vmatprep.subr.mxu0 0.0
    %866 = vmatpush1.xpose.msra.mxu0 0.0
    %867 = vmatprep.subr.mxu0 0.0
    %868 = vmatpush1.xpose.msra.mxu0 0.0
    %869 = vmatprep.subr.mxu0 0.0
    %870 = vmatpush1.xpose.msra.mxu0 %v837
    %871 = vmatprep.subr.mxu0 0.0
    %872 = vmatpush2.xpose.msra.mxu0 0.0
    %873 = vmatprep.subr.mxu0 0.0
    %874 = vmatpush2.xpose.msra.mxu0 0.0
    %875 = vmatprep.subr.mxu0 0.0
    %876 = vmatpush2.xpose.msra.mxu0 0.0
    %877 = vmatprep.subr.mxu0 0.0
    %878 = vmatpush2.xpose.msra.mxu0 0.0
    %879 = vmatprep.subr.mxu0 0.0
    %880 = vmatpush2.xpose.msra.mxu0 0.0
    %881 = vmatprep.subr.mxu0 0.0
    %882 = vmatpush2.xpose.msra.mxu0 0.0
    %883 = vmatprep.subr.mxu0 0.0
    %884 = vmatpush2.xpose.msra.mxu0 0.0
    %885 = vmatprep.subr.mxu0 0.0
    %886 = vmatpush2.xpose.msra.mxu0 0.0
    %887 = vmatprep.subr.mxu0 0.0
    %888 = vmatpush2.xpose.msra.mxu0 0.0
    %889 = vmatprep.subr.mxu0 0.0
    %890 = vmatpush2.xpose.msra.mxu0 0.0
    %891 = vmatprep.subr.mxu0 0.0
    %892 = vmatpush2.xpose.msra.mxu0 0.0
    %893 = vmatprep.subr.mxu0 0.0
    %894 = vmatpush2.xpose.msra.mxu0 0.0
    %895 = vmatprep.subr.mxu0 0.0
    %896 = vmatpush2.xpose.msra.mxu0 0.0
    %897 = vmatprep.subr.mxu0 0.0
    %898 = vmatpush2.xpose.msra.mxu0 0.0
    %899 = vmatprep.subr.mxu0 0.0
    %900 = vmatpush2.xpose.msra.mxu0 0.0
    %901 = vmatprep.subr.mxu0 0.0
    %902 = vmatpush2.xpose.msra.mxu0 0.0
    %903 = vmatprep.mubr.f32.mxu0 0.0
    %904 = vmatmul.mubr.f32.gmra.mxu0 %v835
    %v905 = vpop.f32.mrf.mxu0
    %v906 = vadd.f32 0.0, %v905
    %v907 = vpop.f32.mrf.mxu0
    %908 = vdwg.mxu0
    %v909 = vsel %vm432, %v828, -inf
    %910 = vmax.xlane.f32.xlu0 %v909
    %v911 = vpop.xlane.xlu0 %910
    %v912 = vsel %vm432, %v906, -inf
    %913 = vmax.xlane.f32.xlu0 %v912
    %v914 = vpop.xlane.xlu0 %913
    %v915 = vsub.f32 %v828, %v911
    %v916 = vsub.f32 %v906, %v914
    %v917 = vmul.f32 %v915, 1.442695
    %v918 = vpow.pop %v917
    %v919 = vmul.f32 %v916, 1.442695
    %v920 = vpow.pop %v919
    %v921 = vsel %vm432, %v918, 0.0
    %922 = vadd.xlane.f32.xlu0 %v921
    %v923 = vpop.xlane.xlu0 %922
    %v924 = vsel %vm432, %v920, 0.0
    %925 = vadd.xlane.f32.xlu0 %v924
    %v926 = vpop.xlane.xlu0 %925
    %v927 = vrcp.pop %v923
    %v928 = vrcp.pop %v926
    %v929 = vmul.f32 %v918, %v927
    %v930 = vmul.f32 %v920, %v928
    %932 = vrot.lane.b32.xlu0 %v422, 120
    %v933 = vpop.permute.xlu0 %932
    %v936 = vsel %vm432, %v929, 0
    %938 = vmatprep.subr.mxu0 0.0
    %939 = vmatpush1.msra.mxu0 0.0
    %940 = vmatprep.subr.mxu0 0.0
    %941 = vmatpush1.msra.mxu0 0.0
    %942 = vmatprep.subr.mxu0 0.0
    %943 = vmatpush1.msra.mxu0 0.0
    %944 = vmatprep.subr.mxu0 0.0
    %945 = vmatpush1.msra.mxu0 0.0
    %946 = vmatprep.subr.mxu0 0.0
    %947 = vmatpush1.msra.mxu0 0.0
    %948 = vmatprep.subr.mxu0 0.0
    %949 = vmatpush1.msra.mxu0 0.0
    %950 = vmatprep.subr.mxu0 0.0
    %951 = vmatpush1.msra.mxu0 0.0
    %952 = vmatprep.subr.mxu0 0.0
    %953 = vmatpush1.msra.mxu0 0.0
    %954 = vmatprep.subr.mxu0 0.0
    %955 = vmatpush1.msra.mxu0 0.0
    %956 = vmatprep.subr.mxu0 0.0
    %957 = vmatpush1.msra.mxu0 0.0
    %958 = vmatprep.subr.mxu0 0.0
    %959 = vmatpush1.msra.mxu0 0.0
    %960 = vmatprep.subr.mxu0 0.0
    %961 = vmatpush1.msra.mxu0 0.0
    %962 = vmatprep.subr.mxu0 0.0
    %963 = vmatpush1.msra.mxu0 0.0
    %964 = vmatprep.subr.mxu0 0.0
    %965 = vmatpush1.msra.mxu0 0.0
    %966 = vmatprep.subr.mxu0 0.0
    %967 = vmatpush1.msra.mxu0 0.0
    %968 = vmatprep.subr.mxu0 0.0
    %969 = vmatpush1.msra.mxu0 %v933
    %970 = vmatprep.subr.mxu0 0.0
    %971 = vmatpush2.msra.mxu0 0.0
    %972 = vmatprep.subr.mxu0 0.0
    %973 = vmatpush2.msra.mxu0 0.0
    %974 = vmatprep.subr.mxu0 0.0
    %975 = vmatpush2.msra.mxu0 0.0
    %976 = vmatprep.subr.mxu0 0.0
    %977 = vmatpush2.msra.mxu0 0.0
    %978 = vmatprep.subr.mxu0 0.0
    %979 = vmatpush2.msra.mxu0 0.0
    %980 = vmatprep.subr.mxu0 0.0
    %981 = vmatpush2.msra.mxu0 0.0
    %982 = vmatprep.subr.mxu0 0.0
    %983 = vmatpush2.msra.mxu0 0.0
    %984 = vmatprep.subr.mxu0 0.0
    %985 = vmatpush2.msra.mxu0 0.0
    %986 = vmatprep.subr.mxu0 0.0
    %987 = vmatpush2.msra.mxu0 0.0
    %988 = vmatprep.subr.mxu0 0.0
    %989 = vmatpush2.msra.mxu0 0.0
    %990 = vmatprep.subr.mxu0 0.0
    %991 = vmatpush2.msra.mxu0 0.0
    %992 = vmatprep.subr.mxu0 0.0
    %993 = vmatpush2.msra.mxu0 0.0
    %994 = vmatprep.subr.mxu0 0.0
    %995 = vmatpush2.msra.mxu0 0.0
    %996 = vmatprep.subr.mxu0 0.0
    %997 = vmatpush2.msra.mxu0 0.0
    %998 = vmatprep.subr.mxu0 0.0
    %999 = vmatpush2.msra.mxu0 0.0
    %1000 = vmatprep.subr.mxu0 0.0
    %1001 = vmatpush2.msra.mxu0 0.0
    %1002 = vmatprep.mubr.f32.mxu0 0.0
    %1003 = vmatmul.mubr.f32.gmra.mxu0 %v936
    %v1004 = vpop.f32.mrf.mxu0
    %v1005 = vadd.f32 0.0, %v1004
    %v1006 = vpop.f32.mrf.mxu0
    %1007 = vdwg.mxu0
    %1009 = vrot.lane.b32.xlu0 %v427, 120
    %v1010 = vpop.permute.xlu0 %1009
    %v1013 = vsel %vm432, %v930, 0
    %1015 = vmatprep.subr.mxu0 0.0
    %1016 = vmatpush1.msra.mxu0 0.0
    %1017 = vmatprep.subr.mxu0 0.0
    %1018 = vmatpush1.msra.mxu0 0.0
    %1019 = vmatprep.subr.mxu0 0.0
    %1020 = vmatpush1.msra.mxu0 0.0
    %1021 = vmatprep.subr.mxu0 0.0
    %1022 = vmatpush1.msra.mxu0 0.0
    %1023 = vmatprep.subr.mxu0 0.0
    %1024 = vmatpush1.msra.mxu0 0.0
    %1025 = vmatprep.subr.mxu0 0.0
    %1026 = vmatpush1.msra.mxu0 0.0
    %1027 = vmatprep.subr.mxu0 0.0
    %1028 = vmatpush1.msra.mxu0 0.0
    %1029 = vmatprep.subr.mxu0 0.0
    %1030 = vmatpush1.msra.mxu0 0.0
    %1031 = vmatprep.subr.mxu0 0.0
    %1032 = vmatpush1.msra.mxu0 0.0
    %1033 = vmatprep.subr.mxu0 0.0
    %1034 = vmatpush1.msra.mxu0 0.0
    %1035 = vmatprep.subr.mxu0 0.0
    %1036 = vmatpush1.msra.mxu0 0.0
    %1037 = vmatprep.subr.mxu0 0.0
    %1038 = vmatpush1.msra.mxu0 0.0
    %1039 = vmatprep.subr.mxu0 0.0
    %1040 = vmatpush1.msra.mxu0 0.0
    %1041 = vmatprep.subr.mxu0 0.0
    %1042 = vmatpush1.msra.mxu0 0.0
    %1043 = vmatprep.subr.mxu0 0.0
    %1044 = vmatpush1.msra.mxu0 0.0
    %1045 = vmatprep.subr.mxu0 0.0
    %1046 = vmatpush1.msra.mxu0 %v1010
    %1047 = vmatprep.subr.mxu0 0.0
    %1048 = vmatpush2.msra.mxu0 0.0
    %1049 = vmatprep.subr.mxu0 0.0
    %1050 = vmatpush2.msra.mxu0 0.0
    %1051 = vmatprep.subr.mxu0 0.0
    %1052 = vmatpush2.msra.mxu0 0.0
    %1053 = vmatprep.subr.mxu0 0.0
    %1054 = vmatpush2.msra.mxu0 0.0
    %1055 = vmatprep.subr.mxu0 0.0
    %1056 = vmatpush2.msra.mxu0 0.0
    %1057 = vmatprep.subr.mxu0 0.0
    %1058 = vmatpush2.msra.mxu0 0.0
    %1059 = vmatprep.subr.mxu0 0.0
    %1060 = vmatpush2.msra.mxu0 0.0
    %1061 = vmatprep.subr.mxu0 0.0
    %1062 = vmatpush2.msra.mxu0 0.0
    %1063 = vmatprep.subr.mxu0 0.0
    %1064 = vmatpush2.msra.mxu0 0.0
    %1065 = vmatprep.subr.mxu0 0.0
    %1066 = vmatpush2.msra.mxu0 0.0
    %1067 = vmatprep.subr.mxu0 0.0
    %1068 = vmatpush2.msra.mxu0 0.0
    %1069 = vmatprep.subr.mxu0 0.0
    %1070 = vmatpush2.msra.mxu0 0.0
    %1071 = vmatprep.subr.mxu0 0.0
    %1072 = vmatpush2.msra.mxu0 0.0
    %1073 = vmatprep.subr.mxu0 0.0
    %1074 = vmatpush2.msra.mxu0 0.0
    %1075 = vmatprep.subr.mxu0 0.0
    %1076 = vmatpush2.msra.mxu0 0.0
    %1077 = vmatprep.subr.mxu0 0.0
    %1078 = vmatpush2.msra.mxu0 0.0
    %1079 = vmatprep.mubr.f32.mxu0 0.0
    %1080 = vmatmul.mubr.f32.gmra.mxu0 %v1013
    %v1081 = vpop.f32.mrf.mxu0
    %v1082 = vadd.f32 0.0, %v1081
    %v1083 = vpop.f32.mrf.mxu0
    %1084 = vdwg.mxu0
    %1085 = vrot.lane.b32.xlu0 %v430, 112
    %v1086 = vpop.permute.xlu0 %1085
    %1087 = vrot.lane.b32.xlu0 %v336, 112
    %v1088 = vpop.permute.xlu0 %1087
    %v1089 = vsel %vm432, %v1086, 0
    %v1091 = vsel %vm432, %v1088, 0
    %1093 = vmatprep.subr.mxu0 0.0
    %1094 = vmatpush1.xpose.msra.mxu0 0.0
    %1095 = vmatprep.subr.mxu0 0.0
    %1096 = vmatpush1.xpose.msra.mxu0 0.0
    %1097 = vmatprep.subr.mxu0 0.0
    %1098 = vmatpush1.xpose.msra.mxu0 0.0
    %1099 = vmatprep.subr.mxu0 0.0
    %1100 = vmatpush1.xpose.msra.mxu0 0.0
    %1101 = vmatprep.subr.mxu0 0.0
    %1102 = vmatpush1.xpose.msra.mxu0 0.0
    %1103 = vmatprep.subr.mxu0 0.0
    %1104 = vmatpush1.xpose.msra.mxu0 0.0
    %1105 = vmatprep.subr.mxu0 0.0
    %1106 = vmatpush1.xpose.msra.mxu0 0.0
    %1107 = vmatprep.subr.mxu0 0.0
    %1108 = vmatpush1.xpose.msra.mxu0 0.0
    %1109 = vmatprep.subr.mxu0 0.0
    %1110 = vmatpush1.xpose.msra.mxu0 0.0
    %1111 = vmatprep.subr.mxu0 0.0
    %1112 = vmatpush1.xpose.msra.mxu0 0.0
    %1113 = vmatprep.subr.mxu0 0.0
    %1114 = vmatpush1.xpose.msra.mxu0 0.0
    %1115 = vmatprep.subr.mxu0 0.0
    %1116 = vmatpush1.xpose.msra.mxu0 0.0
    %1117 = vmatprep.subr.mxu0 0.0
    %1118 = vmatpush1.xpose.msra.mxu0 0.0
    %1119 = vmatprep.subr.mxu0 0.0
    %1120 = vmatpush1.xpose.msra.mxu0 0.0
    %1121 = vmatprep.subr.mxu0 0.0
    %1122 = vmatpush1.xpose.msra.mxu0 0.0
    %1123 = vmatprep.subr.mxu0 0.0
    %1124 = vmatpush1.xpose.msra.mxu0 %v1091
    %1125 = vmatprep.subr.mxu0 0.0
    %1126 = vmatpush2.xpose.msra.mxu0 0.0
    %1127 = vmatprep.subr.mxu0 0.0
    %1128 = vmatpush2.xpose.msra.mxu0 0.0
    %1129 = vmatprep.subr.mxu0 0.0
    %1130 = vmatpush2.xpose.msra.mxu0 0.0
    %1131 = vmatprep.subr.mxu0 0.0
    %1132 = vmatpush2.xpose.msra.mxu0 0.0
    %1133 = vmatprep.subr.mxu0 0.0
    %1134 = vmatpush2.xpose.msra.mxu0 0.0
    %1135 = vmatprep.subr.mxu0 0.0
    %1136 = vmatpush2.xpose.msra.mxu0 0.0
    %1137 = vmatprep.subr.mxu0 0.0
    %1138 = vmatpush2.xpose.msra.mxu0 0.0
    %1139 = vmatprep.subr.mxu0 0.0
    %1140 = vmatpush2.xpose.msra.mxu0 0.0
    %1141 = vmatprep.subr.mxu0 0.0
    %1142 = vmatpush2.xpose.msra.mxu0 0.0
    %1143 = vmatprep.subr.mxu0 0.0
    %1144 = vmatpush2.xpose.msra.mxu0 0.0
    %1145 = vmatprep.subr.mxu0 0.0
    %1146 = vmatpush2.xpose.msra.mxu0 0.0
    %1147 = vmatprep.subr.mxu0 0.0
    %1148 = vmatpush2.xpose.msra.mxu0 0.0
    %1149 = vmatprep.subr.mxu0 0.0
    %1150 = vmatpush2.xpose.msra.mxu0 0.0
    %1151 = vmatprep.subr.mxu0 0.0
    %1152 = vmatpush2.xpose.msra.mxu0 0.0
    %1153 = vmatprep.subr.mxu0 0.0
    %1154 = vmatpush2.xpose.msra.mxu0 0.0
    %1155 = vmatprep.subr.mxu0 0.0
    %1156 = vmatpush2.xpose.msra.mxu0 0.0
    %1157 = vmatprep.mubr.f32.mxu0 0.0
    %1158 = vmatmul.mubr.f32.gmra.mxu0 %v1089
    %v1159 = vpop.f32.mrf.mxu0
    %v1160 = vadd.f32 0.0, %v1159
    %v1161 = vpop.f32.mrf.mxu0
    %1162 = vdwg.mxu0
    %1163 = vrot.lane.b32.xlu0 %v431, 112
    %v1164 = vpop.permute.xlu0 %1163
    %1165 = vrot.lane.b32.xlu0 %v341, 112
    %v1166 = vpop.permute.xlu0 %1165
    %v1167 = vsel %vm432, %v1164, 0
    %v1169 = vsel %vm432, %v1166, 0
    %1171 = vmatprep.subr.mxu0 0.0
    %1172 = vmatpush1.xpose.msra.mxu0 0.0
    %1173 = vmatprep.subr.mxu0 0.0
    %1174 = vmatpush1.xpose.msra.mxu0 0.0
    %1175 = vmatprep.subr.mxu0 0.0
    %1176 = vmatpush1.xpose.msra.mxu0 0.0
    %1177 = vmatprep.subr.mxu0 0.0
    %1178 = vmatpush1.xpose.msra.mxu0 0.0
    %1179 = vmatprep.subr.mxu0 0.0
    %1180 = vmatpush1.xpose.msra.mxu0 0.0
    %1181 = vmatprep.subr.mxu0 0.0
    %1182 = vmatpush1.xpose.msra.mxu0 0.0
    %1183 = vmatprep.subr.mxu0 0.0
    %1184 = vmatpush1.xpose.msra.mxu0 0.0
    %1185 = vmatprep.subr.mxu0 0.0
    %1186 = vmatpush1.xpose.msra.mxu0 0.0
    %1187 = vmatprep.subr.mxu0 0.0
    %1188 = vmatpush1.xpose.msra.mxu0 0.0
    %1189 = vmatprep.subr.mxu0 0.0
    %1190 = vmatpush1.xpose.msra.mxu0 0.0
    %1191 = vmatprep.subr.mxu0 0.0
    %1192 = vmatpush1.xpose.msra.mxu0 0.0
    %1193 = vmatprep.subr.mxu0 0.0
    %1194 = vmatpush1.xpose.msra.mxu0 0.0
    %1195 = vmatprep.subr.mxu0 0.0
    %1196 = vmatpush1.xpose.msra.mxu0 0.0
    %1197 = vmatprep.subr.mxu0 0.0
    %1198 = vmatpush1.xpose.msra.mxu0 0.0
    %1199 = vmatprep.subr.mxu0 0.0
    %1200 = vmatpush1.xpose.msra.mxu0 0.0
    %1201 = vmatprep.subr.mxu0 0.0
    %1202 = vmatpush1.xpose.msra.mxu0 %v1169
    %1203 = vmatprep.subr.mxu0 0.0
    %1204 = vmatpush2.xpose.msra.mxu0 0.0
    %1205 = vmatprep.subr.mxu0 0.0
    %1206 = vmatpush2.xpose.msra.mxu0 0.0
    %1207 = vmatprep.subr.mxu0 0.0
    %1208 = vmatpush2.xpose.msra.mxu0 0.0
    %1209 = vmatprep.subr.mxu0 0.0
    %1210 = vmatpush2.xpose.msra.mxu0 0.0
    %1211 = vmatprep.subr.mxu0 0.0
    %1212 = vmatpush2.xpose.msra.mxu0 0.0
    %1213 = vmatprep.subr.mxu0 0.0
    %1214 = vmatpush2.xpose.msra.mxu0 0.0
    %1215 = vmatprep.subr.mxu0 0.0
    %1216 = vmatpush2.xpose.msra.mxu0 0.0
    %1217 = vmatprep.subr.mxu0 0.0
    %1218 = vmatpush2.xpose.msra.mxu0 0.0
    %1219 = vmatprep.subr.mxu0 0.0
    %1220 = vmatpush2.xpose.msra.mxu0 0.0
    %1221 = vmatprep.subr.mxu0 0.0
    %1222 = vmatpush2.xpose.msra.mxu0 0.0
    %1223 = vmatprep.subr.mxu0 0.0
    %1224 = vmatpush2.xpose.msra.mxu0 0.0
    %1225 = vmatprep.subr.mxu0 0.0
    %1226 = vmatpush2.xpose.msra.mxu0 0.0
    %1227 = vmatprep.subr.mxu0 0.0
    %1228 = vmatpush2.xpose.msra.mxu0 0.0
    %1229 = vmatprep.subr.mxu0 0.0
    %1230 = vmatpush2.xpose.msra.mxu0 0.0
    %1231 = vmatprep.subr.mxu0 0.0
    %1232 = vmatpush2.xpose.msra.mxu0 0.0
    %1233 = vmatprep.subr.mxu0 0.0
    %1234 = vmatpush2.xpose.msra.mxu0 0.0
    %1235 = vmatprep.mubr.f32.mxu0 0.0
    %1236 = vmatmul.mubr.f32.gmra.mxu0 %v1167
    %v1237 = vpop.f32.mrf.mxu0
    %v1238 = vadd.f32 0.0, %v1237
    %v1239 = vpop.f32.mrf.mxu0
    %1240 = vdwg.mxu0
    %v1241 = vsel %vm432, %v1160, -inf
    %1242 = vmax.xlane.f32.xlu0 %v1241
    %v1243 = vpop.xlane.xlu0 %1242
    %v1244 = vsel %vm432, %v1238, -inf
    %1245 = vmax.xlane.f32.xlu0 %v1244
    %v1246 = vpop.xlane.xlu0 %1245
    %v1247 = vsub.f32 %v1160, %v1243
    %v1248 = vsub.f32 %v1238, %v1246
    %v1249 = vmul.f32 %v1247, 1.442695
    %v1250 = vpow.pop %v1249
    %v1251 = vmul.f32 %v1248, 1.442695
    %v1252 = vpow.pop %v1251
    %v1253 = vsel %vm432, %v1250, 0.0
    %1254 = vadd.xlane.f32.xlu0 %v1253
    %v1255 = vpop.xlane.xlu0 %1254
    %v1256 = vsel %vm432, %v1252, 0.0
    %1257 = vadd.xlane.f32.xlu0 %v1256
    %v1258 = vpop.xlane.xlu0 %1257
    %v1259 = vrcp.pop %v1255
    %v1260 = vrcp.pop %v1258
    %v1261 = vmul.f32 %v1250, %v1259
    %v1262 = vmul.f32 %v1252, %v1260
    %1263 = vrot.lane.b32.xlu0 %v422, 112
    %v1264 = vpop.permute.xlu0 %1263
    %v1267 = vsel %vm432, %v1261, 0
    %1269 = vmatprep.subr.mxu0 0.0
    %1270 = vmatpush1.msra.mxu0 0.0
    %1271 = vmatprep.subr.mxu0 0.0
    %1272 = vmatpush1.msra.mxu0 0.0
    %1273 = vmatprep.subr.mxu0 0.0
    %1274 = vmatpush1.msra.mxu0 0.0
    %1275 = vmatprep.subr.mxu0 0.0
    %1276 = vmatpush1.msra.mxu0 0.0
    %1277 = vmatprep.subr.mxu0 0.0
    %1278 = vmatpush1.msra.mxu0 0.0
    %1279 = vmatprep.subr.mxu0 0.0
    %1280 = vmatpush1.msra.mxu0 0.0
    %1281 = vmatprep.subr.mxu0 0.0
    %1282 = vmatpush1.msra.mxu0 0.0
    %1283 = vmatprep.subr.mxu0 0.0
    %1284 = vmatpush1.msra.mxu0 0.0
    %1285 = vmatprep.subr.mxu0 0.0
    %1286 = vmatpush1.msra.mxu0 0.0
    %1287 = vmatprep.subr.mxu0 0.0
    %1288 = vmatpush1.msra.mxu0 0.0
    %1289 = vmatprep.subr.mxu0 0.0
    %1290 = vmatpush1.msra.mxu0 0.0
    %1291 = vmatprep.subr.mxu0 0.0
    %1292 = vmatpush1.msra.mxu0 0.0
    %1293 = vmatprep.subr.mxu0 0.0
    %1294 = vmatpush1.msra.mxu0 0.0
    %1295 = vmatprep.subr.mxu0 0.0
    %1296 = vmatpush1.msra.mxu0 0.0
    %1297 = vmatprep.subr.mxu0 0.0
    %1298 = vmatpush1.msra.mxu0 0.0
    %1299 = vmatprep.subr.mxu0 0.0
    %1300 = vmatpush1.msra.mxu0 %v1264
    %1301 = vmatprep.subr.mxu0 0.0
    %1302 = vmatpush2.msra.mxu0 0.0
    %1303 = vmatprep.subr.mxu0 0.0
    %1304 = vmatpush2.msra.mxu0 0.0
    %1305 = vmatprep.subr.mxu0 0.0
    %1306 = vmatpush2.msra.mxu0 0.0
    %1307 = vmatprep.subr.mxu0 0.0
    %1308 = vmatpush2.msra.mxu0 0.0
    %1309 = vmatprep.subr.mxu0 0.0
    %1310 = vmatpush2.msra.mxu0 0.0
    %1311 = vmatprep.subr.mxu0 0.0
    %1312 = vmatpush2.msra.mxu0 0.0
    %1313 = vmatprep.subr.mxu0 0.0
    %1314 = vmatpush2.msra.mxu0 0.0
    %1315 = vmatprep.subr.mxu0 0.0
    %1316 = vmatpush2.msra.mxu0 0.0
    %1317 = vmatprep.subr.mxu0 0.0
    %1318 = vmatpush2.msra.mxu0 0.0
    %1319 = vmatprep.subr.mxu0 0.0
    %1320 = vmatpush2.msra.mxu0 0.0
    %1321 = vmatprep.subr.mxu0 0.0
    %1322 = vmatpush2.msra.mxu0 0.0
    %1323 = vmatprep.subr.mxu0 0.0
    %1324 = vmatpush2.msra.mxu0 0.0
    %1325 = vmatprep.subr.mxu0 0.0
    %1326 = vmatpush2.msra.mxu0 0.0
    %1327 = vmatprep.subr.mxu0 0.0
    %1328 = vmatpush2.msra.mxu0 0.0
    %1329 = vmatprep.subr.mxu0 0.0
    %1330 = vmatpush2.msra.mxu0 0.0
    %1331 = vmatprep.subr.mxu0 0.0
    %1332 = vmatpush2.msra.mxu0 0.0
    %1333 = vmatprep.mubr.f32.mxu0 0.0
    %1334 = vmatmul.mubr.f32.gmra.mxu0 %v1267
    %v1335 = vpop.f32.mrf.mxu0
    %v1336 = vadd.f32 0.0, %v1335
    %v1337 = vpop.f32.mrf.mxu0
    %1338 = vdwg.mxu0
    %1339 = vrot.lane.b32.xlu0 %v427, 112
    %v1340 = vpop.permute.xlu0 %1339
    %v1343 = vsel %vm432, %v1262, 0
    %1345 = vmatprep.subr.mxu0 0.0
    %1346 = vmatpush1.msra.mxu0 0.0
    %1347 = vmatprep.subr.mxu0 0.0
    %1348 = vmatpush1.msra.mxu0 0.0
    %1349 = vmatprep.subr.mxu0 0.0
    %1350 = vmatpush1.msra.mxu0 0.0
    %1351 = vmatprep.subr.mxu0 0.0
    %1352 = vmatpush1.msra.mxu0 0.0
    %1353 = vmatprep.subr.mxu0 0.0
    %1354 = vmatpush1.msra.mxu0 0.0
    %1355 = vmatprep.subr.mxu0 0.0
    %1356 = vmatpush1.msra.mxu0 0.0
    %1357 = vmatprep.subr.mxu0 0.0
    %1358 = vmatpush1.msra.mxu0 0.0
    %1359 = vmatprep.subr.mxu0 0.0
    %1360 = vmatpush1.msra.mxu0 0.0
    %1361 = vmatprep.subr.mxu0 0.0
    %1362 = vmatpush1.msra.mxu0 0.0
    %1363 = vmatprep.subr.mxu0 0.0
    %1364 = vmatpush1.msra.mxu0 0.0
    %1365 = vmatprep.subr.mxu0 0.0
    %1366 = vmatpush1.msra.mxu0 0.0
    %1367 = vmatprep.subr.mxu0 0.0
    %1368 = vmatpush1.msra.mxu0 0.0
    %1369 = vmatprep.subr.mxu0 0.0
    %1370 = vmatpush1.msra.mxu0 0.0
    %1371 = vmatprep.subr.mxu0 0.0
    %1372 = vmatpush1.msra.mxu0 0.0
    %1373 = vmatprep.subr.mxu0 0.0
    %1374 = vmatpush1.msra.mxu0 0.0
    %1375 = vmatprep.subr.mxu0 0.0
    %1376 = vmatpush1.msra.mxu0 %v1340
    %1377 = vmatprep.subr.mxu0 0.0
    %1378 = vmatpush2.msra.mxu0 0.0
    %1379 = vmatprep.subr.mxu0 0.0
    %1380 = vmatpush2.msra.mxu0 0.0
    %1381 = vmatprep.subr.mxu0 0.0
    %1382 = vmatpush2.msra.mxu0 0.0
    %1383 = vmatprep.subr.mxu0 0.0
    %1384 = vmatpush2.msra.mxu0 0.0
    %1385 = vmatprep.subr.mxu0 0.0
    %1386 = vmatpush2.msra.mxu0 0.0
    %1387 = vmatprep.subr.mxu0 0.0
    %1388 = vmatpush2.msra.mxu0 0.0
    %1389 = vmatprep.subr.mxu0 0.0
    %1390 = vmatpush2.msra.mxu0 0.0
    %1391 = vmatprep.subr.mxu0 0.0
    %1392 = vmatpush2.msra.mxu0 0.0
    %1393 = vmatprep.subr.mxu0 0.0
    %1394 = vmatpush2.msra.mxu0 0.0
    %1395 = vmatprep.subr.mxu0 0.0
    %1396 = vmatpush2.msra.mxu0 0.0
    %1397 = vmatprep.subr.mxu0 0.0
    %1398 = vmatpush2.msra.mxu0 0.0
    %1399 = vmatprep.subr.mxu0 0.0
    %1400 = vmatpush2.msra.mxu0 0.0
    %1401 = vmatprep.subr.mxu0 0.0
    %1402 = vmatpush2.msra.mxu0 0.0
    %1403 = vmatprep.subr.mxu0 0.0
    %1404 = vmatpush2.msra.mxu0 0.0
    %1405 = vmatprep.subr.mxu0 0.0
    %1406 = vmatpush2.msra.mxu0 0.0
    %1407 = vmatprep.subr.mxu0 0.0
    %1408 = vmatpush2.msra.mxu0 0.0
    %1409 = vmatprep.mubr.f32.mxu0 0.0
    %1410 = vmatmul.mubr.f32.gmra.mxu0 %v1343
    %v1411 = vpop.f32.mrf.mxu0
    %v1412 = vadd.f32 0.0, %v1411
    %v1413 = vpop.f32.mrf.mxu0
    %1414 = vdwg.mxu0
    %1415 = vrot.lane.b32.xlu0 %v430, 104
    %v1416 = vpop.permute.xlu0 %1415
    %1417 = vrot.lane.b32.xlu0 %v336, 104
    %v1418 = vpop.permute.xlu0 %1417
    %v1419 = vsel %vm432, %v1416, 0
    %v1421 = vsel %vm432, %v1418, 0
    %1423 = vmatprep.subr.mxu0 0.0
    %1424 = vmatpush1.xpose.msra.mxu0 0.0
    %1425 = vmatprep.subr.mxu0 0.0
    %1426 = vmatpush1.xpose.msra.mxu0 0.0
    %1427 = vmatprep.subr.mxu0 0.0
    %1428 = vmatpush1.xpose.msra.mxu0 0.0
    %1429 = vmatprep.subr.mxu0 0.0
    %1430 = vmatpush1.xpose.msra.mxu0 0.0
    %1431 = vmatprep.subr.mxu0 0.0
    %1432 = vmatpush1.xpose.msra.mxu0 0.0
    %1433 = vmatprep.subr.mxu0 0.0
    %1434 = vmatpush1.xpose.msra.mxu0 0.0
    %1435 = vmatprep.subr.mxu0 0.0
    %1436 = vmatpush1.xpose.msra.mxu0 0.0
    %1437 = vmatprep.subr.mxu0 0.0
    %1438 = vmatpush1.xpose.msra.mxu0 0.0
    %1439 = vmatprep.subr.mxu0 0.0
    %1440 = vmatpush1.xpose.msra.mxu0 0.0
    %1441 = vmatprep.subr.mxu0 0.0
    %1442 = vmatpush1.xpose.msra.mxu0 0.0
    %1443 = vmatprep.subr.mxu0 0.0
    %1444 = vmatpush1.xpose.msra.mxu0 0.0
    %1445 = vmatprep.subr.mxu0 0.0
    %1446 = vmatpush1.xpose.msra.mxu0 0.0
    %1447 = vmatprep.subr.mxu0 0.0
    %1448 = vmatpush1.xpose.msra.mxu0 0.0
    %1449 = vmatprep.subr.mxu0 0.0
    %1450 = vmatpush1.xpose.msra.mxu0 0.0
    %1451 = vmatprep.subr.mxu0 0.0
    %1452 = vmatpush1.xpose.msra.mxu0 0.0
    %1453 = vmatprep.subr.mxu0 0.0
    %1454 = vmatpush1.xpose.msra.mxu0 %v1421
    %1455 = vmatprep.subr.mxu0 0.0
    %1456 = vmatpush2.xpose.msra.mxu0 0.0
    %1457 = vmatprep.subr.mxu0 0.0
    %1458 = vmatpush2.xpose.msra.mxu0 0.0
    %1459 = vmatprep.subr.mxu0 0.0
    %1460 = vmatpush2.xpose.msra.mxu0 0.0
    %1461 = vmatprep.subr.mxu0 0.0
    %1462 = vmatpush2.xpose.msra.mxu0 0.0
    %1463 = vmatprep.subr.mxu0 0.0
    %1464 = vmatpush2.xpose.msra.mxu0 0.0
    %1465 = vmatprep.subr.mxu0 0.0
    %1466 = vmatpush2.xpose.msra.mxu0 0.0
    %1467 = vmatprep.subr.mxu0 0.0
    %1468 = vmatpush2.xpose.msra.mxu0 0.0
    %1469 = vmatprep.subr.mxu0 0.0
    %1470 = vmatpush2.xpose.msra.mxu0 0.0
    %1471 = vmatprep.subr.mxu0 0.0
    %1472 = vmatpush2.xpose.msra.mxu0 0.0
    %1473 = vmatprep.subr.mxu0 0.0
    %1474 = vmatpush2.xpose.msra.mxu0 0.0
    %1475 = vmatprep.subr.mxu0 0.0
    %1476 = vmatpush2.xpose.msra.mxu0 0.0
    %1477 = vmatprep.subr.mxu0 0.0
    %1478 = vmatpush2.xpose.msra.mxu0 0.0
    %1479 = vmatprep.subr.mxu0 0.0
    %1480 = vmatpush2.xpose.msra.mxu0 0.0
    %1481 = vmatprep.subr.mxu0 0.0
    %1482 = vmatpush2.xpose.msra.mxu0 0.0
    %1483 = vmatprep.subr.mxu0 0.0
    %1484 = vmatpush2.xpose.msra.mxu0 0.0
    %1485 = vmatprep.subr.mxu0 0.0
    %1486 = vmatpush2.xpose.msra.mxu0 0.0
    %1487 = vmatprep.mubr.f32.mxu0 0.0
    %1488 = vmatmul.mubr.f32.gmra.mxu0 %v1419
    %v1489 = vpop.f32.mrf.mxu0
    %v1490 = vadd.f32 0.0, %v1489
    %v1491 = vpop.f32.mrf.mxu0
    %1492 = vdwg.mxu0
    %1493 = vrot.lane.b32.xlu0 %v431, 104
    %v1494 = vpop.permute.xlu0 %1493
    %1495 = vrot.lane.b32.xlu0 %v341, 104
    %v1496 = vpop.permute.xlu0 %1495
    %v1497 = vsel %vm432, %v1494, 0
    %v1499 = vsel %vm432, %v1496, 0
    %1501 = vmatprep.subr.mxu0 0.0
    %1502 = vmatpush1.xpose.msra.mxu0 0.0
    %1503 = vmatprep.subr.mxu0 0.0
    %1504 = vmatpush1.xpose.msra.mxu0 0.0
    %1505 = vmatprep.subr.mxu0 0.0
    %1506 = vmatpush1.xpose.msra.mxu0 0.0
    %1507 = vmatprep.subr.mxu0 0.0
    %1508 = vmatpush1.xpose.msra.mxu0 0.0
    %1509 = vmatprep.subr.mxu0 0.0
    %1510 = vmatpush1.xpose.msra.mxu0 0.0
    %1511 = vmatprep.subr.mxu0 0.0
    %1512 = vmatpush1.xpose.msra.mxu0 0.0
    %1513 = vmatprep.subr.mxu0 0.0
    %1514 = vmatpush1.xpose.msra.mxu0 0.0
    %1515 = vmatprep.subr.mxu0 0.0
    %1516 = vmatpush1.xpose.msra.mxu0 0.0
    %1517 = vmatprep.subr.mxu0 0.0
    %1518 = vmatpush1.xpose.msra.mxu0 0.0
    %1519 = vmatprep.subr.mxu0 0.0
    %1520 = vmatpush1.xpose.msra.mxu0 0.0
    %1521 = vmatprep.subr.mxu0 0.0
    %1522 = vmatpush1.xpose.msra.mxu0 0.0
    %1523 = vmatprep.subr.mxu0 0.0
    %1524 = vmatpush1.xpose.msra.mxu0 0.0
    %1525 = vmatprep.subr.mxu0 0.0
    %1526 = vmatpush1.xpose.msra.mxu0 0.0
    %1527 = vmatprep.subr.mxu0 0.0
    %1528 = vmatpush1.xpose.msra.mxu0 0.0
    %1529 = vmatprep.subr.mxu0 0.0
    %1530 = vmatpush1.xpose.msra.mxu0 0.0
    %1531 = vmatprep.subr.mxu0 0.0
    %1532 = vmatpush1.xpose.msra.mxu0 %v1499
    %1533 = vmatprep.subr.mxu0 0.0
    %1534 = vmatpush2.xpose.msra.mxu0 0.0
    %1535 = vmatprep.subr.mxu0 0.0
    %1536 = vmatpush2.xpose.msra.mxu0 0.0
    %1537 = vmatprep.subr.mxu0 0.0
    %1538 = vmatpush2.xpose.msra.mxu0 0.0
    %1539 = vmatprep.subr.mxu0 0.0
    %1540 = vmatpush2.xpose.msra.mxu0 0.0
    %1541 = vmatprep.subr.mxu0 0.0
    %1542 = vmatpush2.xpose.msra.mxu0 0.0
    %1543 = vmatprep.subr.mxu0 0.0
    %1544 = vmatpush2.xpose.msra.mxu0 0.0
    %1545 = vmatprep.subr.mxu0 0.0
    %1546 = vmatpush2.xpose.msra.mxu0 0.0
    %1547 = vmatprep.subr.mxu0 0.0
    %1548 = vmatpush2.xpose.msra.mxu0 0.0
    %1549 = vmatprep.subr.mxu0 0.0
    %1550 = vmatpush2.xpose.msra.mxu0 0.0
    %1551 = vmatprep.subr.mxu0 0.0
    %1552 = vmatpush2.xpose.msra.mxu0 0.0
    %1553 = vmatprep.subr.mxu0 0.0
    %1554 = vmatpush2.xpose.msra.mxu0 0.0
    %1555 = vmatprep.subr.mxu0 0.0
    %1556 = vmatpush2.xpose.msra.mxu0 0.0
    %1557 = vmatprep.subr.mxu0 0.0
    %1558 = vmatpush2.xpose.msra.mxu0 0.0
    %1559 = vmatprep.subr.mxu0 0.0
    %1560 = vmatpush2.xpose.msra.mxu0 0.0
    %1561 = vmatprep.subr.mxu0 0.0
    %1562 = vmatpush2.xpose.msra.mxu0 0.0
    %1563 = vmatprep.subr.mxu0 0.0
    %1564 = vmatpush2.xpose.msra.mxu0 0.0
    %1565 = vmatprep.mubr.f32.mxu0 0.0
    %1566 = vmatmul.mubr.f32.gmra.mxu0 %v1497
    %v1567 = vpop.f32.mrf.mxu0
    %v1568 = vadd.f32 0.0, %v1567
    %v1569 = vpop.f32.mrf.mxu0
    %1570 = vdwg.mxu0
    %v1571 = vsel %vm432, %v1490, -inf
    %1572 = vmax.xlane.f32.xlu0 %v1571
    %v1573 = vpop.xlane.xlu0 %1572
    %v1574 = vsel %vm432, %v1568, -inf
    %1575 = vmax.xlane.f32.xlu0 %v1574
    %v1576 = vpop.xlane.xlu0 %1575
    %v1577 = vsub.f32 %v1490, %v1573
    %v1578 = vsub.f32 %v1568, %v1576
    %v1579 = vmul.f32 %v1577, 1.442695
    %v1580 = vpow.pop %v1579
    %v1581 = vmul.f32 %v1578, 1.442695
    %v1582 = vpow.pop %v1581
    %v1583 = vsel %vm432, %v1580, 0.0
    %1584 = vadd.xlane.f32.xlu0 %v1583
    %v1585 = vpop.xlane.xlu0 %1584
    %v1586 = vsel %vm432, %v1582, 0.0
    %1587 = vadd.xlane.f32.xlu0 %v1586
    %v1588 = vpop.xlane.xlu0 %1587
    %v1589 = vrcp.pop %v1585
    %v1590 = vrcp.pop %v1588
    %v1591 = vmul.f32 %v1580, %v1589
    %v1592 = vmul.f32 %v1582, %v1590
    %1593 = vrot.lane.b32.xlu0 %v422, 104
    %v1594 = vpop.permute.xlu0 %1593
    %v1597 = vsel %vm432, %v1591, 0
    %1599 = vmatprep.subr.mxu0 0.0
    %1600 = vmatpush1.msra.mxu0 0.0
    %1601 = vmatprep.subr.mxu0 0.0
    %1602 = vmatpush1.msra.mxu0 0.0
    %1603 = vmatprep.subr.mxu0 0.0
    %1604 = vmatpush1.msra.mxu0 0.0
    %1605 = vmatprep.subr.mxu0 0.0
    %1606 = vmatpush1.msra.mxu0 0.0
    %1607 = vmatprep.subr.mxu0 0.0
    %1608 = vmatpush1.msra.mxu0 0.0
    %1609 = vmatprep.subr.mxu0 0.0
    %1610 = vmatpush1.msra.mxu0 0.0
    %1611 = vmatprep.subr.mxu0 0.0
    %1612 = vmatpush1.msra.mxu0 0.0
    %1613 = vmatprep.subr.mxu0 0.0
    %1614 = vmatpush1.msra.mxu0 0.0
    %1615 = vmatprep.subr.mxu0 0.0
    %1616 = vmatpush1.msra.mxu0 0.0
    %1617 = vmatprep.subr.mxu0 0.0
    %1618 = vmatpush1.msra.mxu0 0.0
    %1619 = vmatprep.subr.mxu0 0.0
    %1620 = vmatpush1.msra.mxu0 0.0
    %1621 = vmatprep.subr.mxu0 0.0
    %1622 = vmatpush1.msra.mxu0 0.0
    %1623 = vmatprep.subr.mxu0 0.0
    %1624 = vmatpush1.msra.mxu0 0.0
    %1625 = vmatprep.subr.mxu0 0.0
    %1626 = vmatpush1.msra.mxu0 0.0
    %1627 = vmatprep.subr.mxu0 0.0
    %1628 = vmatpush1.msra.mxu0 0.0
    %1629 = vmatprep.subr.mxu0 0.0
    %1630 = vmatpush1.msra.mxu0 %v1594
    %1631 = vmatprep.subr.mxu0 0.0
    %1632 = vmatpush2.msra.mxu0 0.0
    %1633 = vmatprep.subr.mxu0 0.0
    %1634 = vmatpush2.msra.mxu0 0.0
    %1635 = vmatprep.subr.mxu0 0.0
    %1636 = vmatpush2.msra.mxu0 0.0
    %1637 = vmatprep.subr.mxu0 0.0
    %1638 = vmatpush2.msra.mxu0 0.0
    %1639 = vmatprep.subr.mxu0 0.0
    %1640 = vmatpush2.msra.mxu0 0.0
    %1641 = vmatprep.subr.mxu0 0.0
    %1642 = vmatpush2.msra.mxu0 0.0
    %1643 = vmatprep.subr.mxu0 0.0
    %1644 = vmatpush2.msra.mxu0 0.0
    %1645 = vmatprep.subr.mxu0 0.0
    %1646 = vmatpush2.msra.mxu0 0.0
    %1647 = vmatprep.subr.mxu0 0.0
    %1648 = vmatpush2.msra.mxu0 0.0
    %1649 = vmatprep.subr.mxu0 0.0
    %1650 = vmatpush2.msra.mxu0 0.0
    %1651 = vmatprep.subr.mxu0 0.0
    %1652 = vmatpush2.msra.mxu0 0.0
    %1653 = vmatprep.subr.mxu0 0.0
    %1654 = vmatpush2.msra.mxu0 0.0
    %1655 = vmatprep.subr.mxu0 0.0
    %1656 = vmatpush2.msra.mxu0 0.0
    %1657 = vmatprep.subr.mxu0 0.0
    %1658 = vmatpush2.msra.mxu0 0.0
    %1659 = vmatprep.subr.mxu0 0.0
    %1660 = vmatpush2.msra.mxu0 0.0
    %1661 = vmatprep.subr.mxu0 0.0
    %1662 = vmatpush2.msra.mxu0 0.0
    %1663 = vmatprep.mubr.f32.mxu0 0.0
    %1664 = vmatmul.mubr.f32.gmra.mxu0 %v1597
    %v1665 = vpop.f32.mrf.mxu0
    %v1666 = vadd.f32 0.0, %v1665
    %v1667 = vpop.f32.mrf.mxu0
    %1668 = vdwg.mxu0
    %1669 = vrot.lane.b32.xlu0 %v427, 104
    %v1670 = vpop.permute.xlu0 %1669
    %v1673 = vsel %vm432, %v1592, 0
    %1675 = vmatprep.subr.mxu0 0.0
    %1676 = vmatpush1.msra.mxu0 0.0
    %1677 = vmatprep.subr.mxu0 0.0
    %1678 = vmatpush1.msra.mxu0 0.0
    %1679 = vmatprep.subr.mxu0 0.0
    %1680 = vmatpush1.msra.mxu0 0.0
    %1681 = vmatprep.subr.mxu0 0.0
    %1682 = vmatpush1.msra.mxu0 0.0
    %1683 = vmatprep.subr.mxu0 0.0
    %1684 = vmatpush1.msra.mxu0 0.0
    %1685 = vmatprep.subr.mxu0 0.0
    %1686 = vmatpush1.msra.mxu0 0.0
    %1687 = vmatprep.subr.mxu0 0.0
    %1688 = vmatpush1.msra.mxu0 0.0
    %1689 = vmatprep.subr.mxu0 0.0
    %1690 = vmatpush1.msra.mxu0 0.0
    %1691 = vmatprep.subr.mxu0 0.0
    %1692 = vmatpush1.msra.mxu0 0.0
    %1693 = vmatprep.subr.mxu0 0.0
    %1694 = vmatpush1.msra.mxu0 0.0
    %1695 = vmatprep.subr.mxu0 0.0
    %1696 = vmatpush1.msra.mxu0 0.0
    %1697 = vmatprep.subr.mxu0 0.0
    %1698 = vmatpush1.msra.mxu0 0.0
    %1699 = vmatprep.subr.mxu0 0.0
    %1700 = vmatpush1.msra.mxu0 0.0
    %1701 = vmatprep.subr.mxu0 0.0
    %1702 = vmatpush1.msra.mxu0 0.0
    %1703 = vmatprep.subr.mxu0 0.0
    %1704 = vmatpush1.msra.mxu0 0.0
    %1705 = vmatprep.subr.mxu0 0.0
    %1706 = vmatpush1.msra.mxu0 %v1670
    %1707 = vmatprep.subr.mxu0 0.0
    %1708 = vmatpush2.msra.mxu0 0.0
    %1709 = vmatprep.subr.mxu0 0.0
    %1710 = vmatpush2.msra.mxu0 0.0
    %1711 = vmatprep.subr.mxu0 0.0
    %1712 = vmatpush2.msra.mxu0 0.0
    %1713 = vmatprep.subr.mxu0 0.0
    %1714 = vmatpush2.msra.mxu0 0.0
    %1715 = vmatprep.subr.mxu0 0.0
    %1716 = vmatpush2.msra.mxu0 0.0
    %1717 = vmatprep.subr.mxu0 0.0
    %1718 = vmatpush2.msra.mxu0 0.0
    %1719 = vmatprep.subr.mxu0 0.0
    %1720 = vmatpush2.msra.mxu0 0.0
    %1721 = vmatprep.subr.mxu0 0.0
    %1722 = vmatpush2.msra.mxu0 0.0
    %1723 = vmatprep.subr.mxu0 0.0
    %1724 = vmatpush2.msra.mxu0 0.0
    %1725 = vmatprep.subr.mxu0 0.0
    %1726 = vmatpush2.msra.mxu0 0.0
    %1727 = vmatprep.subr.mxu0 0.0
    %1728 = vmatpush2.msra.mxu0 0.0
    %1729 = vmatprep.subr.mxu0 0.0
    %1730 = vmatpush2.msra.mxu0 0.0
    %1731 = vmatprep.subr.mxu0 0.0
    %1732 = vmatpush2.msra.mxu0 0.0
    %1733 = vmatprep.subr.mxu0 0.0
    %1734 = vmatpush2.msra.mxu0 0.0
    %1735 = vmatprep.subr.mxu0 0.0
    %1736 = vmatpush2.msra.mxu0 0.0
    %1737 = vmatprep.subr.mxu0 0.0
    %1738 = vmatpush2.msra.mxu0 0.0
    %1739 = vmatprep.mubr.f32.mxu0 0.0
    %1740 = vmatmul.mubr.f32.gmra.mxu0 %v1673
    %v1741 = vpop.f32.mrf.mxu0
    %v1742 = vadd.f32 0.0, %v1741
    %v1743 = vpop.f32.mrf.mxu0
    %1744 = vdwg.mxu0
    %1747 = vrot.lane.b32.xlu0 %v1005, 8
    %v1748 = vpop.permute.xlu0 %1747
    %1749 = vrot.lane.b32.xlu0 %v1082, 8
    %v1750 = vpop.permute.xlu0 %1749
    %1755 = vrot.lane.b32.xlu0 %v1336, 16
    %v1756 = vpop.permute.xlu0 %1755
    %1757 = vrot.lane.b32.xlu0 %v1412, 16
    %v1758 = vpop.permute.xlu0 %1757
    %1763 = vrot.lane.b32.xlu0 %v1666, 24
    %v1764 = vpop.permute.xlu0 %1763
    %1765 = vrot.lane.b32.xlu0 %v1742, 24
    %v1766 = vpop.permute.xlu0 %1765
    %v1769 = vsel %vm432, %v677, %v1748
    %v1770 = vsel %vm432, %v750, %v1750
    %vm1771 = vcmask 130048
    %v1772 = vsel %vm1771, %v1769, %v1756
    %v1773 = vsel %vm1771, %v1770, %v1758
    %vm1774 = vcmask 195584
    %v1775 = vsel %vm1774, %v1772, %v1764
    %v1776 = vsel %vm1774, %v1773, %v1766
    %v1777 = vld [vmem:[#allocation5] sm:$0xff]
    %v1778 = vld [vmem:[#allocation5 + $0x8] sm:$0xff]
    %v1779 = vld [vmem:[#allocation5 + $0x10] sm:$0xff]
    %v1780 = vld [vmem:[#allocation5 + $0x18] sm:$0xff]
    %v1781 = vld [vmem:[%s8] sm:$0x1]
    %v1783 = vlaneseq
    %v1784 = vshrl.u32 %v1783, 7
    %v1785 = vsub.s32 0, %v1784
    %v1786 = vrot.slane %v1781, %v1785
    %v1789 = vsel %vm122, %v1775, 0
    %v1792 = vsel %vm122, %v1776, 0
    %1794 = vmatprep.subr.mxu0 0.0
    %1795 = vmatpush1.msra.mxu0 0.0
    %1796 = vmatprep.subr.mxu0 0.0
    %1797 = vmatpush1.msra.mxu0 0.0
    %1798 = vmatprep.subr.mxu0 0.0
    %1799 = vmatpush1.msra.mxu0 0.0
    %1800 = vmatprep.subr.mxu0 0.0
    %1801 = vmatpush1.msra.mxu0 0.0
    %1802 = vmatprep.subr.mxu0 0.0
    %1803 = vmatpush1.msra.mxu0 0.0
    %1804 = vmatprep.subr.mxu0 0.0
    %1805 = vmatpush1.msra.mxu0 0.0
    %1806 = vmatprep.subr.mxu0 0.0
    %1807 = vmatpush1.msra.mxu0 0.0
    %1808 = vmatprep.subr.mxu0 0.0
    %1809 = vmatpush1.msra.mxu0 0.0
    %1810 = vmatprep.subr.mxu0 0.0
    %1811 = vmatpush1.msra.mxu0 0.0
    %1812 = vmatprep.subr.mxu0 0.0
    %1813 = vmatpush1.msra.mxu0 0.0
    %1814 = vmatprep.subr.mxu0 0.0
    %1815 = vmatpush1.msra.mxu0 0.0
    %1816 = vmatprep.subr.mxu0 0.0
    %1817 = vmatpush1.msra.mxu0 0.0
    %1818 = vmatprep.subr.mxu0 0.0
    %1819 = vmatpush1.msra.mxu0 %v1780
    %1820 = vmatprep.subr.mxu0 0.0
    %1821 = vmatpush1.msra.mxu0 %v1779
    %1822 = vmatprep.subr.mxu0 0.0
    %1823 = vmatpush1.msra.mxu0 %v1778
    %1824 = vmatprep.subr.mxu0 0.0
    %1825 = vmatpush1.msra.mxu0 %v1777
    %1826 = vmatprep.subr.mxu0 0.0
    %1827 = vmatpush2.msra.mxu0 0.0
    %1828 = vmatprep.subr.mxu0 0.0
    %1829 = vmatpush2.msra.mxu0 0.0
    %1830 = vmatprep.subr.mxu0 0.0
    %1831 = vmatpush2.msra.mxu0 0.0
    %1832 = vmatprep.subr.mxu0 0.0
    %1833 = vmatpush2.msra.mxu0 0.0
    %1834 = vmatprep.subr.mxu0 0.0
    %1835 = vmatpush2.msra.mxu0 0.0
    %1836 = vmatprep.subr.mxu0 0.0
    %1837 = vmatpush2.msra.mxu0 0.0
    %1838 = vmatprep.subr.mxu0 0.0
    %1839 = vmatpush2.msra.mxu0 0.0
    %1840 = vmatprep.subr.mxu0 0.0
    %1841 = vmatpush2.msra.mxu0 0.0
    %1842 = vmatprep.subr.mxu0 0.0
    %1843 = vmatpush2.msra.mxu0 0.0
    %1844 = vmatprep.subr.mxu0 0.0
    %1845 = vmatpush2.msra.mxu0 0.0
    %1846 = vmatprep.subr.mxu0 0.0
    %1847 = vmatpush2.msra.mxu0 0.0
    %1848 = vmatprep.subr.mxu0 0.0
    %1849 = vmatpush2.msra.mxu0 0.0
    %1850 = vmatprep.subr.mxu0 0.0
    %1851 = vmatpush2.msra.mxu0 0.0
    %1852 = vmatprep.subr.mxu0 0.0
    %1853 = vmatpush2.msra.mxu0 0.0
    %1854 = vmatprep.subr.mxu0 0.0
    %1855 = vmatpush2.msra.mxu0 0.0
    %1856 = vmatprep.subr.mxu0 0.0
    %1857 = vmatpush2.msra.mxu0 0.0
    %1858 = vmatprep.mubr.f32.mxu0 0.0
    %1859 = vmatmul.mubr.f32.gmra.mxu0 %v1789
    %v1860 = vpop.f32.mrf.mxu0
    %v1861 = vadd.f32 %v1786, %v1860
    %v1862 = vpop.f32.mrf.mxu0
    %1863 = vmatprep.mubr.f32.mxu0 0.0
    %1864 = vmatmul.mubr.f32.gmra.mxu0 %v1792
    %v1865 = vpop.f32.mrf.mxu0
    %v1866 = vadd.f32 %v1786, %v1865
    %v1867 = vpop.f32.mrf.mxu0
    %1868 = vdwg.mxu0
    %v1869 = vadd.f32 %v118, %v1861
    %v1870 = vadd.f32 %v119, %v1866
    %v1871 = vld [vmem:[%s11] sm:$0x1]
    %v1872 = vld [vmem:[%s12] sm:$0x1]
    %v1873 = vsel %vm122, %v1869, 0.0
    %1874 = vadd.xlane.f32.xlu0 %v1873
    %v1875 = vpop.xlane.xlu0 %1874
    %v1876 = vsel %vm122, %v1870, 0.0
    %1877 = vadd.xlane.f32.xlu0 %v1876
    %v1878 = vpop.xlane.xlu0 %1877
    %v1879 = vmul.f32 %v1875, %v129
    %v1880 = vmul.f32 %v1878, %v129
    %v1881 = vsub.f32 %v1869, %v1879
    %v1882 = vsub.f32 %v1870, %v1880
    %v1883 = vmul.f32 %v1881, %v1881
    %v1884 = vmul.f32 %v1882, %v1882
    %v1885 = vsel %vm122, %v1883, 0.0
    %1886 = vadd.xlane.f32.xlu0 %v1885
    %v1887 = vpop.xlane.xlu0 %1886
    %v1888 = vsel %vm122, %v1884, 0.0
    %1889 = vadd.xlane.f32.xlu0 %v1888
    %v1890 = vpop.xlane.xlu0 %1889
    %v1891 = vmul.f32 %v1887, %v129
    %v1892 = vmul.f32 %v1890, %v129
    %v1893 = vadd.f32 %v1891, 1e-05
    %v1894 = vadd.f32 %v1892, 1e-05
    %v1895 = vrsqrt.pop %v1893
    %v1896 = vrsqrt.pop %v1894
    %v1897 = vmul.f32 %v1881, %v1895
    %v1898 = vmul.f32 %v1882, %v1896
    %v1900 = vlaneseq
    %v1901 = vshrl.u32 %v1900, 7
    %v1902 = vsub.s32 0, %v1901
    %v1903 = vrot.slane %v1871, %v1902
    %v1905 = vmul.f32 %v1897, %v1903
    %v1906 = vmul.f32 %v1898, %v1903
    %v1908 = vlaneseq
    %v1909 = vshrl.u32 %v1908, 7
    %v1910 = vsub.s32 0, %v1909
    %v1911 = vrot.slane %v1872, %v1910
    %v1913 = vadd.f32 %v1905, %v1911
    %v1914 = vadd.f32 %v1906, %v1911
    %v1915 = vld [vmem:[#allocation7] sm:$0xff]
    %v1916 = vld [vmem:[#allocation7 + $0x8] sm:$0xff]
    %v1917 = vld [vmem:[#allocation7 + $0x10] sm:$0xff]
    %v1918 = vld [vmem:[#allocation7 + $0x18] sm:$0xff]
    %v1919 = vld [vmem:[%s14] sm:$0x1]
    %v1921 = vlaneseq
    %v1922 = vshrl.u32 %v1921, 7
    %v1923 = vsub.s32 0, %v1922
    %v1924 = vrot.slane %v1919, %v1923
    %v1927 = vsel %vm122, %v1913, 0
    %v1930 = vsel %vm122, %v1914, 0
    %1932 = vmatprep.subr.mxu0 0.0
    %1933 = vmatpush1.msra.mxu0 0.0
    %1934 = vmatprep.subr.mxu0 0.0
    %1935 = vmatpush1.msra.mxu0 0.0
    %1936 = vmatprep.subr.mxu0 0.0
    %1937 = vmatpush1.msra.mxu0 0.0
    %1938 = vmatprep.subr.mxu0 0.0
    %1939 = vmatpush1.msra.mxu0 0.0
    %1940 = vmatprep.subr.mxu0 0.0
    %1941 = vmatpush1.msra.mxu0 0.0
    %1942 = vmatprep.subr.mxu0 0.0
    %1943 = vmatpush1.msra.mxu0 0.0
    %1944 = vmatprep.subr.mxu0 0.0
    %1945 = vmatpush1.msra.mxu0 0.0
    %1946 = vmatprep.subr.mxu0 0.0
    %1947 = vmatpush1.msra.mxu0 0.0
    %1948 = vmatprep.subr.mxu0 0.0
    %1949 = vmatpush1.msra.mxu0 0.0
    %1950 = vmatprep.subr.mxu0 0.0
    %1951 = vmatpush1.msra.mxu0 0.0
    %1952 = vmatprep.subr.mxu0 0.0
    %1953 = vmatpush1.msra.mxu0 0.0
    %1954 = vmatprep.subr.mxu0 0.0
    %1955 = vmatpush1.msra.mxu0 0.0
    %1956 = vmatprep.subr.mxu0 0.0
    %1957 = vmatpush1.msra.mxu0 %v1918
    %1958 = vmatprep.subr.mxu0 0.0
    %1959 = vmatpush1.msra.mxu0 %v1917
    %1960 = vmatprep.subr.mxu0 0.0
    %1961 = vmatpush1.msra.mxu0 %v1916
    %1962 = vmatprep.subr.mxu0 0.0
    %1963 = vmatpush1.msra.mxu0 %v1915
    %1964 = vmatprep.subr.mxu0 0.0
    %1965 = vmatpush2.msra.mxu0 0.0
    %1966 = vmatprep.subr.mxu0 0.0
    %1967 = vmatpush2.msra.mxu0 0.0
    %1968 = vmatprep.subr.mxu0 0.0
    %1969 = vmatpush2.msra.mxu0 0.0
    %1970 = vmatprep.subr.mxu0 0.0
    %1971 = vmatpush2.msra.mxu0 0.0
    %1972 = vmatprep.subr.mxu0 0.0
    %1973 = vmatpush2.msra.mxu0 0.0
    %1974 = vmatprep.subr.mxu0 0.0
    %1975 = vmatpush2.msra.mxu0 0.0
    %1976 = vmatprep.subr.mxu0 0.0
    %1977 = vmatpush2.msra.mxu0 0.0
    %1978 = vmatprep.subr.mxu0 0.0
    %1979 = vmatpush2.msra.mxu0 0.0
    %1980 = vmatprep.subr.mxu0 0.0
    %1981 = vmatpush2.msra.mxu0 0.0
    %1982 = vmatprep.subr.mxu0 0.0
    %1983 = vmatpush2.msra.mxu0 0.0
    %1984 = vmatprep.subr.mxu0 0.0
    %1985 = vmatpush2.msra.mxu0 0.0
    %1986 = vmatprep.subr.mxu0 0.0
    %1987 = vmatpush2.msra.mxu0 0.0
    %1988 = vmatprep.subr.mxu0 0.0
    %1989 = vmatpush2.msra.mxu0 0.0
    %1990 = vmatprep.subr.mxu0 0.0
    %1991 = vmatpush2.msra.mxu0 0.0
    %1992 = vmatprep.subr.mxu0 0.0
    %1993 = vmatpush2.msra.mxu0 0.0
    %1994 = vmatprep.subr.mxu0 0.0
    %1995 = vmatpush2.msra.mxu0 0.0
    %1996 = vmatprep.mubr.f32.mxu0 0.0
    %1997 = vmatmul.mubr.f32.gmra.mxu0 %v1927
    %v1998 = vpop.f32.mrf.mxu0
    %v1999 = vadd.f32 %v1924, %v1998
    %v2000 = vpop.f32.mrf.mxu0
    %2001 = vmatprep.mubr.f32.mxu0 0.0
    %2002 = vmatmul.mubr.f32.gmra.mxu0 %v1930
    %v2003 = vpop.f32.mrf.mxu0
    %v2004 = vadd.f32 %v1924, %v2003
    %v2005 = vpop.f32.mrf.mxu0
    %2006 = vdwg.mxu0
    %v2007 = vld [vmem:[#allocation8] sm:$0xff]
    %v2008 = vld [vmem:[#allocation8 + $0x8] sm:$0xff]
    %v2009 = vld [vmem:[#allocation8 + $0x10] sm:$0xff]
    %v2010 = vld [vmem:[#allocation8 + $0x18] sm:$0xff]
    %v2011 = vld [vmem:[%s16] sm:$0x1]
    %v2013 = vlaneseq
    %v2014 = vshrl.u32 %v2013, 7
    %v2015 = vsub.s32 0, %v2014
    %v2016 = vrot.slane %v2011, %v2015
    %2018 = vmatprep.subr.mxu0 0.0
    %2019 = vmatpush1.msra.mxu0 0.0
    %2020 = vmatprep.subr.mxu0 0.0
    %2021 = vmatpush1.msra.mxu0 0.0
    %2022 = vmatprep.subr.mxu0 0.0
    %2023 = vmatpush1.msra.mxu0 0.0
    %2024 = vmatprep.subr.mxu0 0.0
    %2025 = vmatpush1.msra.mxu0 0.0
    %2026 = vmatprep.subr.mxu0 0.0
    %2027 = vmatpush1.msra.mxu0 0.0
    %2028 = vmatprep.subr.mxu0 0.0
    %2029 = vmatpush1.msra.mxu0 0.0
    %2030 = vmatprep.subr.mxu0 0.0
    %2031 = vmatpush1.msra.mxu0 0.0
    %2032 = vmatprep.subr.mxu0 0.0
    %2033 = vmatpush1.msra.mxu0 0.0
    %2034 = vmatprep.subr.mxu0 0.0
    %2035 = vmatpush1.msra.mxu0 0.0
    %2036 = vmatprep.subr.mxu0 0.0
    %2037 = vmatpush1.msra.mxu0 0.0
    %2038 = vmatprep.subr.mxu0 0.0
    %2039 = vmatpush1.msra.mxu0 0.0
    %2040 = vmatprep.subr.mxu0 0.0
    %2041 = vmatpush1.msra.mxu0 0.0
    %2042 = vmatprep.subr.mxu0 0.0
    %2043 = vmatpush1.msra.mxu0 %v2010
    %2044 = vmatprep.subr.mxu0 0.0
    %2045 = vmatpush1.msra.mxu0 %v2009
    %2046 = vmatprep.subr.mxu0 0.0
    %2047 = vmatpush1.msra.mxu0 %v2008
    %2048 = vmatprep.subr.mxu0 0.0
    %2049 = vmatpush1.msra.mxu0 %v2007
    %2050 = vmatprep.subr.mxu0 0.0
    %2051 = vmatpush2.msra.mxu0 0.0
    %2052 = vmatprep.subr.mxu0 0.0
    %2053 = vmatpush2.msra.mxu0 0.0
    %2054 = vmatprep.subr.mxu0 0.0
    %2055 = vmatpush2.msra.mxu0 0.0
    %2056 = vmatprep.subr.mxu0 0.0
    %2057 = vmatpush2.msra.mxu0 0.0
    %2058 = vmatprep.subr.mxu0 0.0
    %2059 = vmatpush2.msra.mxu0 0.0
    %2060 = vmatprep.subr.mxu0 0.0
    %2061 = vmatpush2.msra.mxu0 0.0
    %2062 = vmatprep.subr.mxu0 0.0
    %2063 = vmatpush2.msra.mxu0 0.0
    %2064 = vmatprep.subr.mxu0 0.0
    %2065 = vmatpush2.msra.mxu0 0.0
    %2066 = vmatprep.subr.mxu0 0.0
    %2067 = vmatpush2.msra.mxu0 0.0
    %2068 = vmatprep.subr.mxu0 0.0
    %2069 = vmatpush2.msra.mxu0 0.0
    %2070 = vmatprep.subr.mxu0 0.0
    %2071 = vmatpush2.msra.mxu0 0.0
    %2072 = vmatprep.subr.mxu0 0.0
    %2073 = vmatpush2.msra.mxu0 0.0
    %2074 = vmatprep.subr.mxu0 0.0
    %2075 = vmatpush2.msra.mxu0 0.0
    %2076 = vmatprep.subr.mxu0 0.0
    %2077 = vmatpush2.msra.mxu0 0.0
    %2078 = vmatprep.subr.mxu0 0.0
    %2079 = vmatpush2.msra.mxu0 0.0
    %2080 = vmatprep.subr.mxu0 0.0
    %2081 = vmatpush2.msra.mxu0 0.0
    %2082 = vmatprep.mubr.f32.mxu0 0.0
    %2083 = vmatmul.mubr.f32.gmra.mxu0 %v1927
    %v2084 = vpop.f32.mrf.mxu0
    %v2085 = vadd.f32 %v2016, %v2084
    %v2086 = vpop.f32.mrf.mxu0
    %2087 = vmatprep.mubr.f32.mxu0 0.0
    %2088 = vmatmul.mubr.f32.gmra.mxu0 %v1930
    %v2089 = vpop.f32.mrf.mxu0
    %v2090 = vadd.f32 %v2016, %v2089
    %v2091 = vpop.f32.mrf.mxu0
    %2092 = vdwg.mxu0
    %v2093 = vmax.f32 %v1999, 0.0
    %v2094 = vmax.f32 %v2004, 0.0
    %v2095 = vmul.f32 %v2093, %v2085
    %v2096 = vmul.f32 %v2094, %v2090
    %v2097 = vld [vmem:[%s17] sm:$0xff]
    %v2098 = vld [vmem:[%s17 + $0x8] sm:$0xff]
    %v2099 = vld [vmem:[%s17 + $0x10] sm:$0xff]
    %v2100 = vld [vmem:[%s17 + $0x18] sm:$0xff]
    %v2101 = vld [vmem:[%s17 + $0x20] sm:$0xff]
    %v2102 = vld [vmem:[%s17 + $0x28] sm:$0xff]
    %v2103 = vld [vmem:[%s17 + $0x30] sm:$0xff]
    %v2104 = vld [vmem:[%s17 + $0x38] sm:$0xff]
    %v2105 = vld [vmem:[%s18] sm:$0x1]
    %v2107 = vlaneseq
    %v2108 = vshrl.u32 %v2107, 7
    %v2109 = vsub.s32 0, %v2108
    %v2110 = vrot.slane %v2105, %v2109
    %vm2112 = vcmask 523264
    %v2114 = vsel %vm2112, %v2095, 0
    %v2117 = vsel %vm2112, %v2096, 0
    %2119 = vmatprep.subr.mxu0 0.0
    %2120 = vmatpush1.msra.mxu0 0.0
    %2121 = vmatprep.subr.mxu0 0.0
    %2122 = vmatpush1.msra.mxu0 0.0
    %2123 = vmatprep.subr.mxu0 0.0
    %2124 = vmatpush1.msra.mxu0 0.0
    %2125 = vmatprep.subr.mxu0 0.0
    %2126 = vmatpush1.msra.mxu0 0.0
    %2127 = vmatprep.subr.mxu0 0.0
    %2128 = vmatpush1.msra.mxu0 0.0
    %2129 = vmatprep.subr.mxu0 0.0
    %2130 = vmatpush1.msra.mxu0 0.0
    %2131 = vmatprep.subr.mxu0 0.0
    %2132 = vmatpush1.msra.mxu0 0.0
    %2133 = vmatprep.subr.mxu0 0.0
    %2134 = vmatpush1.msra.mxu0 0.0
    %2135 = vmatprep.subr.mxu0 0.0
    %2136 = vmatpush1.msra.mxu0 %v2104
    %2137 = vmatprep.subr.mxu0 0.0
    %2138 = vmatpush1.msra.mxu0 %v2103
    %2139 = vmatprep.subr.mxu0 0.0
    %2140 = vmatpush1.msra.mxu0 %v2102
    %2141 = vmatprep.subr.mxu0 0.0
    %2142 = vmatpush1.msra.mxu0 %v2101
    %2143 = vmatprep.subr.mxu0 0.0
    %2144 = vmatpush1.msra.mxu0 %v2100
    %2145 = vmatprep.subr.mxu0 0.0
    %2146 = vmatpush1.msra.mxu0 %v2099
    %2147 = vmatprep.subr.mxu0 0.0
    %2148 = vmatpush1.msra.mxu0 %v2098
    %2149 = vmatprep.subr.mxu0 0.0
    %2150 = vmatpush1.msra.mxu0 %v2097
    %2151 = vmatprep.subr.mxu0 0.0
    %2152 = vmatpush2.msra.mxu0 0.0
    %2153 = vmatprep.subr.mxu0 0.0
    %2154 = vmatpush2.msra.mxu0 0.0
    %2155 = vmatprep.subr.mxu0 0.0
    %2156 = vmatpush2.msra.mxu0 0.0
    %2157 = vmatprep.subr.mxu0 0.0
    %2158 = vmatpush2.msra.mxu0 0.0
    %2159 = vmatprep.subr.mxu0 0.0
    %2160 = vmatpush2.msra.mxu0 0.0
    %2161 = vmatprep.subr.mxu0 0.0
    %2162 = vmatpush2.msra.mxu0 0.0
    %2163 = vmatprep.subr.mxu0 0.0
    %2164 = vmatpush2.msra.mxu0 0.0
    %2165 = vmatprep.subr.mxu0 0.0
    %2166 = vmatpush2.msra.mxu0 0.0
    %2167 = vmatprep.subr.mxu0 0.0
    %2168 = vmatpush2.msra.mxu0 0.0
    %2169 = vmatprep.subr.mxu0 0.0
    %2170 = vmatpush2.msra.mxu0 0.0
    %2171 = vmatprep.subr.mxu0 0.0
    %2172 = vmatpush2.msra.mxu0 0.0
    %2173 = vmatprep.subr.mxu0 0.0
    %2174 = vmatpush2.msra.mxu0 0.0
    %2175 = vmatprep.subr.mxu0 0.0
    %2176 = vmatpush2.msra.mxu0 0.0
    %2177 = vmatprep.subr.mxu0 0.0
    %2178 = vmatpush2.msra.mxu0 0.0
    %2179 = vmatprep.subr.mxu0 0.0
    %2180 = vmatpush2.msra.mxu0 0.0
    %2181 = vmatprep.subr.mxu0 0.0
    %2182 = vmatpush2.msra.mxu0 0.0
    %2183 = vmatprep.mubr.f32.mxu0 0.0
    %2184 = vmatmul.mubr.f32.gmra.mxu0 %v2114
    %v2185 = vpop.f32.mrf.mxu0
    %v2186 = vadd.f32 %v2110, %v2185
    %v2187 = vpop.f32.mrf.mxu0
    %2188 = vmatprep.mubr.f32.mxu0 0.0
    %2189 = vmatmul.mubr.f32.gmra.mxu0 %v2117
    %v2190 = vpop.f32.mrf.mxu0
    %v2191 = vadd.f32 %v2110, %v2190
    %v2192 = vpop.f32.mrf.mxu0
    %2193 = vdwg.mxu0
    %v2194 = vadd.f32 %v1869, %v2186
    %v2195 = vadd.f32 %v1870, %v2191
    %2196 = vst.msk [vmem:[#allocation10] sm:$0xff] %vm122, %v2194
    %2197 = vst.msk [vmem:[#allocation10 + $0x8] sm:$0xff] %vm122, %v2195
    // Predicated region
    $region94: #{tpu_custom_call.1} parent=1 // pred_check
      _
    $region95: #{tpu_custom_call.1} parent=1 // pred_check_branch
      %2199 = sbr.rel (0) target = $region97
    $region96: #{tpu_custom_call.1} parent=1 // pred_region
      %s2201 = ssub.s32 256, 256
      %2202 = vsyncadd [#allocation4], %s2201
      %s2203 = sshll.u32 [#allocation10], 4
      %s2204 = int_to_ptr.vmem [resolvable:$true] %s2203
      %2209 = dma.vmem_to_hbm [thread:$0]  %s2204, 256, %s19, [#allocation4], 128, 128, 8
    $region97: #{tpu_custom_call.1} parent=1 // pred_fallthru
      _
    // Predicated region
    $region98: #{tpu_custom_call.1} parent=1 // pred_check
      _
    $region99: #{tpu_custom_call.1} parent=1 // pred_check_branch
      %2211 = sbr.rel (0) target = $region101
    $region100: #{tpu_custom_call.1} parent=1 // pred_region
      %2212 = dma.done [#allocation4], 256
    $region101: #{tpu_custom_call.1} parent=1 // pred_fallthru
      _
    %2213 = vsyncpa [#allocation3], 1
    %2214 = vsyncpa [#allocation6], 1
    %2215 = vsyncpa [#allocation9], 1
    %2216 = vsyncpa [#allocation4], 1

</llo_original>
